<compile_context>
chip_gen: v7x
topology: tpu7x:2x2x1
jax: 0.10.0
libtpu: 0.0.40
codegen_flags: <defaults>
</compile_context>

<pallas_src>
import functools

import numpy as np
import jax
import jax.numpy as jnp
from jax.experimental import pallas as pl
from jax.experimental.pallas import tpu as pltpu

V = 778          # MANO vertex count (fixed: fingertip indices require it)
VPAD = 896       # 7 * 128 lane-padded vertex axis
NJ = 16          # number of joints (root + 15)
NCOMPS = 6       # PCA pose components
ROT = 3          # axis-angle root rotation
NPOSEDIR = 135   # 15 joints * 9 rotation entries
NPD1 = NPOSEDIR + 1   # pose_map + constant-1 column (folds v_shaped into the dot)

TIP_IDXS = (745, 317, 444, 556, 673)   # side == 'right'


def _round_up(x, m):
    return ((x + m - 1) // m) * m


def _default_tb_cap():
    """Per-generation batch-block cap (review: v5e/v7x 128, v6e 256)."""
    try:
        kind = jax.devices()[0].device_kind.lower()
    except Exception:                                   # pragma: no cover
        return 128
    return 256 if "v6" in kind else 128


# ----------------------------------------------------------------------------
# Pallas kernel: pose blendshapes + linear blend skinning (TB batch rows/step)
# ----------------------------------------------------------------------------
def _mano_lbs_kernel(pm_ref, a_ref, posedirs_ref, weights_t_ref, verts_ref, *, tb):
    """Blocked LBS.

    pm_ref       : (TB, 136)      pose-map coefficients + constant-1 column
    a_ref        : (1, 12*TB, 16) A[(4i+j)*TB + b, k] = adjusted[b, k, i, j]
    posedirs_ref : (136, 3*VPAD)  fused pose blendshape basis; last row = v_shaped
    weights_t_ref: (16, VPAD)     skinning weights transposed (zero-padded lanes)
    verts_ref    : (3, TB, VPAD)  output posed vertices, channel-outer
    """
    f32 = jnp.float32
    # pose-corrected rest vertices: one fused MXU matmul, (TB, 3*VPAD).
    # v_shaped is folded in via the appended ones column / extra basis row.
    slab = jnp.dot(pm_ref[...], posedirs_ref[...], preferred_element_type=f32)
    vx = slab[:, 0 * VPAD:1 * VPAD]
    vy = slab[:, 1 * VPAD:2 * VPAD]
    vz = slab[:, 2 * VPAD:3 * VPAD]

    w = weights_t_ref[...]          # (16, VPAD)
    a = a_ref[0]                    # (12*TB, 16)

    # Per output channel: four small (TB,16)x(16,VPAD) dots, consumed
    # immediately (no (12*TB, VPAD) intermediate -> no MXU-result spill /
    # extra VMEM round trip through the store slot).
    for i in range(3):
        base = 4 * i * tb
        sx = jnp.dot(a[base + 0 * tb:base + 1 * tb], w, preferred_element_type=f32)
        sy = jnp.dot(a[base + 1 * tb:base + 2 * tb], w, preferred_element_type=f32)
        sz = jnp.dot(a[base + 2 * tb:base + 3 * tb], w, preferred_element_type=f32)
        st = jnp.dot(a[base + 3 * tb:base + 4 * tb], w, preferred_element_type=f32)
        verts_ref[i] = sx * vx + sy * vy + sz * vz + st          # (TB, VPAD)


def mano_lbs_pallas(pose_map, a_t12, posedirs_vs, weights_t_pad):
    """pose_map (B,135), a_t12 (B,12,16) -> posed vertices, channel-major (3, B, V)."""
    B = pose_map.shape[0]
    b8 = _round_up(max(B, 1), 8)                 # batch padded to a sublane multiple
    tb = min(_default_tb_cap(), b8)
    # Ensure >=2 grid steps whenever the batch allows it, so the "parallel"
    # grid axis can span both TensorCores on v7x (no cost elsewhere: steps are
    # HBM-output-bound and still well above the ~0.35us per-step overhead).
    if b8 >= 16 and b8 // tb < 2:
        tb = _round_up(b8 // 2, 8)
    b_pad = _round_up(b8, tb)
    nb = b_pad // tb

    # pose_map + constant-1 column, then pad the batch axis.
    pm1 = jnp.concatenate([pose_map, jnp.ones((B, 1), pose_map.dtype)], axis=1)
    pm1 = jnp.pad(pm1, ((0, b_pad - B), (0, 0)))                 # (b_pad, 136)

    a = jnp.pad(a_t12, ((0, b_pad - B), (0, 0), (0, 0)))         # (b_pad, 12, 16)
    # pre-block to (nb, 12*TB, 16): rows grouped by transform-entry m, then batch
    a_blocked = (a.reshape(nb, tb, 12, NJ)
                  .transpose(0, 2, 1, 3)
                  .reshape(nb, 12 * tb, NJ))

    # TODO(synk): constant operands could be single-buffered (pl.Buffered(1));
    # working set is <12 MiB so the default double-buffering is fine here.
    kernel = functools.partial(_mano_lbs_kernel, tb=tb)
    verts = pl.pallas_call(
        kernel,
        out_shape=jax.ShapeDtypeStruct((3, b_pad, VPAD), jnp.float32),
        grid=(nb,),
        in_specs=[
            pl.BlockSpec((tb, NPD1), lambda b: (b, 0)),
            pl.BlockSpec((1, 12 * tb, NJ), lambda b: (b, 0, 0)),
            pl.BlockSpec((NPD1, 3 * VPAD), lambda b: (0, 0)),
            pl.BlockSpec((NJ, VPAD), lambda b: (0, 0)),
        ],
        out_specs=pl.BlockSpec((3, tb, VPAD), lambda b: (0, b, 0)),
        compiler_params=pltpu.CompilerParams(
            dimension_semantics=("parallel",),
            vmem_limit_bytes=32 * 1024 * 1024),
    )(pm1, a_blocked, posedirs_vs, weights_t_pad)
    return verts[:, :B, :V]                                      # (3, B, V)


# ----------------------------------------------------------------------------
# JAX glue (tiny 3x3 / 4x4 math, exact port of manopth helpers)
# ----------------------------------------------------------------------------
def _quat2mat(quat):
    norm_quat = quat / jnp.linalg.norm(quat, axis=1, keepdims=True)
    w, x, y, z = norm_quat[:, 0], norm_quat[:, 1], norm_quat[:, 2], norm_quat[:, 3]
    w2, x2, y2, z2 = w * w, x * x, y * y, z * z
    wx, wy, wz = w * x, w * y, w * z
    xy, xz, yz = x * y, x * z, y * z
    rot = jnp.stack([
        w2 + x2 - y2 - z2, 2 * xy - 2 * wz, 2 * wy + 2 * xz,
        2 * wz + 2 * xy, w2 - x2 + y2 - z2, 2 * yz - 2 * wx,
        2 * xz - 2 * wy, 2 * wx + 2 * yz, w2 - x2 - y2 + z2], axis=1)
    return rot


def _batch_rodrigues(axisang):
    angle = jnp.linalg.norm(axisang + 1e-8, axis=1, keepdims=True)
    normalized = axisang / angle
    half = angle * 0.5
    quat = jnp.concatenate([jnp.cos(half), jnp.sin(half) * normalized], axis=1)
    return _quat2mat(quat)                                       # (N, 9)


def _th_posemap_axisang(pose_vectors):
    B = pose_vectors.shape[0]
    nrot = pose_vectors.shape[1] // 3
    rot_mats = _batch_rodrigues(pose_vectors.reshape(-1, 3)).reshape(B, nrot * 9)
    flat_id = jnp.tile(jnp.eye(3, dtype=pose_vectors.dtype).reshape(1, 9), (1, nrot))
    return rot_mats - flat_id, rot_mats


def _th_with_zeros(x):                                           # (N,3,4) -> (N,4,4)
    pad = jnp.broadcast_to(jnp.array([0., 0., 0., 1.], x.dtype), (x.shape[0], 1, 4))
    return jnp.concatenate([x, pad], axis=1)


# ----------------------------------------------------------------------------
# Parameter init (synthetic, deterministic; shapes match the MANO pkl buffers)
# ----------------------------------------------------------------------------
def init_mano_params(key):
    ks = jax.random.split(key, 8)
    jreg = jnp.abs(jax.random.normal(ks[4], (NJ, V), jnp.float32))
    params = {
        "th_betas": jax.random.normal(ks[0], (1, 10), jnp.float32) * 0.1,
        "th_shapedirs": jax.random.normal(ks[1], (V, 3, 10), jnp.float32) * 0.01,
        "th_posedirs": jax.random.normal(ks[2], (V, 3, NPOSEDIR), jnp.float32) * 0.001,
        "th_v_template": jax.random.normal(ks[3], (1, V, 3), jnp.float32) * 0.05,
        "th_J_regressor": jreg / jnp.sum(jreg, axis=1, keepdims=True),
        "th_weights": jax.nn.softmax(jax.random.normal(ks[5], (V, NJ), jnp.float32), axis=1),
        "th_hands_mean": jnp.zeros((1, 45), jnp.float32),        # flat_hand_mean=True
        "th_selected_comps": jax.random.normal(ks[6], (NCOMPS, 45), jnp.float32) * 0.1,
    }
    return params


def precompute_mano_consts(params):
    """One-time, batch-independent operand prep (hoisted out of the forward)."""
    # shape blendshapes (default-betas branch of the module: batch independent)
    v_shaped = (jnp.matmul(params["th_shapedirs"], params["th_betas"].T)
                .transpose(2, 0, 1) + params["th_v_template"])   # (1, V, 3)
    th_j = jnp.matmul(params["th_J_regressor"], v_shaped)        # (1, 16, 3)

    # fused, channel-major, lane-padded posedirs: [p, c*VPAD + v] = posedirs[v, c, p]
    pd = jnp.transpose(params["th_posedirs"], (1, 2, 0))         # (3, 135, V)
    pd = jnp.pad(pd, ((0, 0), (0, 0), (0, VPAD - V)))
    posedirs_cat = jnp.transpose(pd, (1, 0, 2)).reshape(NPOSEDIR, 3 * VPAD)

    # v_shaped appended as an extra basis row: pairs with the constant-1
    # pose-map column so the rest-vertex add is free inside the MXU matmul.
    vs = jnp.pad(jnp.transpose(v_shaped[0], (1, 0)), ((0, 0), (0, VPAD - V)))
    v_shaped_row = vs.reshape(1, 3 * VPAD)
    posedirs_vs = jnp.concatenate([posedirs_cat, v_shaped_row], axis=0)   # (136, 3*VPAD)

    weights_t_pad = jnp.pad(jnp.transpose(params["th_weights"], (1, 0)),
                            ((0, 0), (0, VPAD - V)))             # (16, VPAD), zero lanes
    return {"v_shaped": v_shaped, "th_j": th_j,
            "posedirs_vs": posedirs_vs, "weights_t_pad": weights_t_pad}


# ----------------------------------------------------------------------------
# Forward pass (defaults: th_betas/th_trans zeros(1), root_palm=0, center_idx=None)
# ----------------------------------------------------------------------------
def mano_forward(params, consts, th_pose_coeffs, use_pallas=True):
    B = th_pose_coeffs.shape[0]

    # PCA pose -> full 45-d hand pose, prepend root axis-angle
    hand_pose = th_pose_coeffs[:, ROT:ROT + NCOMPS]
    full_hand_pose = hand_pose @ params["th_selected_comps"]
    full_pose = jnp.concatenate(
        [th_pose_coeffs[:, :ROT], params["th_hands_mean"] + full_hand_pose], axis=1)

    pose_map_full, rot_map_full = _th_posemap_axisang(full_pose)
    root_rot = rot_map_full[:, :9].reshape(B, 3, 3)
    th_rot_map = rot_map_full[:, 9:]
    th_pose_map = pose_map_full[:, 9:]                           # (B, 135)

    v_shaped = consts["v_shaped"]                                # (1, V, 3)
    th_j = jnp.tile(consts["th_j"], (B, 1, 1))                   # (B, 16, 3)

    # kinematic chain (small 4x4 math; kept in JAX glue)
    root_j = th_j[:, 0, :].reshape(B, 3, 1)
    root_trans = _th_with_zeros(jnp.concatenate([root_rot, root_j], axis=2))
    all_rots = th_rot_map.reshape(B, 15, 3, 3)
    lev1_idxs, lev2_idxs, lev3_idxs = [1, 4, 7, 10, 13], [2, 5, 8, 11, 14], [3, 6, 9, 12, 15]
    lev1_rots = all_rots[:, [i - 1 for i in lev1_idxs]]
    lev2_rots = all_rots[:, [i - 1 for i in lev2_idxs]]
    lev3_rots = all_rots[:, [i - 1 for i in lev3_idxs]]
    lev1_j, lev2_j, lev3_j = th_j[:, lev1_idxs], th_j[:, lev2_idxs], th_j[:, lev3_idxs]

    lev1_j_rel = lev1_j - jnp.transpose(root_j, (0, 2, 1))
    lev1_rel = _th_with_zeros(
        jnp.concatenate([lev1_rots, lev1_j_rel[..., None]], axis=3).reshape(-1, 3, 4))
    root_flt = jnp.tile(root_trans[:, None], (1, 5, 1, 1)).reshape(B * 5, 4, 4)
    lev1_flt = jnp.matmul(root_flt, lev1_rel)

    lev2_j_rel = lev2_j - lev1_j
    lev2_rel = _th_with_zeros(
        jnp.concatenate([lev2_rots, lev2_j_rel[..., None]], axis=3).reshape(-1, 3, 4))
    lev2_flt = jnp.matmul(lev1_flt, lev2_rel)

    lev3_j_rel = lev3_j - lev2_j
    lev3_rel = _th_with_zeros(
        jnp.concatenate([lev3_rots, lev3_j_rel[..., None]], axis=3).reshape(-1, 3, 4))
    lev3_flt = jnp.matmul(lev2_flt, lev3_rel)

    all_transforms = jnp.concatenate(
        [root_trans[:, None], lev1_flt.reshape(B, 5, 4, 4),
         lev2_flt.reshape(B, 5, 4, 4), lev3_flt.reshape(B, 5, 4, 4)], axis=1)
    reorder_idxs = [0, 1, 6, 11, 2, 7, 12, 3, 8, 13, 4, 9, 14, 5, 10, 15]
    th_results = all_transforms[:, reorder_idxs]                 # (B, 16, 4, 4)
    th_results_global = th_results

    joint_js = jnp.concatenate([th_j, jnp.zeros((B, NJ, 1), th_j.dtype)], axis=2)
    tmp2 = jnp.matmul(th_results, joint_js[..., None])           # (B, 16, 4, 1)
    adjusted = th_results - jnp.concatenate(
        [jnp.zeros((B, NJ, 4, 3), tmp2.dtype), tmp2], axis=3)    # (B, 16, 4, 4)

    if use_pallas:
        # NOTE: for very small batches (B < ~16) the pure-JAX path below is as
        # fast; callers can pass use_pallas=False there.
        # A_t[b, m, k] = adjusted[b, k, i, j], m = 4*i + j; keep only the 12 used rows
        # TODO(synk): bf16 operands (f32 accumulate) for the K=16 skinning dot
        # would halve MXU operand traffic if it ever becomes the binding unit.
        a_t12 = jnp.transpose(adjusted.reshape(B, NJ, 16), (0, 2, 1))[:, :12, :]
        verts_c = mano_lbs_pallas(th_pose_map, a_t12,
                                  consts["posedirs_vs"],
                                  consts["weights_t_pad"])       # (3, B, V)
        # fingertips gathered straight from the channel-major kernel output
        tips = jnp.transpose(verts_c[:, :, list(TIP_IDXS)], (1, 2, 0))    # (B, 5, 3)
        # public layout of the module is (B, V, 3); downstream code that can
        # consume channel-major (3, B, V) should use verts_c directly.
        th_verts = jnp.transpose(verts_c, (1, 2, 0))             # (B, V, 3)
    else:
        # pure-JAX reference (direct port of the torch LBS)
        th_v_posed = v_shaped + jnp.matmul(
            params["th_posedirs"], th_pose_map.T).transpose(2, 0, 1)      # (B, V, 3)
        th_results2 = jnp.transpose(adjusted, (0, 2, 3, 1))               # (B, 4, 4, 16)
        th_T = jnp.matmul(th_results2, params["th_weights"].T)            # (B, 4, 4, V)
        rest_h = jnp.concatenate(
            [jnp.transpose(th_v_posed, (0, 2, 1)),
             jnp.ones((B, 1, V), th_T.dtype)], axis=1)                    # (B, 4, V)
        th_verts = jnp.transpose((th_T * rest_h[:, None]).sum(axis=2),
                                 (0, 2, 1))[:, :, :3]                     # (B, V, 3)
        tips = th_verts[:, list(TIP_IDXS)]

    th_jtr = th_results_global[:, :, :3, 3]                      # (B, 16, 3)
    th_jtr = jnp.concatenate([th_jtr, tips], axis=1)
    th_jtr = th_jtr[:, [0, 13, 14, 15, 16, 1, 2, 3, 17, 4, 5, 6,
                        18, 10, 11, 12, 19, 7, 8, 9, 20]]
    # default th_trans == zeros(1) -> norm is 0 branch; center_idx is None -> no-op
    return th_verts, th_jtr


if __name__ == "__main__":
    key = jax.random.PRNGKey(0)
    pkey, ikey = jax.random.split(key)
    params = init_mano_params(pkey)
    consts = precompute_mano_consts(params)        # hoisted channel-major/padded operands

    fwd = jax.jit(functools.partial(mano_forward, use_pallas=True))
    fwd_ref = functools.partial(mano_forward, use_pallas=False)

    # B=2: tiny batch, single grid step.  B=19: exercises batch padding and the
    # >=2-grid-step (v7x megacore) path.
    for B in (2, 19):
        th_pose_coeffs = jax.random.normal(jax.random.fold_in(ikey, B),
                                           (B, ROT + NCOMPS), jnp.float32) * 0.5
        verts, jtr = fwd(params, consts, th_pose_coeffs)
        jax.block_until_ready((verts, jtr))
        assert verts.shape == (B, V, 3) and jtr.shape == (B, 21, 3)

        # cross-check the Pallas LBS hot path against the pure-JAX reference
        verts_ref, jtr_ref = fwd_ref(params, consts, th_pose_coeffs)
        np.testing.assert_allclose(np.asarray(verts), np.asarray(verts_ref),
                                   rtol=1e-4, atol=1e-4)
        np.testing.assert_allclose(np.asarray(jtr), np.asarray(jtr_ref),
                                   rtol=1e-4, atol=1e-4)

    print("KERNEL_OK")
</pallas_src>

<mosaic_0001>
module attributes {stable_mosaic.version = 11 : i64} {
  func.func @_mano_lbs_kernel(%arg0: i32, %arg1: memref<8x136xf32, #tpu.memory_space<vmem>>, %arg2: memref<1x96x16xf32, #tpu.memory_space<vmem>>, %arg3: memref<136x2688xf32, #tpu.memory_space<vmem>>, %arg4: memref<16x896xf32, #tpu.memory_space<vmem>>, %arg5: memref<3x8x896xf32, #tpu.memory_space<vmem>>) attributes {dimension_semantics = [#tpu.dimension_semantics<parallel>], iteration_bounds = array<i64: 1>, scalar_prefetch = 0 : i64, scratch_operands = 0 : i64, tpu.core_type = #tpu.core_type<tc>, window_params = [{transform_indices = @transform_0, window_bounds = array<i64: 8, 136>}, {transform_indices = @transform_1, window_bounds = array<i64: 1, 96, 16>}, {pipeline_mode = #tpu.pipeline_mode<synchronous>, transform_indices = @transform_2, window_bounds = array<i64: 136, 2688>}, {pipeline_mode = #tpu.pipeline_mode<synchronous>, transform_indices = @transform_3, window_bounds = array<i64: 16, 896>}, {transform_indices = @transform_4, window_bounds = array<i64: 3, 8, 896>}]} {
    %c0 = arith.constant 0 : index
    %c0_0 = arith.constant 0 : index
    %0 = vector.load %arg1[%c0, %c0_0] : memref<8x136xf32, #tpu.memory_space<vmem>>, vector<8x136xf32>
    %c0_1 = arith.constant 0 : index
    %c0_2 = arith.constant 0 : index
    %1 = vector.load %arg3[%c0_1, %c0_2] : memref<136x2688xf32, #tpu.memory_space<vmem>>, vector<136x2688xf32>
    %cst = arith.constant dense<0.000000e+00> : vector<8x2688xf32>
    %2 = tpu.matmul %0, %1, %cst {dimension_numbers = #tpu.dot_dimension_numbers<[1], [0], [0], [1], [0, 0, 1, 1], [], []>} : vector<8x136xf32>, vector<136x2688xf32>, vector<8x2688xf32> -> vector<8x2688xf32>
    %3 = vector.extract_strided_slice %2 {offsets = [0, 0], sizes = [8, 896], strides = [1, 1]} : vector<8x2688xf32> to vector<8x896xf32>
    %4 = vector.extract_strided_slice %2 {offsets = [0, 896], sizes = [8, 896], strides = [1, 1]} : vector<8x2688xf32> to vector<8x896xf32>
    %5 = vector.extract_strided_slice %2 {offsets = [0, 1792], sizes = [8, 896], strides = [1, 1]} : vector<8x2688xf32> to vector<8x896xf32>
    %c0_3 = arith.constant 0 : index
    %c0_4 = arith.constant 0 : index
    %6 = vector.load %arg4[%c0_3, %c0_4] : memref<16x896xf32, #tpu.memory_space<vmem>>, vector<16x896xf32>
    %c0_5 = arith.constant 0 : index
    %c0_6 = arith.constant 0 : index
    %c0_7 = arith.constant 0 : index
    %7 = vector.load %arg2[%c0_5, %c0_6, %c0_7] : memref<1x96x16xf32, #tpu.memory_space<vmem>>, vector<1x96x16xf32>
    %8 = vector.shape_cast %7 : vector<1x96x16xf32> to vector<96x16xf32>
    %9 = vector.extract_strided_slice %8 {offsets = [0, 0], sizes = [8, 16], strides = [1, 1]} : vector<96x16xf32> to vector<8x16xf32>
    %cst_8 = arith.constant dense<0.000000e+00> : vector<8x896xf32>
    %10 = tpu.matmul %9, %6, %cst_8 {dimension_numbers = #tpu.dot_dimension_numbers<[1], [0], [0], [1], [0, 0, 1, 1], [], []>} : vector<8x16xf32>, vector<16x896xf32>, vector<8x896xf32> -> vector<8x896xf32>
    %11 = vector.extract_strided_slice %8 {offsets = [8, 0], sizes = [8, 16], strides = [1, 1]} : vector<96x16xf32> to vector<8x16xf32>
    %cst_9 = arith.constant dense<0.000000e+00> : vector<8x896xf32>
    %12 = tpu.matmul %11, %6, %cst_9 {dimension_numbers = #tpu.dot_dimension_numbers<[1], [0], [0], [1], [0, 0, 1, 1], [], []>} : vector<8x16xf32>, vector<16x896xf32>, vector<8x896xf32> -> vector<8x896xf32>
    %13 = vector.extract_strided_slice %8 {offsets = [16, 0], sizes = [8, 16], strides = [1, 1]} : vector<96x16xf32> to vector<8x16xf32>
    %cst_10 = arith.constant dense<0.000000e+00> : vector<8x896xf32>
    %14 = tpu.matmul %13, %6, %cst_10 {dimension_numbers = #tpu.dot_dimension_numbers<[1], [0], [0], [1], [0, 0, 1, 1], [], []>} : vector<8x16xf32>, vector<16x896xf32>, vector<8x896xf32> -> vector<8x896xf32>
    %15 = vector.extract_strided_slice %8 {offsets = [24, 0], sizes = [8, 16], strides = [1, 1]} : vector<96x16xf32> to vector<8x16xf32>
    %cst_11 = arith.constant dense<0.000000e+00> : vector<8x896xf32>
    %16 = tpu.matmul %15, %6, %cst_11 {dimension_numbers = #tpu.dot_dimension_numbers<[1], [0], [0], [1], [0, 0, 1, 1], [], []>} : vector<8x16xf32>, vector<16x896xf32>, vector<8x896xf32> -> vector<8x896xf32>
    %17 = arith.mulf %10, %3 : vector<8x896xf32>
    %18 = arith.mulf %12, %4 : vector<8x896xf32>
    %19 = arith.addf %17, %18 : vector<8x896xf32>
    %20 = arith.mulf %14, %5 : vector<8x896xf32>
    %21 = arith.addf %19, %20 : vector<8x896xf32>
    %22 = arith.addf %21, %16 : vector<8x896xf32>
    %c0_12 = arith.constant 0 : index
    %c0_13 = arith.constant 0 : index
    %c0_14 = arith.constant 0 : index
    %23 = vector.load %arg5[%c0_12, %c0_13, %c0_14] : memref<3x8x896xf32, #tpu.memory_space<vmem>>, vector<1x8x896xf32>
    %24 = vector.shape_cast %23 : vector<1x8x896xf32> to vector<8x896xf32>
    %25 = vector.shape_cast %22 : vector<8x896xf32> to vector<1x8x896xf32>
    tpu.vector_store %arg5[%c0_12, %c0_13, %c0_14], %25 {strides = array<i32>} : memref<3x8x896xf32, #tpu.memory_space<vmem>>, vector<1x8x896xf32>,
    %26 = vector.extract_strided_slice %8 {offsets = [32, 0], sizes = [8, 16], strides = [1, 1]} : vector<96x16xf32> to vector<8x16xf32>
    %cst_15 = arith.constant dense<0.000000e+00> : vector<8x896xf32>
    %27 = tpu.matmul %26, %6, %cst_15 {dimension_numbers = #tpu.dot_dimension_numbers<[1], [0], [0], [1], [0, 0, 1, 1], [], []>} : vector<8x16xf32>, vector<16x896xf32>, vector<8x896xf32> -> vector<8x896xf32>
    %28 = vector.extract_strided_slice %8 {offsets = [40, 0], sizes = [8, 16], strides = [1, 1]} : vector<96x16xf32> to vector<8x16xf32>
    %cst_16 = arith.constant dense<0.000000e+00> : vector<8x896xf32>
    %29 = tpu.matmul %28, %6, %cst_16 {dimension_numbers = #tpu.dot_dimension_numbers<[1], [0], [0], [1], [0, 0, 1, 1], [], []>} : vector<8x16xf32>, vector<16x896xf32>, vector<8x896xf32> -> vector<8x896xf32>
    %30 = vector.extract_strided_slice %8 {offsets = [48, 0], sizes = [8, 16], strides = [1, 1]} : vector<96x16xf32> to vector<8x16xf32>
    %cst_17 = arith.constant dense<0.000000e+00> : vector<8x896xf32>
    %31 = tpu.matmul %30, %6, %cst_17 {dimension_numbers = #tpu.dot_dimension_numbers<[1], [0], [0], [1], [0, 0, 1, 1], [], []>} : vector<8x16xf32>, vector<16x896xf32>, vector<8x896xf32> -> vector<8x896xf32>
    %32 = vector.extract_strided_slice %8 {offsets = [56, 0], sizes = [8, 16], strides = [1, 1]} : vector<96x16xf32> to vector<8x16xf32>
    %cst_18 = arith.constant dense<0.000000e+00> : vector<8x896xf32>
    %33 = tpu.matmul %32, %6, %cst_18 {dimension_numbers = #tpu.dot_dimension_numbers<[1], [0], [0], [1], [0, 0, 1, 1], [], []>} : vector<8x16xf32>, vector<16x896xf32>, vector<8x896xf32> -> vector<8x896xf32>
    %34 = arith.mulf %27, %3 : vector<8x896xf32>
    %35 = arith.mulf %29, %4 : vector<8x896xf32>
    %36 = arith.addf %34, %35 : vector<8x896xf32>
    %37 = arith.mulf %31, %5 : vector<8x896xf32>
    %38 = arith.addf %36, %37 : vector<8x896xf32>
    %39 = arith.addf %38, %33 : vector<8x896xf32>
    %c1 = arith.constant 1 : index
    %c0_19 = arith.constant 0 : index
    %c0_20 = arith.constant 0 : index
    %40 = vector.load %arg5[%c1, %c0_19, %c0_20] : memref<3x8x896xf32, #tpu.memory_space<vmem>>, vector<1x8x896xf32>
    %41 = vector.shape_cast %40 : vector<1x8x896xf32> to vector<8x896xf32>
    %42 = vector.shape_cast %39 : vector<8x896xf32> to vector<1x8x896xf32>
    tpu.vector_store %arg5[%c1, %c0_19, %c0_20], %42 {strides = array<i32>} : memref<3x8x896xf32, #tpu.memory_space<vmem>>, vector<1x8x896xf32>,
    %43 = vector.extract_strided_slice %8 {offsets = [64, 0], sizes = [8, 16], strides = [1, 1]} : vector<96x16xf32> to vector<8x16xf32>
    %cst_21 = arith.constant dense<0.000000e+00> : vector<8x896xf32>
    %44 = tpu.matmul %43, %6, %cst_21 {dimension_numbers = #tpu.dot_dimension_numbers<[1], [0], [0], [1], [0, 0, 1, 1], [], []>} : vector<8x16xf32>, vector<16x896xf32>, vector<8x896xf32> -> vector<8x896xf32>
    %45 = vector.extract_strided_slice %8 {offsets = [72, 0], sizes = [8, 16], strides = [1, 1]} : vector<96x16xf32> to vector<8x16xf32>
    %cst_22 = arith.constant dense<0.000000e+00> : vector<8x896xf32>
    %46 = tpu.matmul %45, %6, %cst_22 {dimension_numbers = #tpu.dot_dimension_numbers<[1], [0], [0], [1], [0, 0, 1, 1], [], []>} : vector<8x16xf32>, vector<16x896xf32>, vector<8x896xf32> -> vector<8x896xf32>
    %47 = vector.extract_strided_slice %8 {offsets = [80, 0], sizes = [8, 16], strides = [1, 1]} : vector<96x16xf32> to vector<8x16xf32>
    %cst_23 = arith.constant dense<0.000000e+00> : vector<8x896xf32>
    %48 = tpu.matmul %47, %6, %cst_23 {dimension_numbers = #tpu.dot_dimension_numbers<[1], [0], [0], [1], [0, 0, 1, 1], [], []>} : vector<8x16xf32>, vector<16x896xf32>, vector<8x896xf32> -> vector<8x896xf32>
    %49 = vector.extract_strided_slice %8 {offsets = [88, 0], sizes = [8, 16], strides = [1, 1]} : vector<96x16xf32> to vector<8x16xf32>
    %cst_24 = arith.constant dense<0.000000e+00> : vector<8x896xf32>
    %50 = tpu.matmul %49, %6, %cst_24 {dimension_numbers = #tpu.dot_dimension_numbers<[1], [0], [0], [1], [0, 0, 1, 1], [], []>} : vector<8x16xf32>, vector<16x896xf32>, vector<8x896xf32> -> vector<8x896xf32>
    %51 = arith.mulf %44, %3 : vector<8x896xf32>
    %52 = arith.mulf %46, %4 : vector<8x896xf32>
    %53 = arith.addf %51, %52 : vector<8x896xf32>
    %54 = arith.mulf %48, %5 : vector<8x896xf32>
    %55 = arith.addf %53, %54 : vector<8x896xf32>
    %56 = arith.addf %55, %50 : vector<8x896xf32>
    %c2 = arith.constant 2 : index
    %c0_25 = arith.constant 0 : index
    %c0_26 = arith.constant 0 : index
    %57 = vector.load %arg5[%c2, %c0_25, %c0_26] : memref<3x8x896xf32, #tpu.memory_space<vmem>>, vector<1x8x896xf32>
    %58 = vector.shape_cast %57 : vector<1x8x896xf32> to vector<8x896xf32>
    %59 = vector.shape_cast %56 : vector<8x896xf32> to vector<1x8x896xf32>
    tpu.vector_store %arg5[%c2, %c0_25, %c0_26], %59 {strides = array<i32>} : memref<3x8x896xf32, #tpu.memory_space<vmem>>, vector<1x8x896xf32>,
    return
  }
  func.func @transform_0(%arg0: i32) -> (i32, i32) {
    %c0_i32 = arith.constant 0 : i32
    %c0_i32_0 = arith.constant 0 : i32
    return %arg0, %c0_i32 : i32, i32
  }
  func.func @transform_1(%arg0: i32) -> (i32, i32, i32) {
    %c0_i32 = arith.constant 0 : i32
    %c0_i32_0 = arith.constant 0 : i32
    %c0_i32_1 = arith.constant 0 : i32
    return %arg0, %c0_i32, %c0_i32_0 : i32, i32, i32
  }
  func.func @transform_2(%arg0: i32) -> (i32, i32) {
    %c0_i32 = arith.constant 0 : i32
    %c0_i32_0 = arith.constant 0 : i32
    %c0_i32_1 = arith.constant 0 : i32
    return %c0_i32, %c0_i32_0 : i32, i32
  }
  func.func @transform_3(%arg0: i32) -> (i32, i32) {
    %c0_i32 = arith.constant 0 : i32
    %c0_i32_0 = arith.constant 0 : i32
    %c0_i32_1 = arith.constant 0 : i32
    return %c0_i32, %c0_i32_0 : i32, i32
  }
  func.func @transform_4(%arg0: i32) -> (i32, i32, i32) {
    %c0_i32 = arith.constant 0 : i32
    %c0_i32_0 = arith.constant 0 : i32
    %c0_i32_1 = arith.constant 0 : i32
    return %c0_i32, %arg0, %c0_i32_0 : i32, i32, i32
  }
}

</mosaic_0001>

<llo_original>
// kernel: mano_forward.1
$region0: #{mano_forward.1}
  #allocation0 [shape = 'u32[]', space=smem, size = 0x4, offset = 0x4, fixed_abs, tag = 'smem constant byte address 0x4 - core index']
  #allocation1 [shape = 'u32[144,128]{1,0:T(1,128)}', space=vmem, size = 0x12000, scoped, tag = 'internal scratch']
  %s0 = inlined_call_operand.vmem [shape: f32[8,136], index: 0, kind: input, shape index: {}]
  %s1 = inlined_call_operand.vmem [shape: f32[1,96,16], index: 1, kind: input, shape index: {}]
  %s2 = inlined_call_operand.vmem [shape: f32[136,2688], index: 2, kind: input, shape index: {}]
  %s3 = inlined_call_operand.vmem [shape: f32[16,896], index: 3, kind: input, shape index: {}]
  %s4 = inlined_call_operand.vmem [shape: f32[3,8,896], index: 4, kind: output, shape index: {}]
  %s5 = sld [smem:[#allocation0]]
  $region26: #{mano_forward.1} parent=0
    _
  %s7 = ssub.s32 1, %s5
  %s8 = scalar_select 0, %s7, %s5
  // Predicated region
  $region2: #{mano_forward.1} parent=0 // pred_check
    _
  $region3: #{mano_forward.1} parent=0 // pred_check_branch
    %10 = sbr.rel (0) target = $region5
  $region4: #{mano_forward.1} parent=0 // pred_region
    _
  $region5: #{mano_forward.1} parent=0 // pred_fallthru
    _
  // Predicated region
  $region6: #{mano_forward.1} parent=0 // pred_check
    _
  $region7: #{mano_forward.1} parent=0 // pred_check_branch
    %12 = sbr.rel (0) target = $region9
  $region8: #{mano_forward.1} parent=0 // pred_region
    _
  $region9: #{mano_forward.1} parent=0 // pred_fallthru
    _
  // Predicated region
  $region10: #{mano_forward.1} parent=0 // pred_check
    _
  $region11: #{mano_forward.1} parent=0 // pred_check_branch
    %14 = sbr.rel (0) target = $region13
  $region12: #{mano_forward.1} parent=0 // pred_region
    _
  $region13: #{mano_forward.1} parent=0 // pred_fallthru
    _
  // Predicated region
  $region14: #{mano_forward.1} parent=0 // pred_check
    _
  $region15: #{mano_forward.1} parent=0 // pred_check_branch
    %16 = sbr.rel (0) target = $region17
  $region16: #{mano_forward.1} parent=0 // pred_region
    _
  $region17: #{mano_forward.1} parent=0 // pred_fallthru
    _
  %v17 = vld [vmem:[%s0] sm:$0xff]
  %v18 = vld [vmem:[%s0 + $0x8] sm:$0xff]
  %v19 = vld [vmem:[%s2] sm:$0xff]
  %v20 = vld [vmem:[%s2 + $0x8] sm:$0xff]
  %v21 = vld [vmem:[%s2 + $0x10] sm:$0xff]
  %v22 = vld [vmem:[%s2 + $0x18] sm:$0xff]
  %v23 = vld [vmem:[%s2 + $0x20] sm:$0xff]
  %v24 = vld [vmem:[%s2 + $0x28] sm:$0xff]
  %v25 = vld [vmem:[%s2 + $0x30] sm:$0xff]
  %v26 = vld [vmem:[%s2 + $0x38] sm:$0xff]
  %v27 = vld [vmem:[%s2 + $0x40] sm:$0xff]
  %v28 = vld [vmem:[%s2 + $0x48] sm:$0xff]
  %v29 = vld [vmem:[%s2 + $0x50] sm:$0xff]
  %v30 = vld [vmem:[%s2 + $0x58] sm:$0xff]
  %v31 = vld [vmem:[%s2 + $0x60] sm:$0xff]
  %v32 = vld [vmem:[%s2 + $0x68] sm:$0xff]
  %v33 = vld [vmem:[%s2 + $0x70] sm:$0xff]
  %v34 = vld [vmem:[%s2 + $0x78] sm:$0xff]
  %v35 = vld [vmem:[%s2 + $0x80] sm:$0xff]
  %v36 = vld [vmem:[%s2 + $0x88] sm:$0xff]
  %v37 = vld [vmem:[%s2 + $0x90] sm:$0xff]
  %v38 = vld [vmem:[%s2 + $0x98] sm:$0xff]
  %v39 = vld [vmem:[%s2 + $0xa0] sm:$0xff]
  %v40 = vld [vmem:[%s2 + $0xa8] sm:$0xff]
  %v41 = vld [vmem:[%s2 + $0xb0] sm:$0xff]
  %v42 = vld [vmem:[%s2 + $0xb8] sm:$0xff]
  %v43 = vld [vmem:[%s2 + $0xc0] sm:$0xff]
  %v44 = vld [vmem:[%s2 + $0xc8] sm:$0xff]
  %v45 = vld [vmem:[%s2 + $0xd0] sm:$0xff]
  %v46 = vld [vmem:[%s2 + $0xd8] sm:$0xff]
  %v47 = vld [vmem:[%s2 + $0xe0] sm:$0xff]
  %v48 = vld [vmem:[%s2 + $0xe8] sm:$0xff]
  %v49 = vld [vmem:[%s2 + $0xf0] sm:$0xff]
  %v50 = vld [vmem:[%s2 + $0xf8] sm:$0xff]
  %v51 = vld [vmem:[%s2 + $0x100] sm:$0xff]
  %v52 = vld [vmem:[%s2 + $0x108] sm:$0xff]
  %v53 = vld [vmem:[%s2 + $0x110] sm:$0xff]
  %v54 = vld [vmem:[%s2 + $0x118] sm:$0xff]
  %v55 = vld [vmem:[%s2 + $0x120] sm:$0xff]
  %v56 = vld [vmem:[%s2 + $0x128] sm:$0xff]
  %v57 = vld [vmem:[%s2 + $0x130] sm:$0xff]
  %v58 = vld [vmem:[%s2 + $0x138] sm:$0xff]
  %v59 = vld [vmem:[%s2 + $0x140] sm:$0xff]
  %v60 = vld [vmem:[%s2 + $0x148] sm:$0xff]
  %v61 = vld [vmem:[%s2 + $0x150] sm:$0xff]
  %v62 = vld [vmem:[%s2 + $0x158] sm:$0xff]
  %v63 = vld [vmem:[%s2 + $0x160] sm:$0xff]
  %v64 = vld [vmem:[%s2 + $0x168] sm:$0xff]
  %v65 = vld [vmem:[%s2 + $0x170] sm:$0xff]
  %v66 = vld [vmem:[%s2 + $0x178] sm:$0xff]
  %v67 = vld [vmem:[%s2 + $0x180] sm:$0xff]
  %v68 = vld [vmem:[%s2 + $0x188] sm:$0xff]
  %v69 = vld [vmem:[%s2 + $0x190] sm:$0xff]
  %v70 = vld [vmem:[%s2 + $0x198] sm:$0xff]
  %v71 = vld [vmem:[%s2 + $0x1a0] sm:$0xff]
  %v72 = vld [vmem:[%s2 + $0x1a8] sm:$0xff]
  %v73 = vld [vmem:[%s2 + $0x1b0] sm:$0xff]
  %v74 = vld [vmem:[%s2 + $0x1b8] sm:$0xff]
  %v75 = vld [vmem:[%s2 + $0x1c0] sm:$0xff]
  %v76 = vld [vmem:[%s2 + $0x1c8] sm:$0xff]
  %v77 = vld [vmem:[%s2 + $0x1d0] sm:$0xff]
  %v78 = vld [vmem:[%s2 + $0x1d8] sm:$0xff]
  %v79 = vld [vmem:[%s2 + $0x1e0] sm:$0xff]
  %v80 = vld [vmem:[%s2 + $0x1e8] sm:$0xff]
  %v81 = vld [vmem:[%s2 + $0x1f0] sm:$0xff]
  %v82 = vld [vmem:[%s2 + $0x1f8] sm:$0xff]
  %v83 = vld [vmem:[%s2 + $0x200] sm:$0xff]
  %v84 = vld [vmem:[%s2 + $0x208] sm:$0xff]
  %v85 = vld [vmem:[%s2 + $0x210] sm:$0xff]
  %v86 = vld [vmem:[%s2 + $0x218] sm:$0xff]
  %v87 = vld [vmem:[%s2 + $0x220] sm:$0xff]
  %v88 = vld [vmem:[%s2 + $0x228] sm:$0xff]
  %v89 = vld [vmem:[%s2 + $0x230] sm:$0xff]
  %v90 = vld [vmem:[%s2 + $0x238] sm:$0xff]
  %v91 = vld [vmem:[%s2 + $0x240] sm:$0xff]
  %v92 = vld [vmem:[%s2 + $0x248] sm:$0xff]
  %v93 = vld [vmem:[%s2 + $0x250] sm:$0xff]
  %v94 = vld [vmem:[%s2 + $0x258] sm:$0xff]
  %v95 = vld [vmem:[%s2 + $0x260] sm:$0xff]
  %v96 = vld [vmem:[%s2 + $0x268] sm:$0xff]
  %v97 = vld [vmem:[%s2 + $0x270] sm:$0xff]
  %v98 = vld [vmem:[%s2 + $0x278] sm:$0xff]
  %v99 = vld [vmem:[%s2 + $0x280] sm:$0xff]
  %v100 = vld [vmem:[%s2 + $0x288] sm:$0xff]
  %v101 = vld [vmem:[%s2 + $0x290] sm:$0xff]
  %v102 = vld [vmem:[%s2 + $0x298] sm:$0xff]
  %v103 = vld [vmem:[%s2 + $0x2a0] sm:$0xff]
  %v104 = vld [vmem:[%s2 + $0x2a8] sm:$0xff]
  %v105 = vld [vmem:[%s2 + $0x2b0] sm:$0xff]
  %v106 = vld [vmem:[%s2 + $0x2b8] sm:$0xff]
  %v107 = vld [vmem:[%s2 + $0x2c0] sm:$0xff]
  %v108 = vld [vmem:[%s2 + $0x2c8] sm:$0xff]
  %v109 = vld [vmem:[%s2 + $0x2d0] sm:$0xff]
  %v110 = vld [vmem:[%s2 + $0x2d8] sm:$0xff]
  %v111 = vld [vmem:[%s2 + $0x2e0] sm:$0xff]
  %v112 = vld [vmem:[%s2 + $0x2e8] sm:$0xff]
  %v113 = vld [vmem:[%s2 + $0x2f0] sm:$0xff]
  %v114 = vld [vmem:[%s2 + $0x2f8] sm:$0xff]
  %v115 = vld [vmem:[%s2 + $0x300] sm:$0xff]
  %v116 = vld [vmem:[%s2 + $0x308] sm:$0xff]
  %v117 = vld [vmem:[%s2 + $0x310] sm:$0xff]
  %v118 = vld [vmem:[%s2 + $0x318] sm:$0xff]
  %v119 = vld [vmem:[%s2 + $0x320] sm:$0xff]
  %v120 = vld [vmem:[%s2 + $0x328] sm:$0xff]
  %v121 = vld [vmem:[%s2 + $0x330] sm:$0xff]
  %v122 = vld [vmem:[%s2 + $0x338] sm:$0xff]
  %v123 = vld [vmem:[%s2 + $0x340] sm:$0xff]
  %v124 = vld [vmem:[%s2 + $0x348] sm:$0xff]
  %v125 = vld [vmem:[%s2 + $0x350] sm:$0xff]
  %v126 = vld [vmem:[%s2 + $0x358] sm:$0xff]
  %v127 = vld [vmem:[%s2 + $0x360] sm:$0xff]
  %v128 = vld [vmem:[%s2 + $0x368] sm:$0xff]
  %v129 = vld [vmem:[%s2 + $0x370] sm:$0xff]
  %v130 = vld [vmem:[%s2 + $0x378] sm:$0xff]
  %v131 = vld [vmem:[%s2 + $0x380] sm:$0xff]
  %v132 = vld [vmem:[%s2 + $0x388] sm:$0xff]
  %v133 = vld [vmem:[%s2 + $0x390] sm:$0xff]
  %v134 = vld [vmem:[%s2 + $0x398] sm:$0xff]
  %v135 = vld [vmem:[%s2 + $0x3a0] sm:$0xff]
  %v136 = vld [vmem:[%s2 + $0x3a8] sm:$0xff]
  %v137 = vld [vmem:[%s2 + $0x3b0] sm:$0xff]
  %v138 = vld [vmem:[%s2 + $0x3b8] sm:$0xff]
  %v139 = vld [vmem:[%s2 + $0x3c0] sm:$0xff]
  %v140 = vld [vmem:[%s2 + $0x3c8] sm:$0xff]
  %v141 = vld [vmem:[%s2 + $0x3d0] sm:$0xff]
  %v142 = vld [vmem:[%s2 + $0x3d8] sm:$0xff]
  %v143 = vld [vmem:[%s2 + $0x3e0] sm:$0xff]
  %v144 = vld [vmem:[%s2 + $0x3e8] sm:$0xff]
  %v145 = vld [vmem:[%s2 + $0x3f0] sm:$0xff]
  %v146 = vld [vmem:[%s2 + $0x3f8] sm:$0xff]
  %v147 = vld [vmem:[%s2 + $0x400] sm:$0xff]
  %v148 = vld [vmem:[%s2 + $0x408] sm:$0xff]
  %v149 = vld [vmem:[%s2 + $0x410] sm:$0xff]
  %v150 = vld [vmem:[%s2 + $0x418] sm:$0xff]
  %v151 = vld [vmem:[%s2 + $0x420] sm:$0xff]
  %v152 = vld [vmem:[%s2 + $0x428] sm:$0xff]
  %v153 = vld [vmem:[%s2 + $0x430] sm:$0xff]
  %v154 = vld [vmem:[%s2 + $0x438] sm:$0xff]
  %v155 = vld [vmem:[%s2 + $0x440] sm:$0xff]
  %v156 = vld [vmem:[%s2 + $0x448] sm:$0xff]
  %v157 = vld [vmem:[%s2 + $0x450] sm:$0xff]
  %v158 = vld [vmem:[%s2 + $0x458] sm:$0xff]
  %v159 = vld [vmem:[%s2 + $0x460] sm:$0xff]
  %v160 = vld [vmem:[%s2 + $0x468] sm:$0xff]
  %v161 = vld [vmem:[%s2 + $0x470] sm:$0xff]
  %v162 = vld [vmem:[%s2 + $0x478] sm:$0xff]
  %v163 = vld [vmem:[%s2 + $0x480] sm:$0xff]
  %v164 = vld [vmem:[%s2 + $0x488] sm:$0xff]
  %v165 = vld [vmem:[%s2 + $0x490] sm:$0xff]
  %v166 = vld [vmem:[%s2 + $0x498] sm:$0xff]
  %v167 = vld [vmem:[%s2 + $0x4a0] sm:$0xff]
  %v168 = vld [vmem:[%s2 + $0x4a8] sm:$0xff]
  %v169 = vld [vmem:[%s2 + $0x4b0] sm:$0xff]
  %v170 = vld [vmem:[%s2 + $0x4b8] sm:$0xff]
  %v171 = vld [vmem:[%s2 + $0x4c0] sm:$0xff]
  %v172 = vld [vmem:[%s2 + $0x4c8] sm:$0xff]
  %v173 = vld [vmem:[%s2 + $0x4d0] sm:$0xff]
  %v174 = vld [vmem:[%s2 + $0x4d8] sm:$0xff]
  %v175 = vld [vmem:[%s2 + $0x4e0] sm:$0xff]
  %v176 = vld [vmem:[%s2 + $0x4e8] sm:$0xff]
  %v177 = vld [vmem:[%s2 + $0x4f0] sm:$0xff]
  %v178 = vld [vmem:[%s2 + $0x4f8] sm:$0xff]
  %v179 = vld [vmem:[%s2 + $0x500] sm:$0xff]
  %v180 = vld [vmem:[%s2 + $0x508] sm:$0xff]
  %v181 = vld [vmem:[%s2 + $0x510] sm:$0xff]
  %v182 = vld [vmem:[%s2 + $0x518] sm:$0xff]
  %v183 = vld [vmem:[%s2 + $0x520] sm:$0xff]
  %v184 = vld [vmem:[%s2 + $0x528] sm:$0xff]
  %v185 = vld [vmem:[%s2 + $0x530] sm:$0xff]
  %v186 = vld [vmem:[%s2 + $0x538] sm:$0xff]
  %v187 = vld [vmem:[%s2 + $0x540] sm:$0xff]
  %v188 = vld [vmem:[%s2 + $0x548] sm:$0xff]
  %v189 = vld [vmem:[%s2 + $0x550] sm:$0xff]
  %v190 = vld [vmem:[%s2 + $0x558] sm:$0xff]
  %v191 = vld [vmem:[%s2 + $0x560] sm:$0xff]
  %v192 = vld [vmem:[%s2 + $0x568] sm:$0xff]
  %v193 = vld [vmem:[%s2 + $0x570] sm:$0xff]
  %v194 = vld [vmem:[%s2 + $0x578] sm:$0xff]
  %v195 = vld [vmem:[%s2 + $0x580] sm:$0xff]
  %v196 = vld [vmem:[%s2 + $0x588] sm:$0xff]
  %v197 = vld [vmem:[%s2 + $0x590] sm:$0xff]
  %v198 = vld [vmem:[%s2 + $0x598] sm:$0xff]
  %v199 = vld [vmem:[%s2 + $0x5a0] sm:$0xff]
  %v200 = vld [vmem:[%s2 + $0x5a8] sm:$0xff]
  %v201 = vld [vmem:[%s2 + $0x5b0] sm:$0xff]
  %v202 = vld [vmem:[%s2 + $0x5b8] sm:$0xff]
  %v203 = vld [vmem:[%s2 + $0x5c0] sm:$0xff]
  %v204 = vld [vmem:[%s2 + $0x5c8] sm:$0xff]
  %v205 = vld [vmem:[%s2 + $0x5d0] sm:$0xff]
  %v206 = vld [vmem:[%s2 + $0x5d8] sm:$0xff]
  %v207 = vld [vmem:[%s2 + $0x5e0] sm:$0xff]
  %v208 = vld [vmem:[%s2 + $0x5e8] sm:$0xff]
  %v209 = vld [vmem:[%s2 + $0x5f0] sm:$0xff]
  %v210 = vld [vmem:[%s2 + $0x5f8] sm:$0xff]
  %v211 = vld [vmem:[%s2 + $0x600] sm:$0xff]
  %v212 = vld [vmem:[%s2 + $0x608] sm:$0xff]
  %v213 = vld [vmem:[%s2 + $0x610] sm:$0xff]
  %v214 = vld [vmem:[%s2 + $0x618] sm:$0xff]
  %v215 = vld [vmem:[%s2 + $0x620] sm:$0xff]
  %v216 = vld [vmem:[%s2 + $0x628] sm:$0xff]
  %v217 = vld [vmem:[%s2 + $0x630] sm:$0xff]
  %v218 = vld [vmem:[%s2 + $0x638] sm:$0xff]
  %v219 = vld [vmem:[%s2 + $0x640] sm:$0xff]
  %v220 = vld [vmem:[%s2 + $0x648] sm:$0xff]
  %v221 = vld [vmem:[%s2 + $0x650] sm:$0xff]
  %v222 = vld [vmem:[%s2 + $0x658] sm:$0xff]
  %v223 = vld [vmem:[%s2 + $0x660] sm:$0xff]
  %v224 = vld [vmem:[%s2 + $0x668] sm:$0xff]
  %v225 = vld [vmem:[%s2 + $0x670] sm:$0xff]
  %v226 = vld [vmem:[%s2 + $0x678] sm:$0xff]
  %v227 = vld [vmem:[%s2 + $0x680] sm:$0xff]
  %v228 = vld [vmem:[%s2 + $0x688] sm:$0xff]
  %v229 = vld [vmem:[%s2 + $0x690] sm:$0xff]
  %v230 = vld [vmem:[%s2 + $0x698] sm:$0xff]
  %v231 = vld [vmem:[%s2 + $0x6a0] sm:$0xff]
  %v232 = vld [vmem:[%s2 + $0x6a8] sm:$0xff]
  %v233 = vld [vmem:[%s2 + $0x6b0] sm:$0xff]
  %v234 = vld [vmem:[%s2 + $0x6b8] sm:$0xff]
  %v235 = vld [vmem:[%s2 + $0x6c0] sm:$0xff]
  %v236 = vld [vmem:[%s2 + $0x6c8] sm:$0xff]
  %v237 = vld [vmem:[%s2 + $0x6d0] sm:$0xff]
  %v238 = vld [vmem:[%s2 + $0x6d8] sm:$0xff]
  %v239 = vld [vmem:[%s2 + $0x6e0] sm:$0xff]
  %v240 = vld [vmem:[%s2 + $0x6e8] sm:$0xff]
  %v241 = vld [vmem:[%s2 + $0x6f0] sm:$0xff]
  %v242 = vld [vmem:[%s2 + $0x6f8] sm:$0xff]
  %v243 = vld [vmem:[%s2 + $0x700] sm:$0xff]
  %v244 = vld [vmem:[%s2 + $0x708] sm:$0xff]
  %v245 = vld [vmem:[%s2 + $0x710] sm:$0xff]
  %v246 = vld [vmem:[%s2 + $0x718] sm:$0xff]
  %v247 = vld [vmem:[%s2 + $0x720] sm:$0xff]
  %v248 = vld [vmem:[%s2 + $0x728] sm:$0xff]
  %v249 = vld [vmem:[%s2 + $0x730] sm:$0xff]
  %v250 = vld [vmem:[%s2 + $0x738] sm:$0xff]
  %v251 = vld [vmem:[%s2 + $0x740] sm:$0xff]
  %v252 = vld [vmem:[%s2 + $0x748] sm:$0xff]
  %v253 = vld [vmem:[%s2 + $0x750] sm:$0xff]
  %v254 = vld [vmem:[%s2 + $0x758] sm:$0xff]
  %v255 = vld [vmem:[%s2 + $0x760] sm:$0xff]
  %v256 = vld [vmem:[%s2 + $0x768] sm:$0xff]
  %v257 = vld [vmem:[%s2 + $0x770] sm:$0xff]
  %v258 = vld [vmem:[%s2 + $0x778] sm:$0xff]
  %v259 = vld [vmem:[%s2 + $0x780] sm:$0xff]
  %v260 = vld [vmem:[%s2 + $0x788] sm:$0xff]
  %v261 = vld [vmem:[%s2 + $0x790] sm:$0xff]
  %v262 = vld [vmem:[%s2 + $0x798] sm:$0xff]
  %v263 = vld [vmem:[%s2 + $0x7a0] sm:$0xff]
  %v264 = vld [vmem:[%s2 + $0x7a8] sm:$0xff]
  %v265 = vld [vmem:[%s2 + $0x7b0] sm:$0xff]
  %v266 = vld [vmem:[%s2 + $0x7b8] sm:$0xff]
  %v267 = vld [vmem:[%s2 + $0x7c0] sm:$0xff]
  %v268 = vld [vmem:[%s2 + $0x7c8] sm:$0xff]
  %v269 = vld [vmem:[%s2 + $0x7d0] sm:$0xff]
  %v270 = vld [vmem:[%s2 + $0x7d8] sm:$0xff]
  %v271 = vld [vmem:[%s2 + $0x7e0] sm:$0xff]
  %v272 = vld [vmem:[%s2 + $0x7e8] sm:$0xff]
  %v273 = vld [vmem:[%s2 + $0x7f0] sm:$0xff]
  %v274 = vld [vmem:[%s2 + $0x7f8] sm:$0xff]
  %v275 = vld [vmem:[%s2 + $0x800] sm:$0xff]
  %v276 = vld [vmem:[%s2 + $0x808] sm:$0xff]
  %v277 = vld [vmem:[%s2 + $0x810] sm:$0xff]
  %v278 = vld [vmem:[%s2 + $0x818] sm:$0xff]
  %v279 = vld [vmem:[%s2 + $0x820] sm:$0xff]
  %v280 = vld [vmem:[%s2 + $0x828] sm:$0xff]
  %v281 = vld [vmem:[%s2 + $0x830] sm:$0xff]
  %v282 = vld [vmem:[%s2 + $0x838] sm:$0xff]
  %v283 = vld [vmem:[%s2 + $0x840] sm:$0xff]
  %v284 = vld [vmem:[%s2 + $0x848] sm:$0xff]
  %v285 = vld [vmem:[%s2 + $0x850] sm:$0xff]
  %v286 = vld [vmem:[%s2 + $0x858] sm:$0xff]
  %v287 = vld [vmem:[%s2 + $0x860] sm:$0xff]
  %v288 = vld [vmem:[%s2 + $0x868] sm:$0xff]
  %v289 = vld [vmem:[%s2 + $0x870] sm:$0xff]
  %v290 = vld [vmem:[%s2 + $0x878] sm:$0xff]
  %v291 = vld [vmem:[%s2 + $0x880] sm:$0xff]
  %v292 = vld [vmem:[%s2 + $0x888] sm:$0xff]
  %v293 = vld [vmem:[%s2 + $0x890] sm:$0xff]
  %v294 = vld [vmem:[%s2 + $0x898] sm:$0xff]
  %v295 = vld [vmem:[%s2 + $0x8a0] sm:$0xff]
  %v296 = vld [vmem:[%s2 + $0x8a8] sm:$0xff]
  %v297 = vld [vmem:[%s2 + $0x8b0] sm:$0xff]
  %v298 = vld [vmem:[%s2 + $0x8b8] sm:$0xff]
  %v299 = vld [vmem:[%s2 + $0x8c0] sm:$0xff]
  %v300 = vld [vmem:[%s2 + $0x8c8] sm:$0xff]
  %v301 = vld [vmem:[%s2 + $0x8d0] sm:$0xff]
  %v302 = vld [vmem:[%s2 + $0x8d8] sm:$0xff]
  %v303 = vld [vmem:[%s2 + $0x8e0] sm:$0xff]
  %v304 = vld [vmem:[%s2 + $0x8e8] sm:$0xff]
  %v305 = vld [vmem:[%s2 + $0x8f0] sm:$0xff]
  %v306 = vld [vmem:[%s2 + $0x8f8] sm:$0xff]
  %v307 = vld [vmem:[%s2 + $0x900] sm:$0xff]
  %v308 = vld [vmem:[%s2 + $0x908] sm:$0xff]
  %v309 = vld [vmem:[%s2 + $0x910] sm:$0xff]
  %v310 = vld [vmem:[%s2 + $0x918] sm:$0xff]
  %v311 = vld [vmem:[%s2 + $0x920] sm:$0xff]
  %v312 = vld [vmem:[%s2 + $0x928] sm:$0xff]
  %v313 = vld [vmem:[%s2 + $0x930] sm:$0xff]
  %v314 = vld [vmem:[%s2 + $0x938] sm:$0xff]
  %v315 = vld [vmem:[%s2 + $0x940] sm:$0xff]
  %v316 = vld [vmem:[%s2 + $0x948] sm:$0xff]
  %v317 = vld [vmem:[%s2 + $0x950] sm:$0xff]
  %v318 = vld [vmem:[%s2 + $0x958] sm:$0xff]
  %v319 = vld [vmem:[%s2 + $0x960] sm:$0xff]
  %v320 = vld [vmem:[%s2 + $0x968] sm:$0xff]
  %v321 = vld [vmem:[%s2 + $0x970] sm:$0xff]
  %v322 = vld [vmem:[%s2 + $0x978] sm:$0xff]
  %v323 = vld [vmem:[%s2 + $0x980] sm:$0xff]
  %v324 = vld [vmem:[%s2 + $0x988] sm:$0xff]
  %v325 = vld [vmem:[%s2 + $0x990] sm:$0xff]
  %v326 = vld [vmem:[%s2 + $0x998] sm:$0xff]
  %v327 = vld [vmem:[%s2 + $0x9a0] sm:$0xff]
  %v328 = vld [vmem:[%s2 + $0x9a8] sm:$0xff]
  %v329 = vld [vmem:[%s2 + $0x9b0] sm:$0xff]
  %v330 = vld [vmem:[%s2 + $0x9b8] sm:$0xff]
  %v331 = vld [vmem:[%s2 + $0x9c0] sm:$0xff]
  %v332 = vld [vmem:[%s2 + $0x9c8] sm:$0xff]
  %v333 = vld [vmem:[%s2 + $0x9d0] sm:$0xff]
  %v334 = vld [vmem:[%s2 + $0x9d8] sm:$0xff]
  %v335 = vld [vmem:[%s2 + $0x9e0] sm:$0xff]
  %v336 = vld [vmem:[%s2 + $0x9e8] sm:$0xff]
  %v337 = vld [vmem:[%s2 + $0x9f0] sm:$0xff]
  %v338 = vld [vmem:[%s2 + $0x9f8] sm:$0xff]
  %v339 = vld [vmem:[%s2 + $0xa00] sm:$0xff]
  %v340 = vld [vmem:[%s2 + $0xa08] sm:$0xff]
  %v341 = vld [vmem:[%s2 + $0xa10] sm:$0xff]
  %v342 = vld [vmem:[%s2 + $0xa18] sm:$0xff]
  %v343 = vld [vmem:[%s2 + $0xa20] sm:$0xff]
  %v344 = vld [vmem:[%s2 + $0xa28] sm:$0xff]
  %v345 = vld [vmem:[%s2 + $0xa30] sm:$0xff]
  %v346 = vld [vmem:[%s2 + $0xa38] sm:$0xff]
  %v347 = vld [vmem:[%s2 + $0xa40] sm:$0xff]
  %v348 = vld [vmem:[%s2 + $0xa48] sm:$0xff]
  %v349 = vld [vmem:[%s2 + $0xa50] sm:$0xff]
  %v350 = vld [vmem:[%s2 + $0xa58] sm:$0xff]
  %v351 = vld [vmem:[%s2 + $0xa60] sm:$0xff]
  %v352 = vld [vmem:[%s2 + $0xa68] sm:$0xff]
  %v353 = vld [vmem:[%s2 + $0xa70] sm:$0xff]
  %v354 = vld [vmem:[%s2 + $0xa78] sm:$0xff]
  %v355 = vld [vmem:[%s2 + $0xa80] sm:$0xff]
  %v356 = vld [vmem:[%s2 + $0xa88] sm:$0xff]
  %v357 = vld [vmem:[%s2 + $0xa90] sm:$0xff]
  %v358 = vld [vmem:[%s2 + $0xa98] sm:$0xff]
  %v359 = vld [vmem:[%s2 + $0xaa0] sm:$0xff]
  %v360 = vld [vmem:[%s2 + $0xaa8] sm:$0xff]
  %v361 = vld [vmem:[%s2 + $0xab0] sm:$0xff]
  %v362 = vld [vmem:[%s2 + $0xab8] sm:$0xff]
  %v363 = vld [vmem:[%s2 + $0xac0] sm:$0xff]
  %v364 = vld [vmem:[%s2 + $0xac8] sm:$0xff]
  %v365 = vld [vmem:[%s2 + $0xad0] sm:$0xff]
  %v366 = vld [vmem:[%s2 + $0xad8] sm:$0xff]
  %v367 = vld [vmem:[%s2 + $0xae0] sm:$0xff]
  %v368 = vld [vmem:[%s2 + $0xae8] sm:$0xff]
  %v369 = vld [vmem:[%s2 + $0xaf0] sm:$0xff]
  %v370 = vld [vmem:[%s2 + $0xaf8] sm:$0xff]
  %v371 = vld [vmem:[%s2 + $0xb00] sm:$0xff]
  %v372 = vld [vmem:[%s2 + $0xb08] sm:$0xff]
  %v373 = vld [vmem:[%s2 + $0xb10] sm:$0xff]
  %v374 = vld [vmem:[%s2 + $0xb18] sm:$0xff]
  %v375 = vld [vmem:[%s2 + $0xb20] sm:$0xff]
  %vm376 = vcmask 64512
  %v378 = vsel %vm376, %v18, 0
  %380 = vmatprep.subr.mxu0 %v20
  %381 = vmatpush1.msra.mxu0 %v19
  %382 = vmatprep.subr.mxu0 %v41
  %383 = vmatpush1.msra.mxu0 %v40
  %384 = vmatprep.subr.mxu0 %v62
  %385 = vmatpush1.msra.mxu0 %v61
  %386 = vmatprep.subr.mxu0 %v83
  %387 = vmatpush1.msra.mxu0 %v82
  %388 = vmatprep.subr.mxu0 %v104
  %389 = vmatpush1.msra.mxu0 %v103
  %390 = vmatprep.subr.mxu0 %v125
  %391 = vmatpush1.msra.mxu0 %v124
  %392 = vmatprep.subr.mxu0 %v146
  %393 = vmatpush1.msra.mxu0 %v145
  %394 = vmatprep.subr.mxu0 %v167
  %395 = vmatpush1.msra.mxu0 %v166
  %396 = vmatprep.subr.mxu0 %v188
  %397 = vmatpush1.msra.mxu0 %v187
  %398 = vmatprep.subr.mxu0 %v209
  %399 = vmatpush1.msra.mxu0 %v208
  %400 = vmatprep.subr.mxu0 %v230
  %401 = vmatpush1.msra.mxu0 %v229
  %402 = vmatprep.subr.mxu0 %v251
  %403 = vmatpush1.msra.mxu0 %v250
  %404 = vmatprep.subr.mxu0 %v272
  %405 = vmatpush1.msra.mxu0 %v271
  %406 = vmatprep.subr.mxu0 %v293
  %407 = vmatpush1.msra.mxu0 %v292
  %408 = vmatprep.subr.mxu0 %v314
  %409 = vmatpush1.msra.mxu0 %v313
  %410 = vmatprep.subr.mxu0 %v335
  %411 = vmatpush1.msra.mxu0 %v334
  %412 = vmatprep.subr.mxu0 %v356
  %413 = vmatpush1.msra.mxu0 %v355
  %414 = vmatprep.subr.mxu0 0.0
  %415 = vmatpush1.msra.mxu0 0.0
  %416 = vmatprep.subr.mxu0 0.0
  %417 = vmatpush1.msra.mxu0 0.0
  %418 = vmatprep.subr.mxu0 0.0
  %419 = vmatpush1.msra.mxu0 0.0
  %420 = vmatprep.subr.mxu0 0.0
  %421 = vmatpush1.msra.mxu0 0.0
  %422 = vmatprep.subr.mxu0 0.0
  %423 = vmatpush1.msra.mxu0 0.0
  %424 = vmatprep.subr.mxu0 0.0
  %425 = vmatpush1.msra.mxu0 0.0
  %426 = vmatprep.subr.mxu0 0.0
  %427 = vmatpush1.msra.mxu0 0.0
  %428 = vmatprep.subr.mxu0 0.0
  %429 = vmatpush1.msra.mxu0 0.0
  %430 = vmatprep.subr.mxu0 0.0
  %431 = vmatpush1.msra.mxu0 0.0
  %432 = vmatprep.subr.mxu0 0.0
  %433 = vmatpush1.msra.mxu0 0.0
  %434 = vmatprep.subr.mxu0 0.0
  %435 = vmatpush1.msra.mxu0 0.0
  %436 = vmatprep.subr.mxu0 0.0
  %437 = vmatpush1.msra.mxu0 0.0
  %438 = vmatprep.subr.mxu0 0.0
  %439 = vmatpush1.msra.mxu0 0.0
  %440 = vmatprep.subr.mxu0 0.0
  %441 = vmatpush1.msra.mxu0 0.0
  %442 = vmatprep.subr.mxu0 0.0
  %443 = vmatpush1.msra.mxu0 0.0
  %444 = vmatprep.mubr.f32.mxu0 %v378
  %445 = vmatmul.mubr.f32.gmra.mrb[0].mxu0 %v17
  %v446 = vpop.f32.mrb[0].mxu0
  %v447 = vadd.f32 0.0, %v446
  %v448 = vpop.f32.mrb[0].mxu0
  %v449 = vadd.f32 0.0, %v448
  %450 = vdwg.mxu0
  %451 = vmatprep.subr.mxu0 %v22
  %452 = vmatpush1.msra.mxu0 %v21
  %453 = vmatprep.subr.mxu0 %v43
  %454 = vmatpush1.msra.mxu0 %v42
  %455 = vmatprep.subr.mxu0 %v64
  %456 = vmatpush1.msra.mxu0 %v63
  %457 = vmatprep.subr.mxu0 %v85
  %458 = vmatpush1.msra.mxu0 %v84
  %459 = vmatprep.subr.mxu0 %v106
  %460 = vmatpush1.msra.mxu0 %v105
  %461 = vmatprep.subr.mxu0 %v127
  %462 = vmatpush1.msra.mxu0 %v126
  %463 = vmatprep.subr.mxu0 %v148
  %464 = vmatpush1.msra.mxu0 %v147
  %465 = vmatprep.subr.mxu0 %v169
  %466 = vmatpush1.msra.mxu0 %v168
  %467 = vmatprep.subr.mxu0 %v190
  %468 = vmatpush1.msra.mxu0 %v189
  %469 = vmatprep.subr.mxu0 %v211
  %470 = vmatpush1.msra.mxu0 %v210
  %471 = vmatprep.subr.mxu0 %v232
  %472 = vmatpush1.msra.mxu0 %v231
  %473 = vmatprep.subr.mxu0 %v253
  %474 = vmatpush1.msra.mxu0 %v252
  %475 = vmatprep.subr.mxu0 %v274
  %476 = vmatpush1.msra.mxu0 %v273
  %477 = vmatprep.subr.mxu0 %v295
  %478 = vmatpush1.msra.mxu0 %v294
  %479 = vmatprep.subr.mxu0 %v316
  %480 = vmatpush1.msra.mxu0 %v315
  %481 = vmatprep.subr.mxu0 %v337
  %482 = vmatpush1.msra.mxu0 %v336
  %483 = vmatprep.subr.mxu0 %v358
  %484 = vmatpush1.msra.mxu0 %v357
  %485 = vmatprep.subr.mxu0 0.0
  %486 = vmatpush1.msra.mxu0 0.0
  %487 = vmatprep.subr.mxu0 0.0
  %488 = vmatpush1.msra.mxu0 0.0
  %489 = vmatprep.subr.mxu0 0.0
  %490 = vmatpush1.msra.mxu0 0.0
  %491 = vmatprep.subr.mxu0 0.0
  %492 = vmatpush1.msra.mxu0 0.0
  %493 = vmatprep.subr.mxu0 0.0
  %494 = vmatpush1.msra.mxu0 0.0
  %495 = vmatprep.subr.mxu0 0.0
  %496 = vmatpush1.msra.mxu0 0.0
  %497 = vmatprep.subr.mxu0 0.0
  %498 = vmatpush1.msra.mxu0 0.0
  %499 = vmatprep.subr.mxu0 0.0
  %500 = vmatpush1.msra.mxu0 0.0
  %501 = vmatprep.subr.mxu0 0.0
  %502 = vmatpush1.msra.mxu0 0.0
  %503 = vmatprep.subr.mxu0 0.0
  %504 = vmatpush1.msra.mxu0 0.0
  %505 = vmatprep.subr.mxu0 0.0
  %506 = vmatpush1.msra.mxu0 0.0
  %507 = vmatprep.subr.mxu0 0.0
  %508 = vmatpush1.msra.mxu0 0.0
  %509 = vmatprep.subr.mxu0 0.0
  %510 = vmatpush1.msra.mxu0 0.0
  %511 = vmatprep.subr.mxu0 0.0
  %512 = vmatpush1.msra.mxu0 0.0
  %513 = vmatprep.subr.mxu0 0.0
  %514 = vmatpush1.msra.mxu0 0.0
  %515 = vmatprep.mubr.f32.mxu0 %v378
  %516 = vmatmul.mubr.f32.gmra.mrb[0].mxu0 %v17
  %v517 = vpop.f32.mrb[0].mxu0
  %v518 = vadd.f32 0.0, %v517
  %v519 = vpop.f32.mrb[0].mxu0
  %v520 = vadd.f32 0.0, %v519
  %521 = vdwg.mxu0
  %522 = vmatprep.subr.mxu0 %v24
  %523 = vmatpush1.msra.mxu0 %v23
  %524 = vmatprep.subr.mxu0 %v45
  %525 = vmatpush1.msra.mxu0 %v44
  %526 = vmatprep.subr.mxu0 %v66
  %527 = vmatpush1.msra.mxu0 %v65
  %528 = vmatprep.subr.mxu0 %v87
  %529 = vmatpush1.msra.mxu0 %v86
  %530 = vmatprep.subr.mxu0 %v108
  %531 = vmatpush1.msra.mxu0 %v107
  %532 = vmatprep.subr.mxu0 %v129
  %533 = vmatpush1.msra.mxu0 %v128
  %534 = vmatprep.subr.mxu0 %v150
  %535 = vmatpush1.msra.mxu0 %v149
  %536 = vmatprep.subr.mxu0 %v171
  %537 = vmatpush1.msra.mxu0 %v170
  %538 = vmatprep.subr.mxu0 %v192
  %539 = vmatpush1.msra.mxu0 %v191
  %540 = vmatprep.subr.mxu0 %v213
  %541 = vmatpush1.msra.mxu0 %v212
  %542 = vmatprep.subr.mxu0 %v234
  %543 = vmatpush1.msra.mxu0 %v233
  %544 = vmatprep.subr.mxu0 %v255
  %545 = vmatpush1.msra.mxu0 %v254
  %546 = vmatprep.subr.mxu0 %v276
  %547 = vmatpush1.msra.mxu0 %v275
  %548 = vmatprep.subr.mxu0 %v297
  %549 = vmatpush1.msra.mxu0 %v296
  %550 = vmatprep.subr.mxu0 %v318
  %551 = vmatpush1.msra.mxu0 %v317
  %552 = vmatprep.subr.mxu0 %v339
  %553 = vmatpush1.msra.mxu0 %v338
  %554 = vmatprep.subr.mxu0 %v360
  %555 = vmatpush1.msra.mxu0 %v359
  %556 = vmatprep.subr.mxu0 0.0
  %557 = vmatpush1.msra.mxu0 0.0
  %558 = vmatprep.subr.mxu0 0.0
  %559 = vmatpush1.msra.mxu0 0.0
  %560 = vmatprep.subr.mxu0 0.0
  %561 = vmatpush1.msra.mxu0 0.0
  %562 = vmatprep.subr.mxu0 0.0
  %563 = vmatpush1.msra.mxu0 0.0
  %564 = vmatprep.subr.mxu0 0.0
  %565 = vmatpush1.msra.mxu0 0.0
  %566 = vmatprep.subr.mxu0 0.0
  %567 = vmatpush1.msra.mxu0 0.0
  %568 = vmatprep.subr.mxu0 0.0
  %569 = vmatpush1.msra.mxu0 0.0
  %570 = vmatprep.subr.mxu0 0.0
  %571 = vmatpush1.msra.mxu0 0.0
  %572 = vmatprep.subr.mxu0 0.0
  %573 = vmatpush1.msra.mxu0 0.0
  %574 = vmatprep.subr.mxu0 0.0
  %575 = vmatpush1.msra.mxu0 0.0
  %576 = vmatprep.subr.mxu0 0.0
  %577 = vmatpush1.msra.mxu0 0.0
  %578 = vmatprep.subr.mxu0 0.0
  %579 = vmatpush1.msra.mxu0 0.0
  %580 = vmatprep.subr.mxu0 0.0
  %581 = vmatpush1.msra.mxu0 0.0
  %582 = vmatprep.subr.mxu0 0.0
  %583 = vmatpush1.msra.mxu0 0.0
  %584 = vmatprep.subr.mxu0 0.0
  %585 = vmatpush1.msra.mxu0 0.0
  %586 = vmatprep.mubr.f32.mxu0 %v378
  %587 = vmatmul.mubr.f32.gmra.mrb[0].mxu0 %v17
  %v588 = vpop.f32.mrb[0].mxu0
  %v589 = vadd.f32 0.0, %v588
  %v590 = vpop.f32.mrb[0].mxu0
  %v591 = vadd.f32 0.0, %v590
  %592 = vdwg.mxu0
  %593 = vmatprep.subr.mxu0 %v26
  %594 = vmatpush1.msra.mxu0 %v25
  %595 = vmatprep.subr.mxu0 %v47
  %596 = vmatpush1.msra.mxu0 %v46
  %597 = vmatprep.subr.mxu0 %v68
  %598 = vmatpush1.msra.mxu0 %v67
  %599 = vmatprep.subr.mxu0 %v89
  %600 = vmatpush1.msra.mxu0 %v88
  %601 = vmatprep.subr.mxu0 %v110
  %602 = vmatpush1.msra.mxu0 %v109
  %603 = vmatprep.subr.mxu0 %v131
  %604 = vmatpush1.msra.mxu0 %v130
  %605 = vmatprep.subr.mxu0 %v152
  %606 = vmatpush1.msra.mxu0 %v151
  %607 = vmatprep.subr.mxu0 %v173
  %608 = vmatpush1.msra.mxu0 %v172
  %609 = vmatprep.subr.mxu0 %v194
  %610 = vmatpush1.msra.mxu0 %v193
  %611 = vmatprep.subr.mxu0 %v215
  %612 = vmatpush1.msra.mxu0 %v214
  %613 = vmatprep.subr.mxu0 %v236
  %614 = vmatpush1.msra.mxu0 %v235
  %615 = vmatprep.subr.mxu0 %v257
  %616 = vmatpush1.msra.mxu0 %v256
  %617 = vmatprep.subr.mxu0 %v278
  %618 = vmatpush1.msra.mxu0 %v277
  %619 = vmatprep.subr.mxu0 %v299
  %620 = vmatpush1.msra.mxu0 %v298
  %621 = vmatprep.subr.mxu0 %v320
  %622 = vmatpush1.msra.mxu0 %v319
  %623 = vmatprep.subr.mxu0 %v341
  %624 = vmatpush1.msra.mxu0 %v340
  %625 = vmatprep.subr.mxu0 %v362
  %626 = vmatpush1.msra.mxu0 %v361
  %627 = vmatprep.subr.mxu0 0.0
  %628 = vmatpush1.msra.mxu0 0.0
  %629 = vmatprep.subr.mxu0 0.0
  %630 = vmatpush1.msra.mxu0 0.0
  %631 = vmatprep.subr.mxu0 0.0
  %632 = vmatpush1.msra.mxu0 0.0
  %633 = vmatprep.subr.mxu0 0.0
  %634 = vmatpush1.msra.mxu0 0.0
  %635 = vmatprep.subr.mxu0 0.0
  %636 = vmatpush1.msra.mxu0 0.0
  %637 = vmatprep.subr.mxu0 0.0
  %638 = vmatpush1.msra.mxu0 0.0
  %639 = vmatprep.subr.mxu0 0.0
  %640 = vmatpush1.msra.mxu0 0.0
  %641 = vmatprep.subr.mxu0 0.0
  %642 = vmatpush1.msra.mxu0 0.0
  %643 = vmatprep.subr.mxu0 0.0
  %644 = vmatpush1.msra.mxu0 0.0
  %645 = vmatprep.subr.mxu0 0.0
  %646 = vmatpush1.msra.mxu0 0.0
  %647 = vmatprep.subr.mxu0 0.0
  %648 = vmatpush1.msra.mxu0 0.0
  %649 = vmatprep.subr.mxu0 0.0
  %650 = vmatpush1.msra.mxu0 0.0
  %651 = vmatprep.subr.mxu0 0.0
  %652 = vmatpush1.msra.mxu0 0.0
  %653 = vmatprep.subr.mxu0 0.0
  %654 = vmatpush1.msra.mxu0 0.0
  %655 = vmatprep.subr.mxu0 0.0
  %656 = vmatpush1.msra.mxu0 0.0
  %657 = vmatprep.mubr.f32.mxu0 %v378
  %658 = vmatmul.mubr.f32.gmra.mrb[0].mxu0 %v17
  %v659 = vpop.f32.mrb[0].mxu0
  %v660 = vadd.f32 0.0, %v659
  %v661 = vpop.f32.mrb[0].mxu0
  %v662 = vadd.f32 0.0, %v661
  %663 = vdwg.mxu0
  %664 = vmatprep.subr.mxu0 %v28
  %665 = vmatpush1.msra.mxu0 %v27
  %666 = vmatprep.subr.mxu0 %v49
  %667 = vmatpush1.msra.mxu0 %v48
  %668 = vmatprep.subr.mxu0 %v70
  %669 = vmatpush1.msra.mxu0 %v69
  %670 = vmatprep.subr.mxu0 %v91
  %671 = vmatpush1.msra.mxu0 %v90
  %672 = vmatprep.subr.mxu0 %v112
  %673 = vmatpush1.msra.mxu0 %v111
  %674 = vmatprep.subr.mxu0 %v133
  %675 = vmatpush1.msra.mxu0 %v132
  %676 = vmatprep.subr.mxu0 %v154
  %677 = vmatpush1.msra.mxu0 %v153
  %678 = vmatprep.subr.mxu0 %v175
  %679 = vmatpush1.msra.mxu0 %v174
  %680 = vmatprep.subr.mxu0 %v196
  %681 = vmatpush1.msra.mxu0 %v195
  %682 = vmatprep.subr.mxu0 %v217
  %683 = vmatpush1.msra.mxu0 %v216
  %684 = vmatprep.subr.mxu0 %v238
  %685 = vmatpush1.msra.mxu0 %v237
  %686 = vmatprep.subr.mxu0 %v259
  %687 = vmatpush1.msra.mxu0 %v258
  %688 = vmatprep.subr.mxu0 %v280
  %689 = vmatpush1.msra.mxu0 %v279
  %690 = vmatprep.subr.mxu0 %v301
  %691 = vmatpush1.msra.mxu0 %v300
  %692 = vmatprep.subr.mxu0 %v322
  %693 = vmatpush1.msra.mxu0 %v321
  %694 = vmatprep.subr.mxu0 %v343
  %695 = vmatpush1.msra.mxu0 %v342
  %696 = vmatprep.subr.mxu0 %v364
  %697 = vmatpush1.msra.mxu0 %v363
  %698 = vmatprep.subr.mxu0 0.0
  %699 = vmatpush1.msra.mxu0 0.0
  %700 = vmatprep.subr.mxu0 0.0
  %701 = vmatpush1.msra.mxu0 0.0
  %702 = vmatprep.subr.mxu0 0.0
  %703 = vmatpush1.msra.mxu0 0.0
  %704 = vmatprep.subr.mxu0 0.0
  %705 = vmatpush1.msra.mxu0 0.0
  %706 = vmatprep.subr.mxu0 0.0
  %707 = vmatpush1.msra.mxu0 0.0
  %708 = vmatprep.subr.mxu0 0.0
  %709 = vmatpush1.msra.mxu0 0.0
  %710 = vmatprep.subr.mxu0 0.0
  %711 = vmatpush1.msra.mxu0 0.0
  %712 = vmatprep.subr.mxu0 0.0
  %713 = vmatpush1.msra.mxu0 0.0
  %714 = vmatprep.subr.mxu0 0.0
  %715 = vmatpush1.msra.mxu0 0.0
  %716 = vmatprep.subr.mxu0 0.0
  %717 = vmatpush1.msra.mxu0 0.0
  %718 = vmatprep.subr.mxu0 0.0
  %719 = vmatpush1.msra.mxu0 0.0
  %720 = vmatprep.subr.mxu0 0.0
  %721 = vmatpush1.msra.mxu0 0.0
  %722 = vmatprep.subr.mxu0 0.0
  %723 = vmatpush1.msra.mxu0 0.0
  %724 = vmatprep.subr.mxu0 0.0
  %725 = vmatpush1.msra.mxu0 0.0
  %726 = vmatprep.subr.mxu0 0.0
  %727 = vmatpush1.msra.mxu0 0.0
  %728 = vmatprep.mubr.f32.mxu0 %v378
  %729 = vmatmul.mubr.f32.gmra.mrb[0].mxu0 %v17
  %v730 = vpop.f32.mrb[0].mxu0
  %v731 = vadd.f32 0.0, %v730
  %v732 = vpop.f32.mrb[0].mxu0
  %v733 = vadd.f32 0.0, %v732
  %734 = vdwg.mxu0
  %735 = vmatprep.subr.mxu0 %v30
  %736 = vmatpush1.msra.mxu0 %v29
  %737 = vmatprep.subr.mxu0 %v51
  %738 = vmatpush1.msra.mxu0 %v50
  %739 = vmatprep.subr.mxu0 %v72
  %740 = vmatpush1.msra.mxu0 %v71
  %741 = vmatprep.subr.mxu0 %v93
  %742 = vmatpush1.msra.mxu0 %v92
  %743 = vmatprep.subr.mxu0 %v114
  %744 = vmatpush1.msra.mxu0 %v113
  %745 = vmatprep.subr.mxu0 %v135
  %746 = vmatpush1.msra.mxu0 %v134
  %747 = vmatprep.subr.mxu0 %v156
  %748 = vmatpush1.msra.mxu0 %v155
  %749 = vmatprep.subr.mxu0 %v177
  %750 = vmatpush1.msra.mxu0 %v176
  %751 = vmatprep.subr.mxu0 %v198
  %752 = vmatpush1.msra.mxu0 %v197
  %753 = vmatprep.subr.mxu0 %v219
  %754 = vmatpush1.msra.mxu0 %v218
  %755 = vmatprep.subr.mxu0 %v240
  %756 = vmatpush1.msra.mxu0 %v239
  %757 = vmatprep.subr.mxu0 %v261
  %758 = vmatpush1.msra.mxu0 %v260
  %759 = vmatprep.subr.mxu0 %v282
  %760 = vmatpush1.msra.mxu0 %v281
  %761 = vmatprep.subr.mxu0 %v303
  %762 = vmatpush1.msra.mxu0 %v302
  %763 = vmatprep.subr.mxu0 %v324
  %764 = vmatpush1.msra.mxu0 %v323
  %765 = vmatprep.subr.mxu0 %v345
  %766 = vmatpush1.msra.mxu0 %v344
  %767 = vmatprep.subr.mxu0 %v366
  %768 = vmatpush1.msra.mxu0 %v365
  %769 = vmatprep.subr.mxu0 0.0
  %770 = vmatpush1.msra.mxu0 0.0
  %771 = vmatprep.subr.mxu0 0.0
  %772 = vmatpush1.msra.mxu0 0.0
  %773 = vmatprep.subr.mxu0 0.0
  %774 = vmatpush1.msra.mxu0 0.0
  %775 = vmatprep.subr.mxu0 0.0
  %776 = vmatpush1.msra.mxu0 0.0
  %777 = vmatprep.subr.mxu0 0.0
  %778 = vmatpush1.msra.mxu0 0.0
  %779 = vmatprep.subr.mxu0 0.0
  %780 = vmatpush1.msra.mxu0 0.0
  %781 = vmatprep.subr.mxu0 0.0
  %782 = vmatpush1.msra.mxu0 0.0
  %783 = vmatprep.subr.mxu0 0.0
  %784 = vmatpush1.msra.mxu0 0.0
  %785 = vmatprep.subr.mxu0 0.0
  %786 = vmatpush1.msra.mxu0 0.0
  %787 = vmatprep.subr.mxu0 0.0
  %788 = vmatpush1.msra.mxu0 0.0
  %789 = vmatprep.subr.mxu0 0.0
  %790 = vmatpush1.msra.mxu0 0.0
  %791 = vmatprep.subr.mxu0 0.0
  %792 = vmatpush1.msra.mxu0 0.0
  %793 = vmatprep.subr.mxu0 0.0
  %794 = vmatpush1.msra.mxu0 0.0
  %795 = vmatprep.subr.mxu0 0.0
  %796 = vmatpush1.msra.mxu0 0.0
  %797 = vmatprep.subr.mxu0 0.0
  %798 = vmatpush1.msra.mxu0 0.0
  %799 = vmatprep.mubr.f32.mxu0 %v378
  %800 = vmatmul.mubr.f32.gmra.mrb[0].mxu0 %v17
  %v801 = vpop.f32.mrb[0].mxu0
  %v802 = vadd.f32 0.0, %v801
  %v803 = vpop.f32.mrb[0].mxu0
  %v804 = vadd.f32 0.0, %v803
  %805 = vdwg.mxu0
  %806 = vmatprep.subr.mxu0 %v32
  %807 = vmatpush1.msra.mxu0 %v31
  %808 = vmatprep.subr.mxu0 %v53
  %809 = vmatpush1.msra.mxu0 %v52
  %810 = vmatprep.subr.mxu0 %v74
  %811 = vmatpush1.msra.mxu0 %v73
  %812 = vmatprep.subr.mxu0 %v95
  %813 = vmatpush1.msra.mxu0 %v94
  %814 = vmatprep.subr.mxu0 %v116
  %815 = vmatpush1.msra.mxu0 %v115
  %816 = vmatprep.subr.mxu0 %v137
  %817 = vmatpush1.msra.mxu0 %v136
  %818 = vmatprep.subr.mxu0 %v158
  %819 = vmatpush1.msra.mxu0 %v157
  %820 = vmatprep.subr.mxu0 %v179
  %821 = vmatpush1.msra.mxu0 %v178
  %822 = vmatprep.subr.mxu0 %v200
  %823 = vmatpush1.msra.mxu0 %v199
  %824 = vmatprep.subr.mxu0 %v221
  %825 = vmatpush1.msra.mxu0 %v220
  %826 = vmatprep.subr.mxu0 %v242
  %827 = vmatpush1.msra.mxu0 %v241
  %828 = vmatprep.subr.mxu0 %v263
  %829 = vmatpush1.msra.mxu0 %v262
  %830 = vmatprep.subr.mxu0 %v284
  %831 = vmatpush1.msra.mxu0 %v283
  %832 = vmatprep.subr.mxu0 %v305
  %833 = vmatpush1.msra.mxu0 %v304
  %834 = vmatprep.subr.mxu0 %v326
  %835 = vmatpush1.msra.mxu0 %v325
  %836 = vmatprep.subr.mxu0 %v347
  %837 = vmatpush1.msra.mxu0 %v346
  %838 = vmatprep.subr.mxu0 %v368
  %839 = vmatpush1.msra.mxu0 %v367
  %840 = vmatprep.subr.mxu0 0.0
  %841 = vmatpush1.msra.mxu0 0.0
  %842 = vmatprep.subr.mxu0 0.0
  %843 = vmatpush1.msra.mxu0 0.0
  %844 = vmatprep.subr.mxu0 0.0
  %845 = vmatpush1.msra.mxu0 0.0
  %846 = vmatprep.subr.mxu0 0.0
  %847 = vmatpush1.msra.mxu0 0.0
  %848 = vmatprep.subr.mxu0 0.0
  %849 = vmatpush1.msra.mxu0 0.0
  %850 = vmatprep.subr.mxu0 0.0
  %851 = vmatpush1.msra.mxu0 0.0
  %852 = vmatprep.subr.mxu0 0.0
  %853 = vmatpush1.msra.mxu0 0.0
  %854 = vmatprep.subr.mxu0 0.0
  %855 = vmatpush1.msra.mxu0 0.0
  %856 = vmatprep.subr.mxu0 0.0
  %857 = vmatpush1.msra.mxu0 0.0
  %858 = vmatprep.subr.mxu0 0.0
  %859 = vmatpush1.msra.mxu0 0.0
  %860 = vmatprep.subr.mxu0 0.0
  %861 = vmatpush1.msra.mxu0 0.0
  %862 = vmatprep.subr.mxu0 0.0
  %863 = vmatpush1.msra.mxu0 0.0
  %864 = vmatprep.subr.mxu0 0.0
  %865 = vmatpush1.msra.mxu0 0.0
  %866 = vmatprep.subr.mxu0 0.0
  %867 = vmatpush1.msra.mxu0 0.0
  %868 = vmatprep.subr.mxu0 0.0
  %869 = vmatpush1.msra.mxu0 0.0
  %870 = vmatprep.mubr.f32.mxu0 %v378
  %871 = vmatmul.mubr.f32.gmra.mrb[0].mxu0 %v17
  %v872 = vpop.f32.mrb[0].mxu0
  %v873 = vadd.f32 0.0, %v872
  %v874 = vpop.f32.mrb[0].mxu0
  %v875 = vadd.f32 0.0, %v874
  %876 = vdwg.mxu0
  %877 = vmatprep.subr.mxu0 %v34
  %878 = vmatpush1.msra.mxu0 %v33
  %879 = vmatprep.subr.mxu0 %v55
  %880 = vmatpush1.msra.mxu0 %v54
  %881 = vmatprep.subr.mxu0 %v76
  %882 = vmatpush1.msra.mxu0 %v75
  %883 = vmatprep.subr.mxu0 %v97
  %884 = vmatpush1.msra.mxu0 %v96
  %885 = vmatprep.subr.mxu0 %v118
  %886 = vmatpush1.msra.mxu0 %v117
  %887 = vmatprep.subr.mxu0 %v139
  %888 = vmatpush1.msra.mxu0 %v138
  %889 = vmatprep.subr.mxu0 %v160
  %890 = vmatpush1.msra.mxu0 %v159
  %891 = vmatprep.subr.mxu0 %v181
  %892 = vmatpush1.msra.mxu0 %v180
  %893 = vmatprep.subr.mxu0 %v202
  %894 = vmatpush1.msra.mxu0 %v201
  %895 = vmatprep.subr.mxu0 %v223
  %896 = vmatpush1.msra.mxu0 %v222
  %897 = vmatprep.subr.mxu0 %v244
  %898 = vmatpush1.msra.mxu0 %v243
  %899 = vmatprep.subr.mxu0 %v265
  %900 = vmatpush1.msra.mxu0 %v264
  %901 = vmatprep.subr.mxu0 %v286
  %902 = vmatpush1.msra.mxu0 %v285
  %903 = vmatprep.subr.mxu0 %v307
  %904 = vmatpush1.msra.mxu0 %v306
  %905 = vmatprep.subr.mxu0 %v328
  %906 = vmatpush1.msra.mxu0 %v327
  %907 = vmatprep.subr.mxu0 %v349
  %908 = vmatpush1.msra.mxu0 %v348
  %909 = vmatprep.subr.mxu0 %v370
  %910 = vmatpush1.msra.mxu0 %v369
  %911 = vmatprep.subr.mxu0 0.0
  %912 = vmatpush1.msra.mxu0 0.0
  %913 = vmatprep.subr.mxu0 0.0
  %914 = vmatpush1.msra.mxu0 0.0
  %915 = vmatprep.subr.mxu0 0.0
  %916 = vmatpush1.msra.mxu0 0.0
  %917 = vmatprep.subr.mxu0 0.0
  %918 = vmatpush1.msra.mxu0 0.0
  %919 = vmatprep.subr.mxu0 0.0
  %920 = vmatpush1.msra.mxu0 0.0
  %921 = vmatprep.subr.mxu0 0.0
  %922 = vmatpush1.msra.mxu0 0.0
  %923 = vmatprep.subr.mxu0 0.0
  %924 = vmatpush1.msra.mxu0 0.0
  %925 = vmatprep.subr.mxu0 0.0
  %926 = vmatpush1.msra.mxu0 0.0
  %927 = vmatprep.subr.mxu0 0.0
  %928 = vmatpush1.msra.mxu0 0.0
  %929 = vmatprep.subr.mxu0 0.0
  %930 = vmatpush1.msra.mxu0 0.0
  %931 = vmatprep.subr.mxu0 0.0
  %932 = vmatpush1.msra.mxu0 0.0
  %933 = vmatprep.subr.mxu0 0.0
  %934 = vmatpush1.msra.mxu0 0.0
  %935 = vmatprep.subr.mxu0 0.0
  %936 = vmatpush1.msra.mxu0 0.0
  %937 = vmatprep.subr.mxu0 0.0
  %938 = vmatpush1.msra.mxu0 0.0
  %939 = vmatprep.subr.mxu0 0.0
  %940 = vmatpush1.msra.mxu0 0.0
  %941 = vmatprep.mubr.f32.mxu0 %v378
  %942 = vmatmul.mubr.f32.gmra.mrb[0].mxu0 %v17
  %v943 = vpop.f32.mrb[0].mxu0
  %v944 = vadd.f32 0.0, %v943
  %v945 = vpop.f32.mrb[0].mxu0
  %v946 = vadd.f32 0.0, %v945
  %947 = vdwg.mxu0
  %948 = vmatprep.subr.mxu0 %v36
  %949 = vmatpush1.msra.mxu0 %v35
  %950 = vmatprep.subr.mxu0 %v57
  %951 = vmatpush1.msra.mxu0 %v56
  %952 = vmatprep.subr.mxu0 %v78
  %953 = vmatpush1.msra.mxu0 %v77
  %954 = vmatprep.subr.mxu0 %v99
  %955 = vmatpush1.msra.mxu0 %v98
  %956 = vmatprep.subr.mxu0 %v120
  %957 = vmatpush1.msra.mxu0 %v119
  %958 = vmatprep.subr.mxu0 %v141
  %959 = vmatpush1.msra.mxu0 %v140
  %960 = vmatprep.subr.mxu0 %v162
  %961 = vmatpush1.msra.mxu0 %v161
  %962 = vmatprep.subr.mxu0 %v183
  %963 = vmatpush1.msra.mxu0 %v182
  %964 = vmatprep.subr.mxu0 %v204
  %965 = vmatpush1.msra.mxu0 %v203
  %966 = vmatprep.subr.mxu0 %v225
  %967 = vmatpush1.msra.mxu0 %v224
  %968 = vmatprep.subr.mxu0 %v246
  %969 = vmatpush1.msra.mxu0 %v245
  %970 = vmatprep.subr.mxu0 %v267
  %971 = vmatpush1.msra.mxu0 %v266
  %972 = vmatprep.subr.mxu0 %v288
  %973 = vmatpush1.msra.mxu0 %v287
  %974 = vmatprep.subr.mxu0 %v309
  %975 = vmatpush1.msra.mxu0 %v308
  %976 = vmatprep.subr.mxu0 %v330
  %977 = vmatpush1.msra.mxu0 %v329
  %978 = vmatprep.subr.mxu0 %v351
  %979 = vmatpush1.msra.mxu0 %v350
  %980 = vmatprep.subr.mxu0 %v372
  %981 = vmatpush1.msra.mxu0 %v371
  %982 = vmatprep.subr.mxu0 0.0
  %983 = vmatpush1.msra.mxu0 0.0
  %984 = vmatprep.subr.mxu0 0.0
  %985 = vmatpush1.msra.mxu0 0.0
  %986 = vmatprep.subr.mxu0 0.0
  %987 = vmatpush1.msra.mxu0 0.0
  %988 = vmatprep.subr.mxu0 0.0
  %989 = vmatpush1.msra.mxu0 0.0
  %990 = vmatprep.subr.mxu0 0.0
  %991 = vmatpush1.msra.mxu0 0.0
  %992 = vmatprep.subr.mxu0 0.0
  %993 = vmatpush1.msra.mxu0 0.0
  %994 = vmatprep.subr.mxu0 0.0
  %995 = vmatpush1.msra.mxu0 0.0
  %996 = vmatprep.subr.mxu0 0.0
  %997 = vmatpush1.msra.mxu0 0.0
  %998 = vmatprep.subr.mxu0 0.0
  %999 = vmatpush1.msra.mxu0 0.0
  %1000 = vmatprep.subr.mxu0 0.0
  %1001 = vmatpush1.msra.mxu0 0.0
  %1002 = vmatprep.subr.mxu0 0.0
  %1003 = vmatpush1.msra.mxu0 0.0
  %1004 = vmatprep.subr.mxu0 0.0
  %1005 = vmatpush1.msra.mxu0 0.0
  %1006 = vmatprep.subr.mxu0 0.0
  %1007 = vmatpush1.msra.mxu0 0.0
  %1008 = vmatprep.subr.mxu0 0.0
  %1009 = vmatpush1.msra.mxu0 0.0
  %1010 = vmatprep.subr.mxu0 0.0
  %1011 = vmatpush1.msra.mxu0 0.0
  %1012 = vmatprep.mubr.f32.mxu0 %v378
  %1013 = vmatmul.mubr.f32.gmra.mrb[0].mxu0 %v17
  %v1014 = vpop.f32.mrb[0].mxu0
  %v1015 = vadd.f32 0.0, %v1014
  %v1016 = vpop.f32.mrb[0].mxu0
  %v1017 = vadd.f32 0.0, %v1016
  %1018 = vdwg.mxu0
  %1019 = vmatprep.subr.mxu0 %v38
  %1020 = vmatpush1.msra.mxu0 %v37
  %1021 = vmatprep.subr.mxu0 %v59
  %1022 = vmatpush1.msra.mxu0 %v58
  %1023 = vmatprep.subr.mxu0 %v80
  %1024 = vmatpush1.msra.mxu0 %v79
  %1025 = vmatprep.subr.mxu0 %v101
  %1026 = vmatpush1.msra.mxu0 %v100
  %1027 = vmatprep.subr.mxu0 %v122
  %1028 = vmatpush1.msra.mxu0 %v121
  %1029 = vmatprep.subr.mxu0 %v143
  %1030 = vmatpush1.msra.mxu0 %v142
  %1031 = vmatprep.subr.mxu0 %v164
  %1032 = vmatpush1.msra.mxu0 %v163
  %1033 = vmatprep.subr.mxu0 %v185
  %1034 = vmatpush1.msra.mxu0 %v184
  %1035 = vmatprep.subr.mxu0 %v206
  %1036 = vmatpush1.msra.mxu0 %v205
  %1037 = vmatprep.subr.mxu0 %v227
  %1038 = vmatpush1.msra.mxu0 %v226
  %1039 = vmatprep.subr.mxu0 %v248
  %1040 = vmatpush1.msra.mxu0 %v247
  %1041 = vmatprep.subr.mxu0 %v269
  %1042 = vmatpush1.msra.mxu0 %v268
  %1043 = vmatprep.subr.mxu0 %v290
  %1044 = vmatpush1.msra.mxu0 %v289
  %1045 = vmatprep.subr.mxu0 %v311
  %1046 = vmatpush1.msra.mxu0 %v310
  %1047 = vmatprep.subr.mxu0 %v332
  %1048 = vmatpush1.msra.mxu0 %v331
  %1049 = vmatprep.subr.mxu0 %v353
  %1050 = vmatpush1.msra.mxu0 %v352
  %1051 = vmatprep.subr.mxu0 %v374
  %1052 = vmatpush1.msra.mxu0 %v373
  %1053 = vmatprep.subr.mxu0 0.0
  %1054 = vmatpush1.msra.mxu0 0.0
  %1055 = vmatprep.subr.mxu0 0.0
  %1056 = vmatpush1.msra.mxu0 0.0
  %1057 = vmatprep.subr.mxu0 0.0
  %1058 = vmatpush1.msra.mxu0 0.0
  %1059 = vmatprep.subr.mxu0 0.0
  %1060 = vmatpush1.msra.mxu0 0.0
  %1061 = vmatprep.subr.mxu0 0.0
  %1062 = vmatpush1.msra.mxu0 0.0
  %1063 = vmatprep.subr.mxu0 0.0
  %1064 = vmatpush1.msra.mxu0 0.0
  %1065 = vmatprep.subr.mxu0 0.0
  %1066 = vmatpush1.msra.mxu0 0.0
  %1067 = vmatprep.subr.mxu0 0.0
  %1068 = vmatpush1.msra.mxu0 0.0
  %1069 = vmatprep.subr.mxu0 0.0
  %1070 = vmatpush1.msra.mxu0 0.0
  %1071 = vmatprep.subr.mxu0 0.0
  %1072 = vmatpush1.msra.mxu0 0.0
  %1073 = vmatprep.subr.mxu0 0.0
  %1074 = vmatpush1.msra.mxu0 0.0
  %1075 = vmatprep.subr.mxu0 0.0
  %1076 = vmatpush1.msra.mxu0 0.0
  %1077 = vmatprep.subr.mxu0 0.0
  %1078 = vmatpush1.msra.mxu0 0.0
  %1079 = vmatprep.subr.mxu0 0.0
  %1080 = vmatpush1.msra.mxu0 0.0
  %1081 = vmatprep.subr.mxu0 0.0
  %1082 = vmatpush1.msra.mxu0 0.0
  %1083 = vmatprep.mubr.f32.mxu0 %v378
  %1084 = vmatmul.mubr.f32.gmra.mrb[0].mxu0 %v17
  %v1085 = vpop.f32.mrb[0].mxu0
  %v1086 = vadd.f32 0.0, %v1085
  %v1087 = vpop.f32.mrb[0].mxu0
  %v1088 = vadd.f32 0.0, %v1087
  %1089 = vdwg.mxu0
  %1090 = vmatprep.subr.mxu0 0.0
  %1091 = vmatpush1.msra.mxu0 %v39
  %1092 = vmatprep.subr.mxu0 0.0
  %1093 = vmatpush1.msra.mxu0 %v60
  %1094 = vmatprep.subr.mxu0 0.0
  %1095 = vmatpush1.msra.mxu0 %v81
  %1096 = vmatprep.subr.mxu0 0.0
  %1097 = vmatpush1.msra.mxu0 %v102
  %1098 = vmatprep.subr.mxu0 0.0
  %1099 = vmatpush1.msra.mxu0 %v123
  %1100 = vmatprep.subr.mxu0 0.0
  %1101 = vmatpush1.msra.mxu0 %v144
  %1102 = vmatprep.subr.mxu0 0.0
  %1103 = vmatpush1.msra.mxu0 %v165
  %1104 = vmatprep.subr.mxu0 0.0
  %1105 = vmatpush1.msra.mxu0 %v186
  %1106 = vmatprep.subr.mxu0 0.0
  %1107 = vmatpush1.msra.mxu0 %v207
  %1108 = vmatprep.subr.mxu0 0.0
  %1109 = vmatpush1.msra.mxu0 %v228
  %1110 = vmatprep.subr.mxu0 0.0
  %1111 = vmatpush1.msra.mxu0 %v249
  %1112 = vmatprep.subr.mxu0 0.0
  %1113 = vmatpush1.msra.mxu0 %v270
  %1114 = vmatprep.subr.mxu0 0.0
  %1115 = vmatpush1.msra.mxu0 %v291
  %1116 = vmatprep.subr.mxu0 0.0
  %1117 = vmatpush1.msra.mxu0 %v312
  %1118 = vmatprep.subr.mxu0 0.0
  %1119 = vmatpush1.msra.mxu0 %v333
  %1120 = vmatprep.subr.mxu0 0.0
  %1121 = vmatpush1.msra.mxu0 %v354
  %1122 = vmatprep.subr.mxu0 0.0
  %1123 = vmatpush1.msra.mxu0 %v375
  %1124 = vmatprep.subr.mxu0 0.0
  %1125 = vmatpush1.msra.mxu0 0.0
  %1126 = vmatprep.subr.mxu0 0.0
  %1127 = vmatpush1.msra.mxu0 0.0
  %1128 = vmatprep.subr.mxu0 0.0
  %1129 = vmatpush1.msra.mxu0 0.0
  %1130 = vmatprep.subr.mxu0 0.0
  %1131 = vmatpush1.msra.mxu0 0.0
  %1132 = vmatprep.subr.mxu0 0.0
  %1133 = vmatpush1.msra.mxu0 0.0
  %1134 = vmatprep.subr.mxu0 0.0
  %1135 = vmatpush1.msra.mxu0 0.0
  %1136 = vmatprep.subr.mxu0 0.0
  %1137 = vmatpush1.msra.mxu0 0.0
  %1138 = vmatprep.subr.mxu0 0.0
  %1139 = vmatpush1.msra.mxu0 0.0
  %1140 = vmatprep.subr.mxu0 0.0
  %1141 = vmatpush1.msra.mxu0 0.0
  %1142 = vmatprep.subr.mxu0 0.0
  %1143 = vmatpush1.msra.mxu0 0.0
  %1144 = vmatprep.subr.mxu0 0.0
  %1145 = vmatpush1.msra.mxu0 0.0
  %1146 = vmatprep.subr.mxu0 0.0
  %1147 = vmatpush1.msra.mxu0 0.0
  %1148 = vmatprep.subr.mxu0 0.0
  %1149 = vmatpush1.msra.mxu0 0.0
  %1150 = vmatprep.subr.mxu0 0.0
  %1151 = vmatpush1.msra.mxu0 0.0
  %1152 = vmatprep.subr.mxu0 0.0
  %1153 = vmatpush1.msra.mxu0 0.0
  %1154 = vmatprep.mubr.f32.mxu0 %v378
  %1155 = vmatmul.mubr.f32.gmra.mrb[0].mxu0 %v17
  %v1156 = vpop.f32.mrb[0].mxu0
  %v1157 = vadd.f32 0.0, %v1156
  %v1158 = vpop.f32.mrb[0].mxu0
  %1159 = vdwg.mxu0
  %v1160 = vld [vmem:[%s3] sm:$0xff]
  %v1161 = vld [vmem:[%s3 + $0x8] sm:$0xff]
  %v1162 = vld [vmem:[%s3 + $0x10] sm:$0xff]
  %v1163 = vld [vmem:[%s3 + $0x18] sm:$0xff]
  %v1164 = vld [vmem:[%s3 + $0x20] sm:$0xff]
  %v1165 = vld [vmem:[%s3 + $0x28] sm:$0xff]
  %v1166 = vld [vmem:[%s3 + $0x30] sm:$0xff]
  %v1167 = vld [vmem:[%s3 + $0x38] sm:$0xff]
  %v1168 = vld [vmem:[%s3 + $0x40] sm:$0xff]
  %v1169 = vld [vmem:[%s3 + $0x48] sm:$0xff]
  %v1170 = vld [vmem:[%s3 + $0x50] sm:$0xff]
  %v1171 = vld [vmem:[%s3 + $0x58] sm:$0xff]
  %v1172 = vld [vmem:[%s3 + $0x60] sm:$0xff]
  %v1173 = vld [vmem:[%s3 + $0x68] sm:$0xff]
  %v1174 = vld [vmem:[%s1] sm:$0xff]
  %v1175 = vld [vmem:[%s1 + $0x8] sm:$0xff]
  %v1176 = vld [vmem:[%s1 + $0x10] sm:$0xff]
  %v1177 = vld [vmem:[%s1 + $0x18] sm:$0xff]
  %v1178 = vld [vmem:[%s1 + $0x20] sm:$0xff]
  %v1179 = vld [vmem:[%s1 + $0x28] sm:$0xff]
  %v1180 = vld [vmem:[%s1 + $0x30] sm:$0xff]
  %v1181 = vld [vmem:[%s1 + $0x38] sm:$0xff]
  %v1182 = vld [vmem:[%s1 + $0x40] sm:$0xff]
  %v1183 = vld [vmem:[%s1 + $0x48] sm:$0xff]
  %v1184 = vld [vmem:[%s1 + $0x50] sm:$0xff]
  %v1185 = vld [vmem:[%s1 + $0x58] sm:$0xff]
  %vm1186 = vcmask 130048
  %v1188 = vsel %vm1186, %v1174, 0
  %1190 = vmatprep.subr.mxu0 %v1161
  %1191 = vmatpush1.msra.mxu0 %v1160
  %1192 = vmatprep.subr.mxu0 %v1168
  %1193 = vmatpush1.msra.mxu0 %v1167
  %1194 = vmatprep.subr.mxu0 0.0
  %1195 = vmatpush1.msra.mxu0 0.0
  %1196 = vmatprep.subr.mxu0 0.0
  %1197 = vmatpush1.msra.mxu0 0.0
  %1198 = vmatprep.subr.mxu0 0.0
  %1199 = vmatpush1.msra.mxu0 0.0
  %1200 = vmatprep.subr.mxu0 0.0
  %1201 = vmatpush1.msra.mxu0 0.0
  %1202 = vmatprep.subr.mxu0 0.0
  %1203 = vmatpush1.msra.mxu0 0.0
  %1204 = vmatprep.subr.mxu0 0.0
  %1205 = vmatpush1.msra.mxu0 0.0
  %1206 = vmatprep.subr.mxu0 0.0
  %1207 = vmatpush1.msra.mxu0 0.0
  %1208 = vmatprep.subr.mxu0 0.0
  %1209 = vmatpush1.msra.mxu0 0.0
  %1210 = vmatprep.subr.mxu0 0.0
  %1211 = vmatpush1.msra.mxu0 0.0
  %1212 = vmatprep.subr.mxu0 0.0
  %1213 = vmatpush1.msra.mxu0 0.0
  %1214 = vmatprep.subr.mxu0 0.0
  %1215 = vmatpush1.msra.mxu0 0.0
  %1216 = vmatprep.subr.mxu0 0.0
  %1217 = vmatpush1.msra.mxu0 0.0
  %1218 = vmatprep.subr.mxu0 0.0
  %1219 = vmatpush1.msra.mxu0 0.0
  %1220 = vmatprep.subr.mxu0 0.0
  %1221 = vmatpush1.msra.mxu0 0.0
  %1222 = vmatprep.subr.mxu0 0.0
  %1223 = vmatpush1.msra.mxu0 0.0
  %1224 = vmatprep.subr.mxu0 0.0
  %1225 = vmatpush1.msra.mxu0 0.0
  %1226 = vmatprep.subr.mxu0 0.0
  %1227 = vmatpush1.msra.mxu0 0.0
  %1228 = vmatprep.subr.mxu0 0.0
  %1229 = vmatpush1.msra.mxu0 0.0
  %1230 = vmatprep.subr.mxu0 0.0
  %1231 = vmatpush1.msra.mxu0 0.0
  %1232 = vmatprep.subr.mxu0 0.0
  %1233 = vmatpush1.msra.mxu0 0.0
  %1234 = vmatprep.subr.mxu0 0.0
  %1235 = vmatpush1.msra.mxu0 0.0
  %1236 = vmatprep.subr.mxu0 0.0
  %1237 = vmatpush1.msra.mxu0 0.0
  %1238 = vmatprep.subr.mxu0 0.0
  %1239 = vmatpush1.msra.mxu0 0.0
  %1240 = vmatprep.subr.mxu0 0.0
  %1241 = vmatpush1.msra.mxu0 0.0
  %1242 = vmatprep.subr.mxu0 0.0
  %1243 = vmatpush1.msra.mxu0 0.0
  %1244 = vmatprep.subr.mxu0 0.0
  %1245 = vmatpush1.msra.mxu0 0.0
  %1246 = vmatprep.subr.mxu0 0.0
  %1247 = vmatpush1.msra.mxu0 0.0
  %1248 = vmatprep.subr.mxu0 0.0
  %1249 = vmatpush1.msra.mxu0 0.0
  %1250 = vmatprep.subr.mxu0 0.0
  %1251 = vmatpush1.msra.mxu0 0.0
  %1252 = vmatprep.subr.mxu0 0.0
  %1253 = vmatpush1.msra.mxu0 0.0
  %1254 = vmatprep.mubr.f32.mxu0 0.0
  %1255 = vmatmul.mubr.f32.gmra.mrb[0].mxu0 %v1188
  %v1256 = vpop.f32.mrb[0].mxu0
  %v1257 = vadd.f32 0.0, %v1256
  %v1258 = vpop.f32.mrb[0].mxu0
  %v1259 = vadd.f32 0.0, %v1258
  %1260 = vdwg.mxu0
  %1261 = vmatprep.subr.mxu0 %v1163
  %1262 = vmatpush1.msra.mxu0 %v1162
  %1263 = vmatprep.subr.mxu0 %v1170
  %1264 = vmatpush1.msra.mxu0 %v1169
  %1265 = vmatprep.subr.mxu0 0.0
  %1266 = vmatpush1.msra.mxu0 0.0
  %1267 = vmatprep.subr.mxu0 0.0
  %1268 = vmatpush1.msra.mxu0 0.0
  %1269 = vmatprep.subr.mxu0 0.0
  %1270 = vmatpush1.msra.mxu0 0.0
  %1271 = vmatprep.subr.mxu0 0.0
  %1272 = vmatpush1.msra.mxu0 0.0
  %1273 = vmatprep.subr.mxu0 0.0
  %1274 = vmatpush1.msra.mxu0 0.0
  %1275 = vmatprep.subr.mxu0 0.0
  %1276 = vmatpush1.msra.mxu0 0.0
  %1277 = vmatprep.subr.mxu0 0.0
  %1278 = vmatpush1.msra.mxu0 0.0
  %1279 = vmatprep.subr.mxu0 0.0
  %1280 = vmatpush1.msra.mxu0 0.0
  %1281 = vmatprep.subr.mxu0 0.0
  %1282 = vmatpush1.msra.mxu0 0.0
  %1283 = vmatprep.subr.mxu0 0.0
  %1284 = vmatpush1.msra.mxu0 0.0
  %1285 = vmatprep.subr.mxu0 0.0
  %1286 = vmatpush1.msra.mxu0 0.0
  %1287 = vmatprep.subr.mxu0 0.0
  %1288 = vmatpush1.msra.mxu0 0.0
  %1289 = vmatprep.subr.mxu0 0.0
  %1290 = vmatpush1.msra.mxu0 0.0
  %1291 = vmatprep.subr.mxu0 0.0
  %1292 = vmatpush1.msra.mxu0 0.0
  %1293 = vmatprep.subr.mxu0 0.0
  %1294 = vmatpush1.msra.mxu0 0.0
  %1295 = vmatprep.subr.mxu0 0.0
  %1296 = vmatpush1.msra.mxu0 0.0
  %1297 = vmatprep.subr.mxu0 0.0
  %1298 = vmatpush1.msra.mxu0 0.0
  %1299 = vmatprep.subr.mxu0 0.0
  %1300 = vmatpush1.msra.mxu0 0.0
  %1301 = vmatprep.subr.mxu0 0.0
  %1302 = vmatpush1.msra.mxu0 0.0
  %1303 = vmatprep.subr.mxu0 0.0
  %1304 = vmatpush1.msra.mxu0 0.0
  %1305 = vmatprep.subr.mxu0 0.0
  %1306 = vmatpush1.msra.mxu0 0.0
  %1307 = vmatprep.subr.mxu0 0.0
  %1308 = vmatpush1.msra.mxu0 0.0
  %1309 = vmatprep.subr.mxu0 0.0
  %1310 = vmatpush1.msra.mxu0 0.0
  %1311 = vmatprep.subr.mxu0 0.0
  %1312 = vmatpush1.msra.mxu0 0.0
  %1313 = vmatprep.subr.mxu0 0.0
  %1314 = vmatpush1.msra.mxu0 0.0
  %1315 = vmatprep.subr.mxu0 0.0
  %1316 = vmatpush1.msra.mxu0 0.0
  %1317 = vmatprep.subr.mxu0 0.0
  %1318 = vmatpush1.msra.mxu0 0.0
  %1319 = vmatprep.subr.mxu0 0.0
  %1320 = vmatpush1.msra.mxu0 0.0
  %1321 = vmatprep.subr.mxu0 0.0
  %1322 = vmatpush1.msra.mxu0 0.0
  %1323 = vmatprep.subr.mxu0 0.0
  %1324 = vmatpush1.msra.mxu0 0.0
  %1325 = vmatprep.mubr.f32.mxu0 0.0
  %1326 = vmatmul.mubr.f32.gmra.mrb[0].mxu0 %v1188
  %v1327 = vpop.f32.mrb[0].mxu0
  %v1328 = vadd.f32 0.0, %v1327
  %v1329 = vpop.f32.mrb[0].mxu0
  %v1330 = vadd.f32 0.0, %v1329
  %1331 = vdwg.mxu0
  %1332 = vmatprep.subr.mxu0 %v1165
  %1333 = vmatpush1.msra.mxu0 %v1164
  %1334 = vmatprep.subr.mxu0 %v1172
  %1335 = vmatpush1.msra.mxu0 %v1171
  %1336 = vmatprep.subr.mxu0 0.0
  %1337 = vmatpush1.msra.mxu0 0.0
  %1338 = vmatprep.subr.mxu0 0.0
  %1339 = vmatpush1.msra.mxu0 0.0
  %1340 = vmatprep.subr.mxu0 0.0
  %1341 = vmatpush1.msra.mxu0 0.0
  %1342 = vmatprep.subr.mxu0 0.0
  %1343 = vmatpush1.msra.mxu0 0.0
  %1344 = vmatprep.subr.mxu0 0.0
  %1345 = vmatpush1.msra.mxu0 0.0
  %1346 = vmatprep.subr.mxu0 0.0
  %1347 = vmatpush1.msra.mxu0 0.0
  %1348 = vmatprep.subr.mxu0 0.0
  %1349 = vmatpush1.msra.mxu0 0.0
  %1350 = vmatprep.subr.mxu0 0.0
  %1351 = vmatpush1.msra.mxu0 0.0
  %1352 = vmatprep.subr.mxu0 0.0
  %1353 = vmatpush1.msra.mxu0 0.0
  %1354 = vmatprep.subr.mxu0 0.0
  %1355 = vmatpush1.msra.mxu0 0.0
  %1356 = vmatprep.subr.mxu0 0.0
  %1357 = vmatpush1.msra.mxu0 0.0
  %1358 = vmatprep.subr.mxu0 0.0
  %1359 = vmatpush1.msra.mxu0 0.0
  %1360 = vmatprep.subr.mxu0 0.0
  %1361 = vmatpush1.msra.mxu0 0.0
  %1362 = vmatprep.subr.mxu0 0.0
  %1363 = vmatpush1.msra.mxu0 0.0
  %1364 = vmatprep.subr.mxu0 0.0
  %1365 = vmatpush1.msra.mxu0 0.0
  %1366 = vmatprep.subr.mxu0 0.0
  %1367 = vmatpush1.msra.mxu0 0.0
  %1368 = vmatprep.subr.mxu0 0.0
  %1369 = vmatpush1.msra.mxu0 0.0
  %1370 = vmatprep.subr.mxu0 0.0
  %1371 = vmatpush1.msra.mxu0 0.0
  %1372 = vmatprep.subr.mxu0 0.0
  %1373 = vmatpush1.msra.mxu0 0.0
  %1374 = vmatprep.subr.mxu0 0.0
  %1375 = vmatpush1.msra.mxu0 0.0
  %1376 = vmatprep.subr.mxu0 0.0
  %1377 = vmatpush1.msra.mxu0 0.0
  %1378 = vmatprep.subr.mxu0 0.0
  %1379 = vmatpush1.msra.mxu0 0.0
  %1380 = vmatprep.subr.mxu0 0.0
  %1381 = vmatpush1.msra.mxu0 0.0
  %1382 = vmatprep.subr.mxu0 0.0
  %1383 = vmatpush1.msra.mxu0 0.0
  %1384 = vmatprep.subr.mxu0 0.0
  %1385 = vmatpush1.msra.mxu0 0.0
  %1386 = vmatprep.subr.mxu0 0.0
  %1387 = vmatpush1.msra.mxu0 0.0
  %1388 = vmatprep.subr.mxu0 0.0
  %1389 = vmatpush1.msra.mxu0 0.0
  %1390 = vmatprep.subr.mxu0 0.0
  %1391 = vmatpush1.msra.mxu0 0.0
  %1392 = vmatprep.subr.mxu0 0.0
  %1393 = vmatpush1.msra.mxu0 0.0
  %1394 = vmatprep.subr.mxu0 0.0
  %1395 = vmatpush1.msra.mxu0 0.0
  %1396 = vmatprep.mubr.f32.mxu0 0.0
  %1397 = vmatmul.mubr.f32.gmra.mrb[0].mxu0 %v1188
  %v1398 = vpop.f32.mrb[0].mxu0
  %v1399 = vadd.f32 0.0, %v1398
  %v1400 = vpop.f32.mrb[0].mxu0
  %v1401 = vadd.f32 0.0, %v1400
  %1402 = vdwg.mxu0
  %1403 = vmatprep.subr.mxu0 0.0
  %1404 = vmatpush1.msra.mxu0 %v1166
  %1405 = vmatprep.subr.mxu0 0.0
  %1406 = vmatpush1.msra.mxu0 %v1173
  %1407 = vmatprep.subr.mxu0 0.0
  %1408 = vmatpush1.msra.mxu0 0.0
  %1409 = vmatprep.subr.mxu0 0.0
  %1410 = vmatpush1.msra.mxu0 0.0
  %1411 = vmatprep.subr.mxu0 0.0
  %1412 = vmatpush1.msra.mxu0 0.0
  %1413 = vmatprep.subr.mxu0 0.0
  %1414 = vmatpush1.msra.mxu0 0.0
  %1415 = vmatprep.subr.mxu0 0.0
  %1416 = vmatpush1.msra.mxu0 0.0
  %1417 = vmatprep.subr.mxu0 0.0
  %1418 = vmatpush1.msra.mxu0 0.0
  %1419 = vmatprep.subr.mxu0 0.0
  %1420 = vmatpush1.msra.mxu0 0.0
  %1421 = vmatprep.subr.mxu0 0.0
  %1422 = vmatpush1.msra.mxu0 0.0
  %1423 = vmatprep.subr.mxu0 0.0
  %1424 = vmatpush1.msra.mxu0 0.0
  %1425 = vmatprep.subr.mxu0 0.0
  %1426 = vmatpush1.msra.mxu0 0.0
  %1427 = vmatprep.subr.mxu0 0.0
  %1428 = vmatpush1.msra.mxu0 0.0
  %1429 = vmatprep.subr.mxu0 0.0
  %1430 = vmatpush1.msra.mxu0 0.0
  %1431 = vmatprep.subr.mxu0 0.0
  %1432 = vmatpush1.msra.mxu0 0.0
  %1433 = vmatprep.subr.mxu0 0.0
  %1434 = vmatpush1.msra.mxu0 0.0
  %1435 = vmatprep.subr.mxu0 0.0
  %1436 = vmatpush1.msra.mxu0 0.0
  %1437 = vmatprep.subr.mxu0 0.0
  %1438 = vmatpush1.msra.mxu0 0.0
  %1439 = vmatprep.subr.mxu0 0.0
  %1440 = vmatpush1.msra.mxu0 0.0
  %1441 = vmatprep.subr.mxu0 0.0
  %1442 = vmatpush1.msra.mxu0 0.0
  %1443 = vmatprep.subr.mxu0 0.0
  %1444 = vmatpush1.msra.mxu0 0.0
  %1445 = vmatprep.subr.mxu0 0.0
  %1446 = vmatpush1.msra.mxu0 0.0
  %1447 = vmatprep.subr.mxu0 0.0
  %1448 = vmatpush1.msra.mxu0 0.0
  %1449 = vmatprep.subr.mxu0 0.0
  %1450 = vmatpush1.msra.mxu0 0.0
  %1451 = vmatprep.subr.mxu0 0.0
  %1452 = vmatpush1.msra.mxu0 0.0
  %1453 = vmatprep.subr.mxu0 0.0
  %1454 = vmatpush1.msra.mxu0 0.0
  %1455 = vmatprep.subr.mxu0 0.0
  %1456 = vmatpush1.msra.mxu0 0.0
  %1457 = vmatprep.subr.mxu0 0.0
  %1458 = vmatpush1.msra.mxu0 0.0
  %1459 = vmatprep.subr.mxu0 0.0
  %1460 = vmatpush1.msra.mxu0 0.0
  %1461 = vmatprep.subr.mxu0 0.0
  %1462 = vmatpush1.msra.mxu0 0.0
  %1463 = vmatprep.subr.mxu0 0.0
  %1464 = vmatpush1.msra.mxu0 0.0
  %1465 = vmatprep.subr.mxu0 0.0
  %1466 = vmatpush1.msra.mxu0 0.0
  %1467 = vmatprep.mubr.f32.mxu0 0.0
  %1468 = vmatmul.mubr.f32.gmra.mrb[0].mxu0 %v1188
  %v1469 = vpop.f32.mrb[0].mxu0
  %v1470 = vadd.f32 0.0, %v1469
  %v1471 = vpop.f32.mrb[0].mxu0
  %1472 = vdwg.mxu0
  %v1474 = vsel %vm1186, %v1175, 0
  %1476 = vmatprep.subr.mxu0 %v1161
  %1477 = vmatpush1.msra.mxu0 %v1160
  %1478 = vmatprep.subr.mxu0 %v1168
  %1479 = vmatpush1.msra.mxu0 %v1167
  %1480 = vmatprep.subr.mxu0 0.0
  %1481 = vmatpush1.msra.mxu0 0.0
  %1482 = vmatprep.subr.mxu0 0.0
  %1483 = vmatpush1.msra.mxu0 0.0
  %1484 = vmatprep.subr.mxu0 0.0
  %1485 = vmatpush1.msra.mxu0 0.0
  %1486 = vmatprep.subr.mxu0 0.0
  %1487 = vmatpush1.msra.mxu0 0.0
  %1488 = vmatprep.subr.mxu0 0.0
  %1489 = vmatpush1.msra.mxu0 0.0
  %1490 = vmatprep.subr.mxu0 0.0
  %1491 = vmatpush1.msra.mxu0 0.0
  %1492 = vmatprep.subr.mxu0 0.0
  %1493 = vmatpush1.msra.mxu0 0.0
  %1494 = vmatprep.subr.mxu0 0.0
  %1495 = vmatpush1.msra.mxu0 0.0
  %1496 = vmatprep.subr.mxu0 0.0
  %1497 = vmatpush1.msra.mxu0 0.0
  %1498 = vmatprep.subr.mxu0 0.0
  %1499 = vmatpush1.msra.mxu0 0.0
  %1500 = vmatprep.subr.mxu0 0.0
  %1501 = vmatpush1.msra.mxu0 0.0
  %1502 = vmatprep.subr.mxu0 0.0
  %1503 = vmatpush1.msra.mxu0 0.0
  %1504 = vmatprep.subr.mxu0 0.0
  %1505 = vmatpush1.msra.mxu0 0.0
  %1506 = vmatprep.subr.mxu0 0.0
  %1507 = vmatpush1.msra.mxu0 0.0
  %1508 = vmatprep.subr.mxu0 0.0
  %1509 = vmatpush1.msra.mxu0 0.0
  %1510 = vmatprep.subr.mxu0 0.0
  %1511 = vmatpush1.msra.mxu0 0.0
  %1512 = vmatprep.subr.mxu0 0.0
  %1513 = vmatpush1.msra.mxu0 0.0
  %1514 = vmatprep.subr.mxu0 0.0
  %1515 = vmatpush1.msra.mxu0 0.0
  %1516 = vmatprep.subr.mxu0 0.0
  %1517 = vmatpush1.msra.mxu0 0.0
  %1518 = vmatprep.subr.mxu0 0.0
  %1519 = vmatpush1.msra.mxu0 0.0
  %1520 = vmatprep.subr.mxu0 0.0
  %1521 = vmatpush1.msra.mxu0 0.0
  %1522 = vmatprep.subr.mxu0 0.0
  %1523 = vmatpush1.msra.mxu0 0.0
  %1524 = vmatprep.subr.mxu0 0.0
  %1525 = vmatpush1.msra.mxu0 0.0
  %1526 = vmatprep.subr.mxu0 0.0
  %1527 = vmatpush1.msra.mxu0 0.0
  %1528 = vmatprep.subr.mxu0 0.0
  %1529 = vmatpush1.msra.mxu0 0.0
  %1530 = vmatprep.subr.mxu0 0.0
  %1531 = vmatpush1.msra.mxu0 0.0
  %1532 = vmatprep.subr.mxu0 0.0
  %1533 = vmatpush1.msra.mxu0 0.0
  %1534 = vmatprep.subr.mxu0 0.0
  %1535 = vmatpush1.msra.mxu0 0.0
  %1536 = vmatprep.subr.mxu0 0.0
  %1537 = vmatpush1.msra.mxu0 0.0
  %1538 = vmatprep.subr.mxu0 0.0
  %1539 = vmatpush1.msra.mxu0 0.0
  %1540 = vmatprep.mubr.f32.mxu0 0.0
  %1541 = vmatmul.mubr.f32.gmra.mrb[0].mxu0 %v1474
  %v1542 = vpop.f32.mrb[0].mxu0
  %v1543 = vadd.f32 0.0, %v1542
  %v1544 = vpop.f32.mrb[0].mxu0
  %v1545 = vadd.f32 0.0, %v1544
  %1546 = vdwg.mxu0
  %1547 = vmatprep.subr.mxu0 %v1163
  %1548 = vmatpush1.msra.mxu0 %v1162
  %1549 = vmatprep.subr.mxu0 %v1170
  %1550 = vmatpush1.msra.mxu0 %v1169
  %1551 = vmatprep.subr.mxu0 0.0
  %1552 = vmatpush1.msra.mxu0 0.0
  %1553 = vmatprep.subr.mxu0 0.0
  %1554 = vmatpush1.msra.mxu0 0.0
  %1555 = vmatprep.subr.mxu0 0.0
  %1556 = vmatpush1.msra.mxu0 0.0
  %1557 = vmatprep.subr.mxu0 0.0
  %1558 = vmatpush1.msra.mxu0 0.0
  %1559 = vmatprep.subr.mxu0 0.0
  %1560 = vmatpush1.msra.mxu0 0.0
  %1561 = vmatprep.subr.mxu0 0.0
  %1562 = vmatpush1.msra.mxu0 0.0
  %1563 = vmatprep.subr.mxu0 0.0
  %1564 = vmatpush1.msra.mxu0 0.0
  %1565 = vmatprep.subr.mxu0 0.0
  %1566 = vmatpush1.msra.mxu0 0.0
  %1567 = vmatprep.subr.mxu0 0.0
  %1568 = vmatpush1.msra.mxu0 0.0
  %1569 = vmatprep.subr.mxu0 0.0
  %1570 = vmatpush1.msra.mxu0 0.0
  %1571 = vmatprep.subr.mxu0 0.0
  %1572 = vmatpush1.msra.mxu0 0.0
  %1573 = vmatprep.subr.mxu0 0.0
  %1574 = vmatpush1.msra.mxu0 0.0
  %1575 = vmatprep.subr.mxu0 0.0
  %1576 = vmatpush1.msra.mxu0 0.0
  %1577 = vmatprep.subr.mxu0 0.0
  %1578 = vmatpush1.msra.mxu0 0.0
  %1579 = vmatprep.subr.mxu0 0.0
  %1580 = vmatpush1.msra.mxu0 0.0
  %1581 = vmatprep.subr.mxu0 0.0
  %1582 = vmatpush1.msra.mxu0 0.0
  %1583 = vmatprep.subr.mxu0 0.0
  %1584 = vmatpush1.msra.mxu0 0.0
  %1585 = vmatprep.subr.mxu0 0.0
  %1586 = vmatpush1.msra.mxu0 0.0
  %1587 = vmatprep.subr.mxu0 0.0
  %1588 = vmatpush1.msra.mxu0 0.0
  %1589 = vmatprep.subr.mxu0 0.0
  %1590 = vmatpush1.msra.mxu0 0.0
  %1591 = vmatprep.subr.mxu0 0.0
  %1592 = vmatpush1.msra.mxu0 0.0
  %1593 = vmatprep.subr.mxu0 0.0
  %1594 = vmatpush1.msra.mxu0 0.0
  %1595 = vmatprep.subr.mxu0 0.0
  %1596 = vmatpush1.msra.mxu0 0.0
  %1597 = vmatprep.subr.mxu0 0.0
  %1598 = vmatpush1.msra.mxu0 0.0
  %1599 = vmatprep.subr.mxu0 0.0
  %1600 = vmatpush1.msra.mxu0 0.0
  %1601 = vmatprep.subr.mxu0 0.0
  %1602 = vmatpush1.msra.mxu0 0.0
  %1603 = vmatprep.subr.mxu0 0.0
  %1604 = vmatpush1.msra.mxu0 0.0
  %1605 = vmatprep.subr.mxu0 0.0
  %1606 = vmatpush1.msra.mxu0 0.0
  %1607 = vmatprep.subr.mxu0 0.0
  %1608 = vmatpush1.msra.mxu0 0.0
  %1609 = vmatprep.subr.mxu0 0.0
  %1610 = vmatpush1.msra.mxu0 0.0
  %1611 = vmatprep.mubr.f32.mxu0 0.0
  %1612 = vmatmul.mubr.f32.gmra.mrb[0].mxu0 %v1474
  %v1613 = vpop.f32.mrb[0].mxu0
  %v1614 = vadd.f32 0.0, %v1613
  %v1615 = vpop.f32.mrb[0].mxu0
  %v1616 = vadd.f32 0.0, %v1615
  %1617 = vdwg.mxu0
  %1618 = vmatprep.subr.mxu0 %v1165
  %1619 = vmatpush1.msra.mxu0 %v1164
  %1620 = vmatprep.subr.mxu0 %v1172
  %1621 = vmatpush1.msra.mxu0 %v1171
  %1622 = vmatprep.subr.mxu0 0.0
  %1623 = vmatpush1.msra.mxu0 0.0
  %1624 = vmatprep.subr.mxu0 0.0
  %1625 = vmatpush1.msra.mxu0 0.0
  %1626 = vmatprep.subr.mxu0 0.0
  %1627 = vmatpush1.msra.mxu0 0.0
  %1628 = vmatprep.subr.mxu0 0.0
  %1629 = vmatpush1.msra.mxu0 0.0
  %1630 = vmatprep.subr.mxu0 0.0
  %1631 = vmatpush1.msra.mxu0 0.0
  %1632 = vmatprep.subr.mxu0 0.0
  %1633 = vmatpush1.msra.mxu0 0.0
  %1634 = vmatprep.subr.mxu0 0.0
  %1635 = vmatpush1.msra.mxu0 0.0
  %1636 = vmatprep.subr.mxu0 0.0
  %1637 = vmatpush1.msra.mxu0 0.0
  %1638 = vmatprep.subr.mxu0 0.0
  %1639 = vmatpush1.msra.mxu0 0.0
  %1640 = vmatprep.subr.mxu0 0.0
  %1641 = vmatpush1.msra.mxu0 0.0
  %1642 = vmatprep.subr.mxu0 0.0
  %1643 = vmatpush1.msra.mxu0 0.0
  %1644 = vmatprep.subr.mxu0 0.0
  %1645 = vmatpush1.msra.mxu0 0.0
  %1646 = vmatprep.subr.mxu0 0.0
  %1647 = vmatpush1.msra.mxu0 0.0
  %1648 = vmatprep.subr.mxu0 0.0
  %1649 = vmatpush1.msra.mxu0 0.0
  %1650 = vmatprep.subr.mxu0 0.0
  %1651 = vmatpush1.msra.mxu0 0.0
  %1652 = vmatprep.subr.mxu0 0.0
  %1653 = vmatpush1.msra.mxu0 0.0
  %1654 = vmatprep.subr.mxu0 0.0
  %1655 = vmatpush1.msra.mxu0 0.0
  %1656 = vmatprep.subr.mxu0 0.0
  %1657 = vmatpush1.msra.mxu0 0.0
  %1658 = vmatprep.subr.mxu0 0.0
  %1659 = vmatpush1.msra.mxu0 0.0
  %1660 = vmatprep.subr.mxu0 0.0
  %1661 = vmatpush1.msra.mxu0 0.0
  %1662 = vmatprep.subr.mxu0 0.0
  %1663 = vmatpush1.msra.mxu0 0.0
  %1664 = vmatprep.subr.mxu0 0.0
  %1665 = vmatpush1.msra.mxu0 0.0
  %1666 = vmatprep.subr.mxu0 0.0
  %1667 = vmatpush1.msra.mxu0 0.0
  %1668 = vmatprep.subr.mxu0 0.0
  %1669 = vmatpush1.msra.mxu0 0.0
  %1670 = vmatprep.subr.mxu0 0.0
  %1671 = vmatpush1.msra.mxu0 0.0
  %1672 = vmatprep.subr.mxu0 0.0
  %1673 = vmatpush1.msra.mxu0 0.0
  %1674 = vmatprep.subr.mxu0 0.0
  %1675 = vmatpush1.msra.mxu0 0.0
  %1676 = vmatprep.subr.mxu0 0.0
  %1677 = vmatpush1.msra.mxu0 0.0
  %1678 = vmatprep.subr.mxu0 0.0
  %1679 = vmatpush1.msra.mxu0 0.0
  %1680 = vmatprep.subr.mxu0 0.0
  %1681 = vmatpush1.msra.mxu0 0.0
  %1682 = vmatprep.mubr.f32.mxu0 0.0
  %1683 = vmatmul.mubr.f32.gmra.mrb[0].mxu0 %v1474
  %v1684 = vpop.f32.mrb[0].mxu0
  %v1685 = vadd.f32 0.0, %v1684
  %v1686 = vpop.f32.mrb[0].mxu0
  %v1687 = vadd.f32 0.0, %v1686
  %1688 = vdwg.mxu0
  %1689 = vmatprep.subr.mxu0 0.0
  %1690 = vmatpush1.msra.mxu0 %v1166
  %1691 = vmatprep.subr.mxu0 0.0
  %1692 = vmatpush1.msra.mxu0 %v1173
  %1693 = vmatprep.subr.mxu0 0.0
  %1694 = vmatpush1.msra.mxu0 0.0
  %1695 = vmatprep.subr.mxu0 0.0
  %1696 = vmatpush1.msra.mxu0 0.0
  %1697 = vmatprep.subr.mxu0 0.0
  %1698 = vmatpush1.msra.mxu0 0.0
  %1699 = vmatprep.subr.mxu0 0.0
  %1700 = vmatpush1.msra.mxu0 0.0
  %1701 = vmatprep.subr.mxu0 0.0
  %1702 = vmatpush1.msra.mxu0 0.0
  %1703 = vmatprep.subr.mxu0 0.0
  %1704 = vmatpush1.msra.mxu0 0.0
  %1705 = vmatprep.subr.mxu0 0.0
  %1706 = vmatpush1.msra.mxu0 0.0
  %1707 = vmatprep.subr.mxu0 0.0
  %1708 = vmatpush1.msra.mxu0 0.0
  %1709 = vmatprep.subr.mxu0 0.0
  %1710 = vmatpush1.msra.mxu0 0.0
  %1711 = vmatprep.subr.mxu0 0.0
  %1712 = vmatpush1.msra.mxu0 0.0
  %1713 = vmatprep.subr.mxu0 0.0
  %1714 = vmatpush1.msra.mxu0 0.0
  %1715 = vmatprep.subr.mxu0 0.0
  %1716 = vmatpush1.msra.mxu0 0.0
  %1717 = vmatprep.subr.mxu0 0.0
  %1718 = vmatpush1.msra.mxu0 0.0
  %1719 = vmatprep.subr.mxu0 0.0
  %1720 = vmatpush1.msra.mxu0 0.0
  %1721 = vmatprep.subr.mxu0 0.0
  %1722 = vmatpush1.msra.mxu0 0.0
  %1723 = vmatprep.subr.mxu0 0.0
  %1724 = vmatpush1.msra.mxu0 0.0
  %1725 = vmatprep.subr.mxu0 0.0
  %1726 = vmatpush1.msra.mxu0 0.0
  %1727 = vmatprep.subr.mxu0 0.0
  %1728 = vmatpush1.msra.mxu0 0.0
  %1729 = vmatprep.subr.mxu0 0.0
  %1730 = vmatpush1.msra.mxu0 0.0
  %1731 = vmatprep.subr.mxu0 0.0
  %1732 = vmatpush1.msra.mxu0 0.0
  %1733 = vmatprep.subr.mxu0 0.0
  %1734 = vmatpush1.msra.mxu0 0.0
  %1735 = vmatprep.subr.mxu0 0.0
  %1736 = vmatpush1.msra.mxu0 0.0
  %1737 = vmatprep.subr.mxu0 0.0
  %1738 = vmatpush1.msra.mxu0 0.0
  %1739 = vmatprep.subr.mxu0 0.0
  %1740 = vmatpush1.msra.mxu0 0.0
  %1741 = vmatprep.subr.mxu0 0.0
  %1742 = vmatpush1.msra.mxu0 0.0
  %1743 = vmatprep.subr.mxu0 0.0
  %1744 = vmatpush1.msra.mxu0 0.0
  %1745 = vmatprep.subr.mxu0 0.0
  %1746 = vmatpush1.msra.mxu0 0.0
  %1747 = vmatprep.subr.mxu0 0.0
  %1748 = vmatpush1.msra.mxu0 0.0
  %1749 = vmatprep.subr.mxu0 0.0
  %1750 = vmatpush1.msra.mxu0 0.0
  %1751 = vmatprep.subr.mxu0 0.0
  %1752 = vmatpush1.msra.mxu0 0.0
  %1753 = vmatprep.mubr.f32.mxu0 0.0
  %1754 = vmatmul.mubr.f32.gmra.mrb[0].mxu0 %v1474
  %v1755 = vpop.f32.mrb[0].mxu0
  %v1756 = vadd.f32 0.0, %v1755
  %v1757 = vpop.f32.mrb[0].mxu0
  %1758 = vdwg.mxu0
  %v1760 = vsel %vm1186, %v1176, 0
  %1762 = vmatprep.subr.mxu0 %v1161
  %1763 = vmatpush1.msra.mxu0 %v1160
  %1764 = vmatprep.subr.mxu0 %v1168
  %1765 = vmatpush1.msra.mxu0 %v1167
  %1766 = vmatprep.subr.mxu0 0.0
  %1767 = vmatpush1.msra.mxu0 0.0
  %1768 = vmatprep.subr.mxu0 0.0
  %1769 = vmatpush1.msra.mxu0 0.0
  %1770 = vmatprep.subr.mxu0 0.0
  %1771 = vmatpush1.msra.mxu0 0.0
  %1772 = vmatprep.subr.mxu0 0.0
  %1773 = vmatpush1.msra.mxu0 0.0
  %1774 = vmatprep.subr.mxu0 0.0
  %1775 = vmatpush1.msra.mxu0 0.0
  %1776 = vmatprep.subr.mxu0 0.0
  %1777 = vmatpush1.msra.mxu0 0.0
  %1778 = vmatprep.subr.mxu0 0.0
  %1779 = vmatpush1.msra.mxu0 0.0
  %1780 = vmatprep.subr.mxu0 0.0
  %1781 = vmatpush1.msra.mxu0 0.0
  %1782 = vmatprep.subr.mxu0 0.0
  %1783 = vmatpush1.msra.mxu0 0.0
  %1784 = vmatprep.subr.mxu0 0.0
  %1785 = vmatpush1.msra.mxu0 0.0
  %1786 = vmatprep.subr.mxu0 0.0
  %1787 = vmatpush1.msra.mxu0 0.0
  %1788 = vmatprep.subr.mxu0 0.0
  %1789 = vmatpush1.msra.mxu0 0.0
  %1790 = vmatprep.subr.mxu0 0.0
  %1791 = vmatpush1.msra.mxu0 0.0
  %1792 = vmatprep.subr.mxu0 0.0
  %1793 = vmatpush1.msra.mxu0 0.0
  %1794 = vmatprep.subr.mxu0 0.0
  %1795 = vmatpush1.msra.mxu0 0.0
  %1796 = vmatprep.subr.mxu0 0.0
  %1797 = vmatpush1.msra.mxu0 0.0
  %1798 = vmatprep.subr.mxu0 0.0
  %1799 = vmatpush1.msra.mxu0 0.0
  %1800 = vmatprep.subr.mxu0 0.0
  %1801 = vmatpush1.msra.mxu0 0.0
  %1802 = vmatprep.subr.mxu0 0.0
  %1803 = vmatpush1.msra.mxu0 0.0
  %1804 = vmatprep.subr.mxu0 0.0
  %1805 = vmatpush1.msra.mxu0 0.0
  %1806 = vmatprep.subr.mxu0 0.0
  %1807 = vmatpush1.msra.mxu0 0.0
  %1808 = vmatprep.subr.mxu0 0.0
  %1809 = vmatpush1.msra.mxu0 0.0
  %1810 = vmatprep.subr.mxu0 0.0
  %1811 = vmatpush1.msra.mxu0 0.0
  %1812 = vmatprep.subr.mxu0 0.0
  %1813 = vmatpush1.msra.mxu0 0.0
  %1814 = vmatprep.subr.mxu0 0.0
  %1815 = vmatpush1.msra.mxu0 0.0
  %1816 = vmatprep.subr.mxu0 0.0
  %1817 = vmatpush1.msra.mxu0 0.0
  %1818 = vmatprep.subr.mxu0 0.0
  %1819 = vmatpush1.msra.mxu0 0.0
  %1820 = vmatprep.subr.mxu0 0.0
  %1821 = vmatpush1.msra.mxu0 0.0
  %1822 = vmatprep.subr.mxu0 0.0
  %1823 = vmatpush1.msra.mxu0 0.0
  %1824 = vmatprep.subr.mxu0 0.0
  %1825 = vmatpush1.msra.mxu0 0.0
  %1826 = vmatprep.mubr.f32.mxu0 0.0
  %1827 = vmatmul.mubr.f32.gmra.mrb[0].mxu0 %v1760
  %v1828 = vpop.f32.mrb[0].mxu0
  %v1829 = vadd.f32 0.0, %v1828
  %v1830 = vpop.f32.mrb[0].mxu0
  %v1831 = vadd.f32 0.0, %v1830
  %1832 = vdwg.mxu0
  %1833 = vmatprep.subr.mxu0 %v1163
  %1834 = vmatpush1.msra.mxu0 %v1162
  %1835 = vmatprep.subr.mxu0 %v1170
  %1836 = vmatpush1.msra.mxu0 %v1169
  %1837 = vmatprep.subr.mxu0 0.0
  %1838 = vmatpush1.msra.mxu0 0.0
  %1839 = vmatprep.subr.mxu0 0.0
  %1840 = vmatpush1.msra.mxu0 0.0
  %1841 = vmatprep.subr.mxu0 0.0
  %1842 = vmatpush1.msra.mxu0 0.0
  %1843 = vmatprep.subr.mxu0 0.0
  %1844 = vmatpush1.msra.mxu0 0.0
  %1845 = vmatprep.subr.mxu0 0.0
  %1846 = vmatpush1.msra.mxu0 0.0
  %1847 = vmatprep.subr.mxu0 0.0
  %1848 = vmatpush1.msra.mxu0 0.0
  %1849 = vmatprep.subr.mxu0 0.0
  %1850 = vmatpush1.msra.mxu0 0.0
  %1851 = vmatprep.subr.mxu0 0.0
  %1852 = vmatpush1.msra.mxu0 0.0
  %1853 = vmatprep.subr.mxu0 0.0
  %1854 = vmatpush1.msra.mxu0 0.0
  %1855 = vmatprep.subr.mxu0 0.0
  %1856 = vmatpush1.msra.mxu0 0.0
  %1857 = vmatprep.subr.mxu0 0.0
  %1858 = vmatpush1.msra.mxu0 0.0
  %1859 = vmatprep.subr.mxu0 0.0
  %1860 = vmatpush1.msra.mxu0 0.0
  %1861 = vmatprep.subr.mxu0 0.0
  %1862 = vmatpush1.msra.mxu0 0.0
  %1863 = vmatprep.subr.mxu0 0.0
  %1864 = vmatpush1.msra.mxu0 0.0
  %1865 = vmatprep.subr.mxu0 0.0
  %1866 = vmatpush1.msra.mxu0 0.0
  %1867 = vmatprep.subr.mxu0 0.0
  %1868 = vmatpush1.msra.mxu0 0.0
  %1869 = vmatprep.subr.mxu0 0.0
  %1870 = vmatpush1.msra.mxu0 0.0
  %1871 = vmatprep.subr.mxu0 0.0
  %1872 = vmatpush1.msra.mxu0 0.0
  %1873 = vmatprep.subr.mxu0 0.0
  %1874 = vmatpush1.msra.mxu0 0.0
  %1875 = vmatprep.subr.mxu0 0.0
  %1876 = vmatpush1.msra.mxu0 0.0
  %1877 = vmatprep.subr.mxu0 0.0
  %1878 = vmatpush1.msra.mxu0 0.0
  %1879 = vmatprep.subr.mxu0 0.0
  %1880 = vmatpush1.msra.mxu0 0.0
  %1881 = vmatprep.subr.mxu0 0.0
  %1882 = vmatpush1.msra.mxu0 0.0
  %1883 = vmatprep.subr.mxu0 0.0
  %1884 = vmatpush1.msra.mxu0 0.0
  %1885 = vmatprep.subr.mxu0 0.0
  %1886 = vmatpush1.msra.mxu0 0.0
  %1887 = vmatprep.subr.mxu0 0.0
  %1888 = vmatpush1.msra.mxu0 0.0
  %1889 = vmatprep.subr.mxu0 0.0
  %1890 = vmatpush1.msra.mxu0 0.0
  %1891 = vmatprep.subr.mxu0 0.0
  %1892 = vmatpush1.msra.mxu0 0.0
  %1893 = vmatprep.subr.mxu0 0.0
  %1894 = vmatpush1.msra.mxu0 0.0
  %1895 = vmatprep.subr.mxu0 0.0
  %1896 = vmatpush1.msra.mxu0 0.0
  %1897 = vmatprep.mubr.f32.mxu0 0.0
  %1898 = vmatmul.mubr.f32.gmra.mrb[0].mxu0 %v1760
  %v1899 = vpop.f32.mrb[0].mxu0
  %v1900 = vadd.f32 0.0, %v1899
  %v1901 = vpop.f32.mrb[0].mxu0
  %v1902 = vadd.f32 0.0, %v1901
  %1903 = vdwg.mxu0
  %1904 = vmatprep.subr.mxu0 %v1165
  %1905 = vmatpush1.msra.mxu0 %v1164
  %1906 = vmatprep.subr.mxu0 %v1172
  %1907 = vmatpush1.msra.mxu0 %v1171
  %1908 = vmatprep.subr.mxu0 0.0
  %1909 = vmatpush1.msra.mxu0 0.0
  %1910 = vmatprep.subr.mxu0 0.0
  %1911 = vmatpush1.msra.mxu0 0.0
  %1912 = vmatprep.subr.mxu0 0.0
  %1913 = vmatpush1.msra.mxu0 0.0
  %1914 = vmatprep.subr.mxu0 0.0
  %1915 = vmatpush1.msra.mxu0 0.0
  %1916 = vmatprep.subr.mxu0 0.0
  %1917 = vmatpush1.msra.mxu0 0.0
  %1918 = vmatprep.subr.mxu0 0.0
  %1919 = vmatpush1.msra.mxu0 0.0
  %1920 = vmatprep.subr.mxu0 0.0
  %1921 = vmatpush1.msra.mxu0 0.0
  %1922 = vmatprep.subr.mxu0 0.0
  %1923 = vmatpush1.msra.mxu0 0.0
  %1924 = vmatprep.subr.mxu0 0.0
  %1925 = vmatpush1.msra.mxu0 0.0
  %1926 = vmatprep.subr.mxu0 0.0
  %1927 = vmatpush1.msra.mxu0 0.0
  %1928 = vmatprep.subr.mxu0 0.0
  %1929 = vmatpush1.msra.mxu0 0.0
  %1930 = vmatprep.subr.mxu0 0.0
  %1931 = vmatpush1.msra.mxu0 0.0
  %1932 = vmatprep.subr.mxu0 0.0
  %1933 = vmatpush1.msra.mxu0 0.0
  %1934 = vmatprep.subr.mxu0 0.0
  %1935 = vmatpush1.msra.mxu0 0.0
  %1936 = vmatprep.subr.mxu0 0.0
  %1937 = vmatpush1.msra.mxu0 0.0
  %1938 = vmatprep.subr.mxu0 0.0
  %1939 = vmatpush1.msra.mxu0 0.0
  %1940 = vmatprep.subr.mxu0 0.0
  %1941 = vmatpush1.msra.mxu0 0.0
  %1942 = vmatprep.subr.mxu0 0.0
  %1943 = vmatpush1.msra.mxu0 0.0
  %1944 = vmatprep.subr.mxu0 0.0
  %1945 = vmatpush1.msra.mxu0 0.0
  %1946 = vmatprep.subr.mxu0 0.0
  %1947 = vmatpush1.msra.mxu0 0.0
  %1948 = vmatprep.subr.mxu0 0.0
  %1949 = vmatpush1.msra.mxu0 0.0
  %1950 = vmatprep.subr.mxu0 0.0
  %1951 = vmatpush1.msra.mxu0 0.0
  %1952 = vmatprep.subr.mxu0 0.0
  %1953 = vmatpush1.msra.mxu0 0.0
  %1954 = vmatprep.subr.mxu0 0.0
  %1955 = vmatpush1.msra.mxu0 0.0
  %1956 = vmatprep.subr.mxu0 0.0
  %1957 = vmatpush1.msra.mxu0 0.0
  %1958 = vmatprep.subr.mxu0 0.0
  %1959 = vmatpush1.msra.mxu0 0.0
  %1960 = vmatprep.subr.mxu0 0.0
  %1961 = vmatpush1.msra.mxu0 0.0
  %1962 = vmatprep.subr.mxu0 0.0
  %1963 = vmatpush1.msra.mxu0 0.0
  %1964 = vmatprep.subr.mxu0 0.0
  %1965 = vmatpush1.msra.mxu0 0.0
  %1966 = vmatprep.subr.mxu0 0.0
  %1967 = vmatpush1.msra.mxu0 0.0
  %1968 = vmatprep.mubr.f32.mxu0 0.0
  %1969 = vmatmul.mubr.f32.gmra.mrb[0].mxu0 %v1760
  %v1970 = vpop.f32.mrb[0].mxu0
  %v1971 = vadd.f32 0.0, %v1970
  %v1972 = vpop.f32.mrb[0].mxu0
  %v1973 = vadd.f32 0.0, %v1972
  %1974 = vdwg.mxu0
  %1975 = vmatprep.subr.mxu0 0.0
  %1976 = vmatpush1.msra.mxu0 %v1166
  %1977 = vmatprep.subr.mxu0 0.0
  %1978 = vmatpush1.msra.mxu0 %v1173
  %1979 = vmatprep.subr.mxu0 0.0
  %1980 = vmatpush1.msra.mxu0 0.0
  %1981 = vmatprep.subr.mxu0 0.0
  %1982 = vmatpush1.msra.mxu0 0.0
  %1983 = vmatprep.subr.mxu0 0.0
  %1984 = vmatpush1.msra.mxu0 0.0
  %1985 = vmatprep.subr.mxu0 0.0
  %1986 = vmatpush1.msra.mxu0 0.0
  %1987 = vmatprep.subr.mxu0 0.0
  %1988 = vmatpush1.msra.mxu0 0.0
  %1989 = vmatprep.subr.mxu0 0.0
  %1990 = vmatpush1.msra.mxu0 0.0
  %1991 = vmatprep.subr.mxu0 0.0
  %1992 = vmatpush1.msra.mxu0 0.0
  %1993 = vmatprep.subr.mxu0 0.0
  %1994 = vmatpush1.msra.mxu0 0.0
  %1995 = vmatprep.subr.mxu0 0.0
  %1996 = vmatpush1.msra.mxu0 0.0
  %1997 = vmatprep.subr.mxu0 0.0
  %1998 = vmatpush1.msra.mxu0 0.0
  %1999 = vmatprep.subr.mxu0 0.0
  %2000 = vmatpush1.msra.mxu0 0.0
  %2001 = vmatprep.subr.mxu0 0.0
  %2002 = vmatpush1.msra.mxu0 0.0
  %2003 = vmatprep.subr.mxu0 0.0
  %2004 = vmatpush1.msra.mxu0 0.0
  %2005 = vmatprep.subr.mxu0 0.0
  %2006 = vmatpush1.msra.mxu0 0.0
  %2007 = vmatprep.subr.mxu0 0.0
  %2008 = vmatpush1.msra.mxu0 0.0
  %2009 = vmatprep.subr.mxu0 0.0
  %2010 = vmatpush1.msra.mxu0 0.0
  %2011 = vmatprep.subr.mxu0 0.0
  %2012 = vmatpush1.msra.mxu0 0.0
  %2013 = vmatprep.subr.mxu0 0.0
  %2014 = vmatpush1.msra.mxu0 0.0
  %2015 = vmatprep.subr.mxu0 0.0
  %2016 = vmatpush1.msra.mxu0 0.0
  %2017 = vmatprep.subr.mxu0 0.0
  %2018 = vmatpush1.msra.mxu0 0.0
  %2019 = vmatprep.subr.mxu0 0.0
  %2020 = vmatpush1.msra.mxu0 0.0
  %2021 = vmatprep.subr.mxu0 0.0
  %2022 = vmatpush1.msra.mxu0 0.0
  %2023 = vmatprep.subr.mxu0 0.0
  %2024 = vmatpush1.msra.mxu0 0.0
  %2025 = vmatprep.subr.mxu0 0.0
  %2026 = vmatpush1.msra.mxu0 0.0
  %2027 = vmatprep.subr.mxu0 0.0
  %2028 = vmatpush1.msra.mxu0 0.0
  %2029 = vmatprep.subr.mxu0 0.0
  %2030 = vmatpush1.msra.mxu0 0.0
  %2031 = vmatprep.subr.mxu0 0.0
  %2032 = vmatpush1.msra.mxu0 0.0
  %2033 = vmatprep.subr.mxu0 0.0
  %2034 = vmatpush1.msra.mxu0 0.0
  %2035 = vmatprep.subr.mxu0 0.0
  %2036 = vmatpush1.msra.mxu0 0.0
  %2037 = vmatprep.subr.mxu0 0.0
  %2038 = vmatpush1.msra.mxu0 0.0
  %2039 = vmatprep.mubr.f32.mxu0 0.0
  %2040 = vmatmul.mubr.f32.gmra.mrb[0].mxu0 %v1760
  %v2041 = vpop.f32.mrb[0].mxu0
  %v2042 = vadd.f32 0.0, %v2041
  %v2043 = vpop.f32.mrb[0].mxu0
  %2044 = vdwg.mxu0
  %v2046 = vsel %vm1186, %v1177, 0
  %2048 = vmatprep.subr.mxu0 %v1161
  %2049 = vmatpush1.msra.mxu0 %v1160
  %2050 = vmatprep.subr.mxu0 %v1168
  %2051 = vmatpush1.msra.mxu0 %v1167
  %2052 = vmatprep.subr.mxu0 0.0
  %2053 = vmatpush1.msra.mxu0 0.0
  %2054 = vmatprep.subr.mxu0 0.0
  %2055 = vmatpush1.msra.mxu0 0.0
  %2056 = vmatprep.subr.mxu0 0.0
  %2057 = vmatpush1.msra.mxu0 0.0
  %2058 = vmatprep.subr.mxu0 0.0
  %2059 = vmatpush1.msra.mxu0 0.0
  %2060 = vmatprep.subr.mxu0 0.0
  %2061 = vmatpush1.msra.mxu0 0.0
  %2062 = vmatprep.subr.mxu0 0.0
  %2063 = vmatpush1.msra.mxu0 0.0
  %2064 = vmatprep.subr.mxu0 0.0
  %2065 = vmatpush1.msra.mxu0 0.0
  %2066 = vmatprep.subr.mxu0 0.0
  %2067 = vmatpush1.msra.mxu0 0.0
  %2068 = vmatprep.subr.mxu0 0.0
  %2069 = vmatpush1.msra.mxu0 0.0
  %2070 = vmatprep.subr.mxu0 0.0
  %2071 = vmatpush1.msra.mxu0 0.0
  %2072 = vmatprep.subr.mxu0 0.0
  %2073 = vmatpush1.msra.mxu0 0.0
  %2074 = vmatprep.subr.mxu0 0.0
  %2075 = vmatpush1.msra.mxu0 0.0
  %2076 = vmatprep.subr.mxu0 0.0
  %2077 = vmatpush1.msra.mxu0 0.0
  %2078 = vmatprep.subr.mxu0 0.0
  %2079 = vmatpush1.msra.mxu0 0.0
  %2080 = vmatprep.subr.mxu0 0.0
  %2081 = vmatpush1.msra.mxu0 0.0
  %2082 = vmatprep.subr.mxu0 0.0
  %2083 = vmatpush1.msra.mxu0 0.0
  %2084 = vmatprep.subr.mxu0 0.0
  %2085 = vmatpush1.msra.mxu0 0.0
  %2086 = vmatprep.subr.mxu0 0.0
  %2087 = vmatpush1.msra.mxu0 0.0
  %2088 = vmatprep.subr.mxu0 0.0
  %2089 = vmatpush1.msra.mxu0 0.0
  %2090 = vmatprep.subr.mxu0 0.0
  %2091 = vmatpush1.msra.mxu0 0.0
  %2092 = vmatprep.subr.mxu0 0.0
  %2093 = vmatpush1.msra.mxu0 0.0
  %2094 = vmatprep.subr.mxu0 0.0
  %2095 = vmatpush1.msra.mxu0 0.0
  %2096 = vmatprep.subr.mxu0 0.0
  %2097 = vmatpush1.msra.mxu0 0.0
  %2098 = vmatprep.subr.mxu0 0.0
  %2099 = vmatpush1.msra.mxu0 0.0
  %2100 = vmatprep.subr.mxu0 0.0
  %2101 = vmatpush1.msra.mxu0 0.0
  %2102 = vmatprep.subr.mxu0 0.0
  %2103 = vmatpush1.msra.mxu0 0.0
  %2104 = vmatprep.subr.mxu0 0.0
  %2105 = vmatpush1.msra.mxu0 0.0
  %2106 = vmatprep.subr.mxu0 0.0
  %2107 = vmatpush1.msra.mxu0 0.0
  %2108 = vmatprep.subr.mxu0 0.0
  %2109 = vmatpush1.msra.mxu0 0.0
  %2110 = vmatprep.subr.mxu0 0.0
  %2111 = vmatpush1.msra.mxu0 0.0
  %2112 = vmatprep.mubr.f32.mxu0 0.0
  %2113 = vmatmul.mubr.f32.gmra.mrb[0].mxu0 %v2046
  %v2114 = vpop.f32.mrb[0].mxu0
  %v2115 = vadd.f32 0.0, %v2114
  %v2116 = vpop.f32.mrb[0].mxu0
  %v2117 = vadd.f32 0.0, %v2116
  %2118 = vdwg.mxu0
  %2119 = vmatprep.subr.mxu0 %v1163
  %2120 = vmatpush1.msra.mxu0 %v1162
  %2121 = vmatprep.subr.mxu0 %v1170
  %2122 = vmatpush1.msra.mxu0 %v1169
  %2123 = vmatprep.subr.mxu0 0.0
  %2124 = vmatpush1.msra.mxu0 0.0
  %2125 = vmatprep.subr.mxu0 0.0
  %2126 = vmatpush1.msra.mxu0 0.0
  %2127 = vmatprep.subr.mxu0 0.0
  %2128 = vmatpush1.msra.mxu0 0.0
  %2129 = vmatprep.subr.mxu0 0.0
  %2130 = vmatpush1.msra.mxu0 0.0
  %2131 = vmatprep.subr.mxu0 0.0
  %2132 = vmatpush1.msra.mxu0 0.0
  %2133 = vmatprep.subr.mxu0 0.0
  %2134 = vmatpush1.msra.mxu0 0.0
  %2135 = vmatprep.subr.mxu0 0.0
  %2136 = vmatpush1.msra.mxu0 0.0
  %2137 = vmatprep.subr.mxu0 0.0
  %2138 = vmatpush1.msra.mxu0 0.0
  %2139 = vmatprep.subr.mxu0 0.0
  %2140 = vmatpush1.msra.mxu0 0.0
  %2141 = vmatprep.subr.mxu0 0.0
  %2142 = vmatpush1.msra.mxu0 0.0
  %2143 = vmatprep.subr.mxu0 0.0
  %2144 = vmatpush1.msra.mxu0 0.0
  %2145 = vmatprep.subr.mxu0 0.0
  %2146 = vmatpush1.msra.mxu0 0.0
  %2147 = vmatprep.subr.mxu0 0.0
  %2148 = vmatpush1.msra.mxu0 0.0
  %2149 = vmatprep.subr.mxu0 0.0
  %2150 = vmatpush1.msra.mxu0 0.0
  %2151 = vmatprep.subr.mxu0 0.0
  %2152 = vmatpush1.msra.mxu0 0.0
  %2153 = vmatprep.subr.mxu0 0.0
  %2154 = vmatpush1.msra.mxu0 0.0
  %2155 = vmatprep.subr.mxu0 0.0
  %2156 = vmatpush1.msra.mxu0 0.0
  %2157 = vmatprep.subr.mxu0 0.0
  %2158 = vmatpush1.msra.mxu0 0.0
  %2159 = vmatprep.subr.mxu0 0.0
  %2160 = vmatpush1.msra.mxu0 0.0
  %2161 = vmatprep.subr.mxu0 0.0
  %2162 = vmatpush1.msra.mxu0 0.0
  %2163 = vmatprep.subr.mxu0 0.0
  %2164 = vmatpush1.msra.mxu0 0.0
  %2165 = vmatprep.subr.mxu0 0.0
  %2166 = vmatpush1.msra.mxu0 0.0
  %2167 = vmatprep.subr.mxu0 0.0
  %2168 = vmatpush1.msra.mxu0 0.0
  %2169 = vmatprep.subr.mxu0 0.0
  %2170 = vmatpush1.msra.mxu0 0.0
  %2171 = vmatprep.subr.mxu0 0.0
  %2172 = vmatpush1.msra.mxu0 0.0
  %2173 = vmatprep.subr.mxu0 0.0
  %2174 = vmatpush1.msra.mxu0 0.0
  %2175 = vmatprep.subr.mxu0 0.0
  %2176 = vmatpush1.msra.mxu0 0.0
  %2177 = vmatprep.subr.mxu0 0.0
  %2178 = vmatpush1.msra.mxu0 0.0
  %2179 = vmatprep.subr.mxu0 0.0
  %2180 = vmatpush1.msra.mxu0 0.0
  %2181 = vmatprep.subr.mxu0 0.0
  %2182 = vmatpush1.msra.mxu0 0.0
  %2183 = vmatprep.mubr.f32.mxu0 0.0
  %2184 = vmatmul.mubr.f32.gmra.mrb[0].mxu0 %v2046
  %v2185 = vpop.f32.mrb[0].mxu0
  %v2186 = vadd.f32 0.0, %v2185
  %v2187 = vpop.f32.mrb[0].mxu0
  %v2188 = vadd.f32 0.0, %v2187
  %2189 = vdwg.mxu0
  %2190 = vmatprep.subr.mxu0 %v1165
  %2191 = vmatpush1.msra.mxu0 %v1164
  %2192 = vmatprep.subr.mxu0 %v1172
  %2193 = vmatpush1.msra.mxu0 %v1171
  %2194 = vmatprep.subr.mxu0 0.0
  %2195 = vmatpush1.msra.mxu0 0.0
  %2196 = vmatprep.subr.mxu0 0.0
  %2197 = vmatpush1.msra.mxu0 0.0
  %2198 = vmatprep.subr.mxu0 0.0
  %2199 = vmatpush1.msra.mxu0 0.0
  %2200 = vmatprep.subr.mxu0 0.0
  %2201 = vmatpush1.msra.mxu0 0.0
  %2202 = vmatprep.subr.mxu0 0.0
  %2203 = vmatpush1.msra.mxu0 0.0
  %2204 = vmatprep.subr.mxu0 0.0
  %2205 = vmatpush1.msra.mxu0 0.0
  %2206 = vmatprep.subr.mxu0 0.0
  %2207 = vmatpush1.msra.mxu0 0.0
  %2208 = vmatprep.subr.mxu0 0.0
  %2209 = vmatpush1.msra.mxu0 0.0
  %2210 = vmatprep.subr.mxu0 0.0
  %2211 = vmatpush1.msra.mxu0 0.0
  %2212 = vmatprep.subr.mxu0 0.0
  %2213 = vmatpush1.msra.mxu0 0.0
  %2214 = vmatprep.subr.mxu0 0.0
  %2215 = vmatpush1.msra.mxu0 0.0
  %2216 = vmatprep.subr.mxu0 0.0
  %2217 = vmatpush1.msra.mxu0 0.0
  %2218 = vmatprep.subr.mxu0 0.0
  %2219 = vmatpush1.msra.mxu0 0.0
  %2220 = vmatprep.subr.mxu0 0.0
  %2221 = vmatpush1.msra.mxu0 0.0
  %2222 = vmatprep.subr.mxu0 0.0
  %2223 = vmatpush1.msra.mxu0 0.0
  %2224 = vmatprep.subr.mxu0 0.0
  %2225 = vmatpush1.msra.mxu0 0.0
  %2226 = vmatprep.subr.mxu0 0.0
  %2227 = vmatpush1.msra.mxu0 0.0
  %2228 = vmatprep.subr.mxu0 0.0
  %2229 = vmatpush1.msra.mxu0 0.0
  %2230 = vmatprep.subr.mxu0 0.0
  %2231 = vmatpush1.msra.mxu0 0.0
  %2232 = vmatprep.subr.mxu0 0.0
  %2233 = vmatpush1.msra.mxu0 0.0
  %2234 = vmatprep.subr.mxu0 0.0
  %2235 = vmatpush1.msra.mxu0 0.0
  %2236 = vmatprep.subr.mxu0 0.0
  %2237 = vmatpush1.msra.mxu0 0.0
  %2238 = vmatprep.subr.mxu0 0.0
  %2239 = vmatpush1.msra.mxu0 0.0
  %2240 = vmatprep.subr.mxu0 0.0
  %2241 = vmatpush1.msra.mxu0 0.0
  %2242 = vmatprep.subr.mxu0 0.0
  %2243 = vmatpush1.msra.mxu0 0.0
  %2244 = vmatprep.subr.mxu0 0.0
  %2245 = vmatpush1.msra.mxu0 0.0
  %2246 = vmatprep.subr.mxu0 0.0
  %2247 = vmatpush1.msra.mxu0 0.0
  %2248 = vmatprep.subr.mxu0 0.0
  %2249 = vmatpush1.msra.mxu0 0.0
  %2250 = vmatprep.subr.mxu0 0.0
  %2251 = vmatpush1.msra.mxu0 0.0
  %2252 = vmatprep.subr.mxu0 0.0
  %2253 = vmatpush1.msra.mxu0 0.0
  %2254 = vmatprep.mubr.f32.mxu0 0.0
  %2255 = vmatmul.mubr.f32.gmra.mrb[0].mxu0 %v2046
  %v2256 = vpop.f32.mrb[0].mxu0
  %v2257 = vadd.f32 0.0, %v2256
  %v2258 = vpop.f32.mrb[0].mxu0
  %v2259 = vadd.f32 0.0, %v2258
  %2260 = vdwg.mxu0
  %2261 = vmatprep.subr.mxu0 0.0
  %2262 = vmatpush1.msra.mxu0 %v1166
  %2263 = vmatprep.subr.mxu0 0.0
  %2264 = vmatpush1.msra.mxu0 %v1173
  %2265 = vmatprep.subr.mxu0 0.0
  %2266 = vmatpush1.msra.mxu0 0.0
  %2267 = vmatprep.subr.mxu0 0.0
  %2268 = vmatpush1.msra.mxu0 0.0
  %2269 = vmatprep.subr.mxu0 0.0
  %2270 = vmatpush1.msra.mxu0 0.0
  %2271 = vmatprep.subr.mxu0 0.0
  %2272 = vmatpush1.msra.mxu0 0.0
  %2273 = vmatprep.subr.mxu0 0.0
  %2274 = vmatpush1.msra.mxu0 0.0
  %2275 = vmatprep.subr.mxu0 0.0
  %2276 = vmatpush1.msra.mxu0 0.0
  %2277 = vmatprep.subr.mxu0 0.0
  %2278 = vmatpush1.msra.mxu0 0.0
  %2279 = vmatprep.subr.mxu0 0.0
  %2280 = vmatpush1.msra.mxu0 0.0
  %2281 = vmatprep.subr.mxu0 0.0
  %2282 = vmatpush1.msra.mxu0 0.0
  %2283 = vmatprep.subr.mxu0 0.0
  %2284 = vmatpush1.msra.mxu0 0.0
  %2285 = vmatprep.subr.mxu0 0.0
  %2286 = vmatpush1.msra.mxu0 0.0
  %2287 = vmatprep.subr.mxu0 0.0
  %2288 = vmatpush1.msra.mxu0 0.0
  %2289 = vmatprep.subr.mxu0 0.0
  %2290 = vmatpush1.msra.mxu0 0.0
  %2291 = vmatprep.subr.mxu0 0.0
  %2292 = vmatpush1.msra.mxu0 0.0
  %2293 = vmatprep.subr.mxu0 0.0
  %2294 = vmatpush1.msra.mxu0 0.0
  %2295 = vmatprep.subr.mxu0 0.0
  %2296 = vmatpush1.msra.mxu0 0.0
  %2297 = vmatprep.subr.mxu0 0.0
  %2298 = vmatpush1.msra.mxu0 0.0
  %2299 = vmatprep.subr.mxu0 0.0
  %2300 = vmatpush1.msra.mxu0 0.0
  %2301 = vmatprep.subr.mxu0 0.0
  %2302 = vmatpush1.msra.mxu0 0.0
  %2303 = vmatprep.subr.mxu0 0.0
  %2304 = vmatpush1.msra.mxu0 0.0
  %2305 = vmatprep.subr.mxu0 0.0
  %2306 = vmatpush1.msra.mxu0 0.0
  %2307 = vmatprep.subr.mxu0 0.0
  %2308 = vmatpush1.msra.mxu0 0.0
  %2309 = vmatprep.subr.mxu0 0.0
  %2310 = vmatpush1.msra.mxu0 0.0
  %2311 = vmatprep.subr.mxu0 0.0
  %2312 = vmatpush1.msra.mxu0 0.0
  %2313 = vmatprep.subr.mxu0 0.0
  %2314 = vmatpush1.msra.mxu0 0.0
  %2315 = vmatprep.subr.mxu0 0.0
  %2316 = vmatpush1.msra.mxu0 0.0
  %2317 = vmatprep.subr.mxu0 0.0
  %2318 = vmatpush1.msra.mxu0 0.0
  %2319 = vmatprep.subr.mxu0 0.0
  %2320 = vmatpush1.msra.mxu0 0.0
  %2321 = vmatprep.subr.mxu0 0.0
  %2322 = vmatpush1.msra.mxu0 0.0
  %2323 = vmatprep.subr.mxu0 0.0
  %2324 = vmatpush1.msra.mxu0 0.0
  %2325 = vmatprep.mubr.f32.mxu0 0.0
  %2326 = vmatmul.mubr.f32.gmra.mrb[0].mxu0 %v2046
  %v2327 = vpop.f32.mrb[0].mxu0
  %v2328 = vadd.f32 0.0, %v2327
  %v2329 = vpop.f32.mrb[0].mxu0
  %2330 = vdwg.mxu0
  %v2331 = vmul.f32 %v1257, %v447
  %v2332 = vmul.f32 %v1259, %v449
  %v2333 = vmul.f32 %v1328, %v518
  %v2334 = vmul.f32 %v1330, %v520
  %v2335 = vmul.f32 %v1399, %v589
  %v2336 = vmul.f32 %v1401, %v591
  %v2337 = vmul.f32 %v1470, %v660
  %v2338 = vmul.f32 %v1543, %v662
  %v2339 = vmul.f32 %v1545, %v731
  %v2340 = vmul.f32 %v1614, %v733
  %v2341 = vmul.f32 %v1616, %v802
  %v2342 = vmul.f32 %v1685, %v804
  %v2343 = vmul.f32 %v1687, %v873
  %v2344 = vmul.f32 %v1756, %v875
  %v2345 = vadd.f32 %v2331, %v2338
  %v2346 = vadd.f32 %v2332, %v2339
  %v2347 = vadd.f32 %v2333, %v2340
  %v2348 = vadd.f32 %v2334, %v2341
  %v2349 = vadd.f32 %v2335, %v2342
  %v2350 = vadd.f32 %v2336, %v2343
  %v2351 = vadd.f32 %v2337, %v2344
  %v2352 = vmul.f32 %v1829, %v944
  %v2353 = vmul.f32 %v1831, %v946
  %v2354 = vmul.f32 %v1900, %v1015
  %v2355 = vmul.f32 %v1902, %v1017
  %v2356 = vmul.f32 %v1971, %v1086
  %v2357 = vmul.f32 %v1973, %v1088
  %v2358 = vmul.f32 %v2042, %v1157
  %v2359 = vadd.f32 %v2345, %v2352
  %v2360 = vadd.f32 %v2346, %v2353
  %v2361 = vadd.f32 %v2347, %v2354
  %v2362 = vadd.f32 %v2348, %v2355
  %v2363 = vadd.f32 %v2349, %v2356
  %v2364 = vadd.f32 %v2350, %v2357
  %v2365 = vadd.f32 %v2351, %v2358
  %v2366 = vadd.f32 %v2359, %v2115
  %v2367 = vadd.f32 %v2360, %v2117
  %v2368 = vadd.f32 %v2361, %v2186
  %v2369 = vadd.f32 %v2362, %v2188
  %v2370 = vadd.f32 %v2363, %v2257
  %v2371 = vadd.f32 %v2364, %v2259
  %v2372 = vadd.f32 %v2365, %v2328
  %2373 = vst [vmem:[%s4] sm:$0xff] %v2366
  %2374 = vst [vmem:[%s4 + $0x8] sm:$0xff] %v2367
  %2375 = vst [vmem:[%s4 + $0x10] sm:$0xff] %v2368
  %2376 = vst [vmem:[%s4 + $0x18] sm:$0xff] %v2369
  %2377 = vst [vmem:[%s4 + $0x20] sm:$0xff] %v2370
  %2378 = vst [vmem:[%s4 + $0x28] sm:$0xff] %v2371
  %2379 = vst [vmem:[%s4 + $0x30] sm:$0xff] %v2372
  %v2381 = vsel %vm1186, %v1178, 0
  %2383 = vmatprep.subr.mxu0 %v1161
  %2384 = vmatpush1.msra.mxu0 %v1160
  %2385 = vmatprep.subr.mxu0 %v1168
  %2386 = vmatpush1.msra.mxu0 %v1167
  %2387 = vmatprep.subr.mxu0 0.0
  %2388 = vmatpush1.msra.mxu0 0.0
  %2389 = vmatprep.subr.mxu0 0.0
  %2390 = vmatpush1.msra.mxu0 0.0
  %2391 = vmatprep.subr.mxu0 0.0
  %2392 = vmatpush1.msra.mxu0 0.0
  %2393 = vmatprep.subr.mxu0 0.0
  %2394 = vmatpush1.msra.mxu0 0.0
  %2395 = vmatprep.subr.mxu0 0.0
  %2396 = vmatpush1.msra.mxu0 0.0
  %2397 = vmatprep.subr.mxu0 0.0
  %2398 = vmatpush1.msra.mxu0 0.0
  %2399 = vmatprep.subr.mxu0 0.0
  %2400 = vmatpush1.msra.mxu0 0.0
  %2401 = vmatprep.subr.mxu0 0.0
  %2402 = vmatpush1.msra.mxu0 0.0
  %2403 = vmatprep.subr.mxu0 0.0
  %2404 = vmatpush1.msra.mxu0 0.0
  %2405 = vmatprep.subr.mxu0 0.0
  %2406 = vmatpush1.msra.mxu0 0.0
  %2407 = vmatprep.subr.mxu0 0.0
  %2408 = vmatpush1.msra.mxu0 0.0
  %2409 = vmatprep.subr.mxu0 0.0
  %2410 = vmatpush1.msra.mxu0 0.0
  %2411 = vmatprep.subr.mxu0 0.0
  %2412 = vmatpush1.msra.mxu0 0.0
  %2413 = vmatprep.subr.mxu0 0.0
  %2414 = vmatpush1.msra.mxu0 0.0
  %2415 = vmatprep.subr.mxu0 0.0
  %2416 = vmatpush1.msra.mxu0 0.0
  %2417 = vmatprep.subr.mxu0 0.0
  %2418 = vmatpush1.msra.mxu0 0.0
  %2419 = vmatprep.subr.mxu0 0.0
  %2420 = vmatpush1.msra.mxu0 0.0
  %2421 = vmatprep.subr.mxu0 0.0
  %2422 = vmatpush1.msra.mxu0 0.0
  %2423 = vmatprep.subr.mxu0 0.0
  %2424 = vmatpush1.msra.mxu0 0.0
  %2425 = vmatprep.subr.mxu0 0.0
  %2426 = vmatpush1.msra.mxu0 0.0
  %2427 = vmatprep.subr.mxu0 0.0
  %2428 = vmatpush1.msra.mxu0 0.0
  %2429 = vmatprep.subr.mxu0 0.0
  %2430 = vmatpush1.msra.mxu0 0.0
  %2431 = vmatprep.subr.mxu0 0.0
  %2432 = vmatpush1.msra.mxu0 0.0
  %2433 = vmatprep.subr.mxu0 0.0
  %2434 = vmatpush1.msra.mxu0 0.0
  %2435 = vmatprep.subr.mxu0 0.0
  %2436 = vmatpush1.msra.mxu0 0.0
  %2437 = vmatprep.subr.mxu0 0.0
  %2438 = vmatpush1.msra.mxu0 0.0
  %2439 = vmatprep.subr.mxu0 0.0
  %2440 = vmatpush1.msra.mxu0 0.0
  %2441 = vmatprep.subr.mxu0 0.0
  %2442 = vmatpush1.msra.mxu0 0.0
  %2443 = vmatprep.subr.mxu0 0.0
  %2444 = vmatpush1.msra.mxu0 0.0
  %2445 = vmatprep.subr.mxu0 0.0
  %2446 = vmatpush1.msra.mxu0 0.0
  %2447 = vmatprep.mubr.f32.mxu0 0.0
  %2448 = vmatmul.mubr.f32.gmra.mrb[0].mxu0 %v2381
  %v2449 = vpop.f32.mrb[0].mxu0
  %v2450 = vadd.f32 0.0, %v2449
  %v2451 = vpop.f32.mrb[0].mxu0
  %v2452 = vadd.f32 0.0, %v2451
  %2453 = vdwg.mxu0
  %2454 = vmatprep.subr.mxu0 %v1163
  %2455 = vmatpush1.msra.mxu0 %v1162
  %2456 = vmatprep.subr.mxu0 %v1170
  %2457 = vmatpush1.msra.mxu0 %v1169
  %2458 = vmatprep.subr.mxu0 0.0
  %2459 = vmatpush1.msra.mxu0 0.0
  %2460 = vmatprep.subr.mxu0 0.0
  %2461 = vmatpush1.msra.mxu0 0.0
  %2462 = vmatprep.subr.mxu0 0.0
  %2463 = vmatpush1.msra.mxu0 0.0
  %2464 = vmatprep.subr.mxu0 0.0
  %2465 = vmatpush1.msra.mxu0 0.0
  %2466 = vmatprep.subr.mxu0 0.0
  %2467 = vmatpush1.msra.mxu0 0.0
  %2468 = vmatprep.subr.mxu0 0.0
  %2469 = vmatpush1.msra.mxu0 0.0
  %2470 = vmatprep.subr.mxu0 0.0
  %2471 = vmatpush1.msra.mxu0 0.0
  %2472 = vmatprep.subr.mxu0 0.0
  %2473 = vmatpush1.msra.mxu0 0.0
  %2474 = vmatprep.subr.mxu0 0.0
  %2475 = vmatpush1.msra.mxu0 0.0
  %2476 = vmatprep.subr.mxu0 0.0
  %2477 = vmatpush1.msra.mxu0 0.0
  %2478 = vmatprep.subr.mxu0 0.0
  %2479 = vmatpush1.msra.mxu0 0.0
  %2480 = vmatprep.subr.mxu0 0.0
  %2481 = vmatpush1.msra.mxu0 0.0
  %2482 = vmatprep.subr.mxu0 0.0
  %2483 = vmatpush1.msra.mxu0 0.0
  %2484 = vmatprep.subr.mxu0 0.0
  %2485 = vmatpush1.msra.mxu0 0.0
  %2486 = vmatprep.subr.mxu0 0.0
  %2487 = vmatpush1.msra.mxu0 0.0
  %2488 = vmatprep.subr.mxu0 0.0
  %2489 = vmatpush1.msra.mxu0 0.0
  %2490 = vmatprep.subr.mxu0 0.0
  %2491 = vmatpush1.msra.mxu0 0.0
  %2492 = vmatprep.subr.mxu0 0.0
  %2493 = vmatpush1.msra.mxu0 0.0
  %2494 = vmatprep.subr.mxu0 0.0
  %2495 = vmatpush1.msra.mxu0 0.0
  %2496 = vmatprep.subr.mxu0 0.0
  %2497 = vmatpush1.msra.mxu0 0.0
  %2498 = vmatprep.subr.mxu0 0.0
  %2499 = vmatpush1.msra.mxu0 0.0
  %2500 = vmatprep.subr.mxu0 0.0
  %2501 = vmatpush1.msra.mxu0 0.0
  %2502 = vmatprep.subr.mxu0 0.0
  %2503 = vmatpush1.msra.mxu0 0.0
  %2504 = vmatprep.subr.mxu0 0.0
  %2505 = vmatpush1.msra.mxu0 0.0
  %2506 = vmatprep.subr.mxu0 0.0
  %2507 = vmatpush1.msra.mxu0 0.0
  %2508 = vmatprep.subr.mxu0 0.0
  %2509 = vmatpush1.msra.mxu0 0.0
  %2510 = vmatprep.subr.mxu0 0.0
  %2511 = vmatpush1.msra.mxu0 0.0
  %2512 = vmatprep.subr.mxu0 0.0
  %2513 = vmatpush1.msra.mxu0 0.0
  %2514 = vmatprep.subr.mxu0 0.0
  %2515 = vmatpush1.msra.mxu0 0.0
  %2516 = vmatprep.subr.mxu0 0.0
  %2517 = vmatpush1.msra.mxu0 0.0
  %2518 = vmatprep.mubr.f32.mxu0 0.0
  %2519 = vmatmul.mubr.f32.gmra.mrb[0].mxu0 %v2381
  %v2520 = vpop.f32.mrb[0].mxu0
  %v2521 = vadd.f32 0.0, %v2520
  %v2522 = vpop.f32.mrb[0].mxu0
  %v2523 = vadd.f32 0.0, %v2522
  %2524 = vdwg.mxu0
  %2525 = vmatprep.subr.mxu0 %v1165
  %2526 = vmatpush1.msra.mxu0 %v1164
  %2527 = vmatprep.subr.mxu0 %v1172
  %2528 = vmatpush1.msra.mxu0 %v1171
  %2529 = vmatprep.subr.mxu0 0.0
  %2530 = vmatpush1.msra.mxu0 0.0
  %2531 = vmatprep.subr.mxu0 0.0
  %2532 = vmatpush1.msra.mxu0 0.0
  %2533 = vmatprep.subr.mxu0 0.0
  %2534 = vmatpush1.msra.mxu0 0.0
  %2535 = vmatprep.subr.mxu0 0.0
  %2536 = vmatpush1.msra.mxu0 0.0
  %2537 = vmatprep.subr.mxu0 0.0
  %2538 = vmatpush1.msra.mxu0 0.0
  %2539 = vmatprep.subr.mxu0 0.0
  %2540 = vmatpush1.msra.mxu0 0.0
  %2541 = vmatprep.subr.mxu0 0.0
  %2542 = vmatpush1.msra.mxu0 0.0
  %2543 = vmatprep.subr.mxu0 0.0
  %2544 = vmatpush1.msra.mxu0 0.0
  %2545 = vmatprep.subr.mxu0 0.0
  %2546 = vmatpush1.msra.mxu0 0.0
  %2547 = vmatprep.subr.mxu0 0.0
  %2548 = vmatpush1.msra.mxu0 0.0
  %2549 = vmatprep.subr.mxu0 0.0
  %2550 = vmatpush1.msra.mxu0 0.0
  %2551 = vmatprep.subr.mxu0 0.0
  %2552 = vmatpush1.msra.mxu0 0.0
  %2553 = vmatprep.subr.mxu0 0.0
  %2554 = vmatpush1.msra.mxu0 0.0
  %2555 = vmatprep.subr.mxu0 0.0
  %2556 = vmatpush1.msra.mxu0 0.0
  %2557 = vmatprep.subr.mxu0 0.0
  %2558 = vmatpush1.msra.mxu0 0.0
  %2559 = vmatprep.subr.mxu0 0.0
  %2560 = vmatpush1.msra.mxu0 0.0
  %2561 = vmatprep.subr.mxu0 0.0
  %2562 = vmatpush1.msra.mxu0 0.0
  %2563 = vmatprep.subr.mxu0 0.0
  %2564 = vmatpush1.msra.mxu0 0.0
  %2565 = vmatprep.subr.mxu0 0.0
  %2566 = vmatpush1.msra.mxu0 0.0
  %2567 = vmatprep.subr.mxu0 0.0
  %2568 = vmatpush1.msra.mxu0 0.0
  %2569 = vmatprep.subr.mxu0 0.0
  %2570 = vmatpush1.msra.mxu0 0.0
  %2571 = vmatprep.subr.mxu0 0.0
  %2572 = vmatpush1.msra.mxu0 0.0
  %2573 = vmatprep.subr.mxu0 0.0
  %2574 = vmatpush1.msra.mxu0 0.0
  %2575 = vmatprep.subr.mxu0 0.0
  %2576 = vmatpush1.msra.mxu0 0.0
  %2577 = vmatprep.subr.mxu0 0.0
  %2578 = vmatpush1.msra.mxu0 0.0
  %2579 = vmatprep.subr.mxu0 0.0
  %2580 = vmatpush1.msra.mxu0 0.0
  %2581 = vmatprep.subr.mxu0 0.0
  %2582 = vmatpush1.msra.mxu0 0.0
  %2583 = vmatprep.subr.mxu0 0.0
  %2584 = vmatpush1.msra.mxu0 0.0
  %2585 = vmatprep.subr.mxu0 0.0
  %2586 = vmatpush1.msra.mxu0 0.0
  %2587 = vmatprep.subr.mxu0 0.0
  %2588 = vmatpush1.msra.mxu0 0.0
  %2589 = vmatprep.mubr.f32.mxu0 0.0
  %2590 = vmatmul.mubr.f32.gmra.mrb[0].mxu0 %v2381
  %v2591 = vpop.f32.mrb[0].mxu0
  %v2592 = vadd.f32 0.0, %v2591
  %v2593 = vpop.f32.mrb[0].mxu0
  %v2594 = vadd.f32 0.0, %v2593
  %2595 = vdwg.mxu0
  %2596 = vmatprep.subr.mxu0 0.0
  %2597 = vmatpush1.msra.mxu0 %v1166
  %2598 = vmatprep.subr.mxu0 0.0
  %2599 = vmatpush1.msra.mxu0 %v1173
  %2600 = vmatprep.subr.mxu0 0.0
  %2601 = vmatpush1.msra.mxu0 0.0
  %2602 = vmatprep.subr.mxu0 0.0
  %2603 = vmatpush1.msra.mxu0 0.0
  %2604 = vmatprep.subr.mxu0 0.0
  %2605 = vmatpush1.msra.mxu0 0.0
  %2606 = vmatprep.subr.mxu0 0.0
  %2607 = vmatpush1.msra.mxu0 0.0
  %2608 = vmatprep.subr.mxu0 0.0
  %2609 = vmatpush1.msra.mxu0 0.0
  %2610 = vmatprep.subr.mxu0 0.0
  %2611 = vmatpush1.msra.mxu0 0.0
  %2612 = vmatprep.subr.mxu0 0.0
  %2613 = vmatpush1.msra.mxu0 0.0
  %2614 = vmatprep.subr.mxu0 0.0
  %2615 = vmatpush1.msra.mxu0 0.0
  %2616 = vmatprep.subr.mxu0 0.0
  %2617 = vmatpush1.msra.mxu0 0.0
  %2618 = vmatprep.subr.mxu0 0.0
  %2619 = vmatpush1.msra.mxu0 0.0
  %2620 = vmatprep.subr.mxu0 0.0
  %2621 = vmatpush1.msra.mxu0 0.0
  %2622 = vmatprep.subr.mxu0 0.0
  %2623 = vmatpush1.msra.mxu0 0.0
  %2624 = vmatprep.subr.mxu0 0.0
  %2625 = vmatpush1.msra.mxu0 0.0
  %2626 = vmatprep.subr.mxu0 0.0
  %2627 = vmatpush1.msra.mxu0 0.0
  %2628 = vmatprep.subr.mxu0 0.0
  %2629 = vmatpush1.msra.mxu0 0.0
  %2630 = vmatprep.subr.mxu0 0.0
  %2631 = vmatpush1.msra.mxu0 0.0
  %2632 = vmatprep.subr.mxu0 0.0
  %2633 = vmatpush1.msra.mxu0 0.0
  %2634 = vmatprep.subr.mxu0 0.0
  %2635 = vmatpush1.msra.mxu0 0.0
  %2636 = vmatprep.subr.mxu0 0.0
  %2637 = vmatpush1.msra.mxu0 0.0
  %2638 = vmatprep.subr.mxu0 0.0
  %2639 = vmatpush1.msra.mxu0 0.0
  %2640 = vmatprep.subr.mxu0 0.0
  %2641 = vmatpush1.msra.mxu0 0.0
  %2642 = vmatprep.subr.mxu0 0.0
  %2643 = vmatpush1.msra.mxu0 0.0
  %2644 = vmatprep.subr.mxu0 0.0
  %2645 = vmatpush1.msra.mxu0 0.0
  %2646 = vmatprep.subr.mxu0 0.0
  %2647 = vmatpush1.msra.mxu0 0.0
  %2648 = vmatprep.subr.mxu0 0.0
  %2649 = vmatpush1.msra.mxu0 0.0
  %2650 = vmatprep.subr.mxu0 0.0
  %2651 = vmatpush1.msra.mxu0 0.0
  %2652 = vmatprep.subr.mxu0 0.0
  %2653 = vmatpush1.msra.mxu0 0.0
  %2654 = vmatprep.subr.mxu0 0.0
  %2655 = vmatpush1.msra.mxu0 0.0
  %2656 = vmatprep.subr.mxu0 0.0
  %2657 = vmatpush1.msra.mxu0 0.0
  %2658 = vmatprep.subr.mxu0 0.0
  %2659 = vmatpush1.msra.mxu0 0.0
  %2660 = vmatprep.mubr.f32.mxu0 0.0
  %2661 = vmatmul.mubr.f32.gmra.mrb[0].mxu0 %v2381
  %v2662 = vpop.f32.mrb[0].mxu0
  %v2663 = vadd.f32 0.0, %v2662
  %v2664 = vpop.f32.mrb[0].mxu0
  %2665 = vdwg.mxu0
  %v2667 = vsel %vm1186, %v1179, 0
  %2669 = vmatprep.subr.mxu0 %v1161
  %2670 = vmatpush1.msra.mxu0 %v1160
  %2671 = vmatprep.subr.mxu0 %v1168
  %2672 = vmatpush1.msra.mxu0 %v1167
  %2673 = vmatprep.subr.mxu0 0.0
  %2674 = vmatpush1.msra.mxu0 0.0
  %2675 = vmatprep.subr.mxu0 0.0
  %2676 = vmatpush1.msra.mxu0 0.0
  %2677 = vmatprep.subr.mxu0 0.0
  %2678 = vmatpush1.msra.mxu0 0.0
  %2679 = vmatprep.subr.mxu0 0.0
  %2680 = vmatpush1.msra.mxu0 0.0
  %2681 = vmatprep.subr.mxu0 0.0
  %2682 = vmatpush1.msra.mxu0 0.0
  %2683 = vmatprep.subr.mxu0 0.0
  %2684 = vmatpush1.msra.mxu0 0.0
  %2685 = vmatprep.subr.mxu0 0.0
  %2686 = vmatpush1.msra.mxu0 0.0
  %2687 = vmatprep.subr.mxu0 0.0
  %2688 = vmatpush1.msra.mxu0 0.0
  %2689 = vmatprep.subr.mxu0 0.0
  %2690 = vmatpush1.msra.mxu0 0.0
  %2691 = vmatprep.subr.mxu0 0.0
  %2692 = vmatpush1.msra.mxu0 0.0
  %2693 = vmatprep.subr.mxu0 0.0
  %2694 = vmatpush1.msra.mxu0 0.0
  %2695 = vmatprep.subr.mxu0 0.0
  %2696 = vmatpush1.msra.mxu0 0.0
  %2697 = vmatprep.subr.mxu0 0.0
  %2698 = vmatpush1.msra.mxu0 0.0
  %2699 = vmatprep.subr.mxu0 0.0
  %2700 = vmatpush1.msra.mxu0 0.0
  %2701 = vmatprep.subr.mxu0 0.0
  %2702 = vmatpush1.msra.mxu0 0.0
  %2703 = vmatprep.subr.mxu0 0.0
  %2704 = vmatpush1.msra.mxu0 0.0
  %2705 = vmatprep.subr.mxu0 0.0
  %2706 = vmatpush1.msra.mxu0 0.0
  %2707 = vmatprep.subr.mxu0 0.0
  %2708 = vmatpush1.msra.mxu0 0.0
  %2709 = vmatprep.subr.mxu0 0.0
  %2710 = vmatpush1.msra.mxu0 0.0
  %2711 = vmatprep.subr.mxu0 0.0
  %2712 = vmatpush1.msra.mxu0 0.0
  %2713 = vmatprep.subr.mxu0 0.0
  %2714 = vmatpush1.msra.mxu0 0.0
  %2715 = vmatprep.subr.mxu0 0.0
  %2716 = vmatpush1.msra.mxu0 0.0
  %2717 = vmatprep.subr.mxu0 0.0
  %2718 = vmatpush1.msra.mxu0 0.0
  %2719 = vmatprep.subr.mxu0 0.0
  %2720 = vmatpush1.msra.mxu0 0.0
  %2721 = vmatprep.subr.mxu0 0.0
  %2722 = vmatpush1.msra.mxu0 0.0
  %2723 = vmatprep.subr.mxu0 0.0
  %2724 = vmatpush1.msra.mxu0 0.0
  %2725 = vmatprep.subr.mxu0 0.0
  %2726 = vmatpush1.msra.mxu0 0.0
  %2727 = vmatprep.subr.mxu0 0.0
  %2728 = vmatpush1.msra.mxu0 0.0
  %2729 = vmatprep.subr.mxu0 0.0
  %2730 = vmatpush1.msra.mxu0 0.0
  %2731 = vmatprep.subr.mxu0 0.0
  %2732 = vmatpush1.msra.mxu0 0.0
  %2733 = vmatprep.mubr.f32.mxu0 0.0
  %2734 = vmatmul.mubr.f32.gmra.mrb[0].mxu0 %v2667
  %v2735 = vpop.f32.mrb[0].mxu0
  %v2736 = vadd.f32 0.0, %v2735
  %v2737 = vpop.f32.mrb[0].mxu0
  %v2738 = vadd.f32 0.0, %v2737
  %2739 = vdwg.mxu0
  %2740 = vmatprep.subr.mxu0 %v1163
  %2741 = vmatpush1.msra.mxu0 %v1162
  %2742 = vmatprep.subr.mxu0 %v1170
  %2743 = vmatpush1.msra.mxu0 %v1169
  %2744 = vmatprep.subr.mxu0 0.0
  %2745 = vmatpush1.msra.mxu0 0.0
  %2746 = vmatprep.subr.mxu0 0.0
  %2747 = vmatpush1.msra.mxu0 0.0
  %2748 = vmatprep.subr.mxu0 0.0
  %2749 = vmatpush1.msra.mxu0 0.0
  %2750 = vmatprep.subr.mxu0 0.0
  %2751 = vmatpush1.msra.mxu0 0.0
  %2752 = vmatprep.subr.mxu0 0.0
  %2753 = vmatpush1.msra.mxu0 0.0
  %2754 = vmatprep.subr.mxu0 0.0
  %2755 = vmatpush1.msra.mxu0 0.0
  %2756 = vmatprep.subr.mxu0 0.0
  %2757 = vmatpush1.msra.mxu0 0.0
  %2758 = vmatprep.subr.mxu0 0.0
  %2759 = vmatpush1.msra.mxu0 0.0
  %2760 = vmatprep.subr.mxu0 0.0
  %2761 = vmatpush1.msra.mxu0 0.0
  %2762 = vmatprep.subr.mxu0 0.0
  %2763 = vmatpush1.msra.mxu0 0.0
  %2764 = vmatprep.subr.mxu0 0.0
  %2765 = vmatpush1.msra.mxu0 0.0
  %2766 = vmatprep.subr.mxu0 0.0
  %2767 = vmatpush1.msra.mxu0 0.0
  %2768 = vmatprep.subr.mxu0 0.0
  %2769 = vmatpush1.msra.mxu0 0.0
  %2770 = vmatprep.subr.mxu0 0.0
  %2771 = vmatpush1.msra.mxu0 0.0
  %2772 = vmatprep.subr.mxu0 0.0
  %2773 = vmatpush1.msra.mxu0 0.0
  %2774 = vmatprep.subr.mxu0 0.0
  %2775 = vmatpush1.msra.mxu0 0.0
  %2776 = vmatprep.subr.mxu0 0.0
  %2777 = vmatpush1.msra.mxu0 0.0
  %2778 = vmatprep.subr.mxu0 0.0
  %2779 = vmatpush1.msra.mxu0 0.0
  %2780 = vmatprep.subr.mxu0 0.0
  %2781 = vmatpush1.msra.mxu0 0.0
  %2782 = vmatprep.subr.mxu0 0.0
  %2783 = vmatpush1.msra.mxu0 0.0
  %2784 = vmatprep.subr.mxu0 0.0
  %2785 = vmatpush1.msra.mxu0 0.0
  %2786 = vmatprep.subr.mxu0 0.0
  %2787 = vmatpush1.msra.mxu0 0.0
  %2788 = vmatprep.subr.mxu0 0.0
  %2789 = vmatpush1.msra.mxu0 0.0
  %2790 = vmatprep.subr.mxu0 0.0
  %2791 = vmatpush1.msra.mxu0 0.0
  %2792 = vmatprep.subr.mxu0 0.0
  %2793 = vmatpush1.msra.mxu0 0.0
  %2794 = vmatprep.subr.mxu0 0.0
  %2795 = vmatpush1.msra.mxu0 0.0
  %2796 = vmatprep.subr.mxu0 0.0
  %2797 = vmatpush1.msra.mxu0 0.0
  %2798 = vmatprep.subr.mxu0 0.0
  %2799 = vmatpush1.msra.mxu0 0.0
  %2800 = vmatprep.subr.mxu0 0.0
  %2801 = vmatpush1.msra.mxu0 0.0
  %2802 = vmatprep.subr.mxu0 0.0
  %2803 = vmatpush1.msra.mxu0 0.0
  %2804 = vmatprep.mubr.f32.mxu0 0.0
  %2805 = vmatmul.mubr.f32.gmra.mrb[0].mxu0 %v2667
  %v2806 = vpop.f32.mrb[0].mxu0
  %v2807 = vadd.f32 0.0, %v2806
  %v2808 = vpop.f32.mrb[0].mxu0
  %v2809 = vadd.f32 0.0, %v2808
  %2810 = vdwg.mxu0
  %2811 = vmatprep.subr.mxu0 %v1165
  %2812 = vmatpush1.msra.mxu0 %v1164
  %2813 = vmatprep.subr.mxu0 %v1172
  %2814 = vmatpush1.msra.mxu0 %v1171
  %2815 = vmatprep.subr.mxu0 0.0
  %2816 = vmatpush1.msra.mxu0 0.0
  %2817 = vmatprep.subr.mxu0 0.0
  %2818 = vmatpush1.msra.mxu0 0.0
  %2819 = vmatprep.subr.mxu0 0.0
  %2820 = vmatpush1.msra.mxu0 0.0
  %2821 = vmatprep.subr.mxu0 0.0
  %2822 = vmatpush1.msra.mxu0 0.0
  %2823 = vmatprep.subr.mxu0 0.0
  %2824 = vmatpush1.msra.mxu0 0.0
  %2825 = vmatprep.subr.mxu0 0.0
  %2826 = vmatpush1.msra.mxu0 0.0
  %2827 = vmatprep.subr.mxu0 0.0
  %2828 = vmatpush1.msra.mxu0 0.0
  %2829 = vmatprep.subr.mxu0 0.0
  %2830 = vmatpush1.msra.mxu0 0.0
  %2831 = vmatprep.subr.mxu0 0.0
  %2832 = vmatpush1.msra.mxu0 0.0
  %2833 = vmatprep.subr.mxu0 0.0
  %2834 = vmatpush1.msra.mxu0 0.0
  %2835 = vmatprep.subr.mxu0 0.0
  %2836 = vmatpush1.msra.mxu0 0.0
  %2837 = vmatprep.subr.mxu0 0.0
  %2838 = vmatpush1.msra.mxu0 0.0
  %2839 = vmatprep.subr.mxu0 0.0
  %2840 = vmatpush1.msra.mxu0 0.0
  %2841 = vmatprep.subr.mxu0 0.0
  %2842 = vmatpush1.msra.mxu0 0.0
  %2843 = vmatprep.subr.mxu0 0.0
  %2844 = vmatpush1.msra.mxu0 0.0
  %2845 = vmatprep.subr.mxu0 0.0
  %2846 = vmatpush1.msra.mxu0 0.0
  %2847 = vmatprep.subr.mxu0 0.0
  %2848 = vmatpush1.msra.mxu0 0.0
  %2849 = vmatprep.subr.mxu0 0.0
  %2850 = vmatpush1.msra.mxu0 0.0
  %2851 = vmatprep.subr.mxu0 0.0
  %2852 = vmatpush1.msra.mxu0 0.0
  %2853 = vmatprep.subr.mxu0 0.0
  %2854 = vmatpush1.msra.mxu0 0.0
  %2855 = vmatprep.subr.mxu0 0.0
  %2856 = vmatpush1.msra.mxu0 0.0
  %2857 = vmatprep.subr.mxu0 0.0
  %2858 = vmatpush1.msra.mxu0 0.0
  %2859 = vmatprep.subr.mxu0 0.0
  %2860 = vmatpush1.msra.mxu0 0.0
  %2861 = vmatprep.subr.mxu0 0.0
  %2862 = vmatpush1.msra.mxu0 0.0
  %2863 = vmatprep.subr.mxu0 0.0
  %2864 = vmatpush1.msra.mxu0 0.0
  %2865 = vmatprep.subr.mxu0 0.0
  %2866 = vmatpush1.msra.mxu0 0.0
  %2867 = vmatprep.subr.mxu0 0.0
  %2868 = vmatpush1.msra.mxu0 0.0
  %2869 = vmatprep.subr.mxu0 0.0
  %2870 = vmatpush1.msra.mxu0 0.0
  %2871 = vmatprep.subr.mxu0 0.0
  %2872 = vmatpush1.msra.mxu0 0.0
  %2873 = vmatprep.subr.mxu0 0.0
  %2874 = vmatpush1.msra.mxu0 0.0
  %2875 = vmatprep.mubr.f32.mxu0 0.0
  %2876 = vmatmul.mubr.f32.gmra.mrb[0].mxu0 %v2667
  %v2877 = vpop.f32.mrb[0].mxu0
  %v2878 = vadd.f32 0.0, %v2877
  %v2879 = vpop.f32.mrb[0].mxu0
  %v2880 = vadd.f32 0.0, %v2879
  %2881 = vdwg.mxu0
  %2882 = vmatprep.subr.mxu0 0.0
  %2883 = vmatpush1.msra.mxu0 %v1166
  %2884 = vmatprep.subr.mxu0 0.0
  %2885 = vmatpush1.msra.mxu0 %v1173
  %2886 = vmatprep.subr.mxu0 0.0
  %2887 = vmatpush1.msra.mxu0 0.0
  %2888 = vmatprep.subr.mxu0 0.0
  %2889 = vmatpush1.msra.mxu0 0.0
  %2890 = vmatprep.subr.mxu0 0.0
  %2891 = vmatpush1.msra.mxu0 0.0
  %2892 = vmatprep.subr.mxu0 0.0
  %2893 = vmatpush1.msra.mxu0 0.0
  %2894 = vmatprep.subr.mxu0 0.0
  %2895 = vmatpush1.msra.mxu0 0.0
  %2896 = vmatprep.subr.mxu0 0.0
  %2897 = vmatpush1.msra.mxu0 0.0
  %2898 = vmatprep.subr.mxu0 0.0
  %2899 = vmatpush1.msra.mxu0 0.0
  %2900 = vmatprep.subr.mxu0 0.0
  %2901 = vmatpush1.msra.mxu0 0.0
  %2902 = vmatprep.subr.mxu0 0.0
  %2903 = vmatpush1.msra.mxu0 0.0
  %2904 = vmatprep.subr.mxu0 0.0
  %2905 = vmatpush1.msra.mxu0 0.0
  %2906 = vmatprep.subr.mxu0 0.0
  %2907 = vmatpush1.msra.mxu0 0.0
  %2908 = vmatprep.subr.mxu0 0.0
  %2909 = vmatpush1.msra.mxu0 0.0
  %2910 = vmatprep.subr.mxu0 0.0
  %2911 = vmatpush1.msra.mxu0 0.0
  %2912 = vmatprep.subr.mxu0 0.0
  %2913 = vmatpush1.msra.mxu0 0.0
  %2914 = vmatprep.subr.mxu0 0.0
  %2915 = vmatpush1.msra.mxu0 0.0
  %2916 = vmatprep.subr.mxu0 0.0
  %2917 = vmatpush1.msra.mxu0 0.0
  %2918 = vmatprep.subr.mxu0 0.0
  %2919 = vmatpush1.msra.mxu0 0.0
  %2920 = vmatprep.subr.mxu0 0.0
  %2921 = vmatpush1.msra.mxu0 0.0
  %2922 = vmatprep.subr.mxu0 0.0
  %2923 = vmatpush1.msra.mxu0 0.0
  %2924 = vmatprep.subr.mxu0 0.0
  %2925 = vmatpush1.msra.mxu0 0.0
  %2926 = vmatprep.subr.mxu0 0.0
  %2927 = vmatpush1.msra.mxu0 0.0
  %2928 = vmatprep.subr.mxu0 0.0
  %2929 = vmatpush1.msra.mxu0 0.0
  %2930 = vmatprep.subr.mxu0 0.0
  %2931 = vmatpush1.msra.mxu0 0.0
  %2932 = vmatprep.subr.mxu0 0.0
  %2933 = vmatpush1.msra.mxu0 0.0
  %2934 = vmatprep.subr.mxu0 0.0
  %2935 = vmatpush1.msra.mxu0 0.0
  %2936 = vmatprep.subr.mxu0 0.0
  %2937 = vmatpush1.msra.mxu0 0.0
  %2938 = vmatprep.subr.mxu0 0.0
  %2939 = vmatpush1.msra.mxu0 0.0
  %2940 = vmatprep.subr.mxu0 0.0
  %2941 = vmatpush1.msra.mxu0 0.0
  %2942 = vmatprep.subr.mxu0 0.0
  %2943 = vmatpush1.msra.mxu0 0.0
  %2944 = vmatprep.subr.mxu0 0.0
  %2945 = vmatpush1.msra.mxu0 0.0
  %2946 = vmatprep.mubr.f32.mxu0 0.0
  %2947 = vmatmul.mubr.f32.gmra.mrb[0].mxu0 %v2667
  %v2948 = vpop.f32.mrb[0].mxu0
  %v2949 = vadd.f32 0.0, %v2948
  %v2950 = vpop.f32.mrb[0].mxu0
  %2951 = vdwg.mxu0
  %v2953 = vsel %vm1186, %v1180, 0
  %2955 = vmatprep.subr.mxu0 %v1161
  %2956 = vmatpush1.msra.mxu0 %v1160
  %2957 = vmatprep.subr.mxu0 %v1168
  %2958 = vmatpush1.msra.mxu0 %v1167
  %2959 = vmatprep.subr.mxu0 0.0
  %2960 = vmatpush1.msra.mxu0 0.0
  %2961 = vmatprep.subr.mxu0 0.0
  %2962 = vmatpush1.msra.mxu0 0.0
  %2963 = vmatprep.subr.mxu0 0.0
  %2964 = vmatpush1.msra.mxu0 0.0
  %2965 = vmatprep.subr.mxu0 0.0
  %2966 = vmatpush1.msra.mxu0 0.0
  %2967 = vmatprep.subr.mxu0 0.0
  %2968 = vmatpush1.msra.mxu0 0.0
  %2969 = vmatprep.subr.mxu0 0.0
  %2970 = vmatpush1.msra.mxu0 0.0
  %2971 = vmatprep.subr.mxu0 0.0
  %2972 = vmatpush1.msra.mxu0 0.0
  %2973 = vmatprep.subr.mxu0 0.0
  %2974 = vmatpush1.msra.mxu0 0.0
  %2975 = vmatprep.subr.mxu0 0.0
  %2976 = vmatpush1.msra.mxu0 0.0
  %2977 = vmatprep.subr.mxu0 0.0
  %2978 = vmatpush1.msra.mxu0 0.0
  %2979 = vmatprep.subr.mxu0 0.0
  %2980 = vmatpush1.msra.mxu0 0.0
  %2981 = vmatprep.subr.mxu0 0.0
  %2982 = vmatpush1.msra.mxu0 0.0
  %2983 = vmatprep.subr.mxu0 0.0
  %2984 = vmatpush1.msra.mxu0 0.0
  %2985 = vmatprep.subr.mxu0 0.0
  %2986 = vmatpush1.msra.mxu0 0.0
  %2987 = vmatprep.subr.mxu0 0.0
  %2988 = vmatpush1.msra.mxu0 0.0
  %2989 = vmatprep.subr.mxu0 0.0
  %2990 = vmatpush1.msra.mxu0 0.0
  %2991 = vmatprep.subr.mxu0 0.0
  %2992 = vmatpush1.msra.mxu0 0.0
  %2993 = vmatprep.subr.mxu0 0.0
  %2994 = vmatpush1.msra.mxu0 0.0
  %2995 = vmatprep.subr.mxu0 0.0
  %2996 = vmatpush1.msra.mxu0 0.0
  %2997 = vmatprep.subr.mxu0 0.0
  %2998 = vmatpush1.msra.mxu0 0.0
  %2999 = vmatprep.subr.mxu0 0.0
  %3000 = vmatpush1.msra.mxu0 0.0
  %3001 = vmatprep.subr.mxu0 0.0
  %3002 = vmatpush1.msra.mxu0 0.0
  %3003 = vmatprep.subr.mxu0 0.0
  %3004 = vmatpush1.msra.mxu0 0.0
  %3005 = vmatprep.subr.mxu0 0.0
  %3006 = vmatpush1.msra.mxu0 0.0
  %3007 = vmatprep.subr.mxu0 0.0
  %3008 = vmatpush1.msra.mxu0 0.0
  %3009 = vmatprep.subr.mxu0 0.0
  %3010 = vmatpush1.msra.mxu0 0.0
  %3011 = vmatprep.subr.mxu0 0.0
  %3012 = vmatpush1.msra.mxu0 0.0
  %3013 = vmatprep.subr.mxu0 0.0
  %3014 = vmatpush1.msra.mxu0 0.0
  %3015 = vmatprep.subr.mxu0 0.0
  %3016 = vmatpush1.msra.mxu0 0.0
  %3017 = vmatprep.subr.mxu0 0.0
  %3018 = vmatpush1.msra.mxu0 0.0
  %3019 = vmatprep.mubr.f32.mxu0 0.0
  %3020 = vmatmul.mubr.f32.gmra.mrb[0].mxu0 %v2953
  %v3021 = vpop.f32.mrb[0].mxu0
  %v3022 = vadd.f32 0.0, %v3021
  %v3023 = vpop.f32.mrb[0].mxu0
  %v3024 = vadd.f32 0.0, %v3023
  %3025 = vdwg.mxu0
  %3026 = vmatprep.subr.mxu0 %v1163
  %3027 = vmatpush1.msra.mxu0 %v1162
  %3028 = vmatprep.subr.mxu0 %v1170
  %3029 = vmatpush1.msra.mxu0 %v1169
  %3030 = vmatprep.subr.mxu0 0.0
  %3031 = vmatpush1.msra.mxu0 0.0
  %3032 = vmatprep.subr.mxu0 0.0
  %3033 = vmatpush1.msra.mxu0 0.0
  %3034 = vmatprep.subr.mxu0 0.0
  %3035 = vmatpush1.msra.mxu0 0.0
  %3036 = vmatprep.subr.mxu0 0.0
  %3037 = vmatpush1.msra.mxu0 0.0
  %3038 = vmatprep.subr.mxu0 0.0
  %3039 = vmatpush1.msra.mxu0 0.0
  %3040 = vmatprep.subr.mxu0 0.0
  %3041 = vmatpush1.msra.mxu0 0.0
  %3042 = vmatprep.subr.mxu0 0.0
  %3043 = vmatpush1.msra.mxu0 0.0
  %3044 = vmatprep.subr.mxu0 0.0
  %3045 = vmatpush1.msra.mxu0 0.0
  %3046 = vmatprep.subr.mxu0 0.0
  %3047 = vmatpush1.msra.mxu0 0.0
  %3048 = vmatprep.subr.mxu0 0.0
  %3049 = vmatpush1.msra.mxu0 0.0
  %3050 = vmatprep.subr.mxu0 0.0
  %3051 = vmatpush1.msra.mxu0 0.0
  %3052 = vmatprep.subr.mxu0 0.0
  %3053 = vmatpush1.msra.mxu0 0.0
  %3054 = vmatprep.subr.mxu0 0.0
  %3055 = vmatpush1.msra.mxu0 0.0
  %3056 = vmatprep.subr.mxu0 0.0
  %3057 = vmatpush1.msra.mxu0 0.0
  %3058 = vmatprep.subr.mxu0 0.0
  %3059 = vmatpush1.msra.mxu0 0.0
  %3060 = vmatprep.subr.mxu0 0.0
  %3061 = vmatpush1.msra.mxu0 0.0
  %3062 = vmatprep.subr.mxu0 0.0
  %3063 = vmatpush1.msra.mxu0 0.0
  %3064 = vmatprep.subr.mxu0 0.0
  %3065 = vmatpush1.msra.mxu0 0.0
  %3066 = vmatprep.subr.mxu0 0.0
  %3067 = vmatpush1.msra.mxu0 0.0
  %3068 = vmatprep.subr.mxu0 0.0
  %3069 = vmatpush1.msra.mxu0 0.0
  %3070 = vmatprep.subr.mxu0 0.0
  %3071 = vmatpush1.msra.mxu0 0.0
  %3072 = vmatprep.subr.mxu0 0.0
  %3073 = vmatpush1.msra.mxu0 0.0
  %3074 = vmatprep.subr.mxu0 0.0
  %3075 = vmatpush1.msra.mxu0 0.0
  %3076 = vmatprep.subr.mxu0 0.0
  %3077 = vmatpush1.msra.mxu0 0.0
  %3078 = vmatprep.subr.mxu0 0.0
  %3079 = vmatpush1.msra.mxu0 0.0
  %3080 = vmatprep.subr.mxu0 0.0
  %3081 = vmatpush1.msra.mxu0 0.0
  %3082 = vmatprep.subr.mxu0 0.0
  %3083 = vmatpush1.msra.mxu0 0.0
  %3084 = vmatprep.subr.mxu0 0.0
  %3085 = vmatpush1.msra.mxu0 0.0
  %3086 = vmatprep.subr.mxu0 0.0
  %3087 = vmatpush1.msra.mxu0 0.0
  %3088 = vmatprep.subr.mxu0 0.0
  %3089 = vmatpush1.msra.mxu0 0.0
  %3090 = vmatprep.mubr.f32.mxu0 0.0
  %3091 = vmatmul.mubr.f32.gmra.mrb[0].mxu0 %v2953
  %v3092 = vpop.f32.mrb[0].mxu0
  %v3093 = vadd.f32 0.0, %v3092
  %v3094 = vpop.f32.mrb[0].mxu0
  %v3095 = vadd.f32 0.0, %v3094
  %3096 = vdwg.mxu0
  %3097 = vmatprep.subr.mxu0 %v1165
  %3098 = vmatpush1.msra.mxu0 %v1164
  %3099 = vmatprep.subr.mxu0 %v1172
  %3100 = vmatpush1.msra.mxu0 %v1171
  %3101 = vmatprep.subr.mxu0 0.0
  %3102 = vmatpush1.msra.mxu0 0.0
  %3103 = vmatprep.subr.mxu0 0.0
  %3104 = vmatpush1.msra.mxu0 0.0
  %3105 = vmatprep.subr.mxu0 0.0
  %3106 = vmatpush1.msra.mxu0 0.0
  %3107 = vmatprep.subr.mxu0 0.0
  %3108 = vmatpush1.msra.mxu0 0.0
  %3109 = vmatprep.subr.mxu0 0.0
  %3110 = vmatpush1.msra.mxu0 0.0
  %3111 = vmatprep.subr.mxu0 0.0
  %3112 = vmatpush1.msra.mxu0 0.0
  %3113 = vmatprep.subr.mxu0 0.0
  %3114 = vmatpush1.msra.mxu0 0.0
  %3115 = vmatprep.subr.mxu0 0.0
  %3116 = vmatpush1.msra.mxu0 0.0
  %3117 = vmatprep.subr.mxu0 0.0
  %3118 = vmatpush1.msra.mxu0 0.0
  %3119 = vmatprep.subr.mxu0 0.0
  %3120 = vmatpush1.msra.mxu0 0.0
  %3121 = vmatprep.subr.mxu0 0.0
  %3122 = vmatpush1.msra.mxu0 0.0
  %3123 = vmatprep.subr.mxu0 0.0
  %3124 = vmatpush1.msra.mxu0 0.0
  %3125 = vmatprep.subr.mxu0 0.0
  %3126 = vmatpush1.msra.mxu0 0.0
  %3127 = vmatprep.subr.mxu0 0.0
  %3128 = vmatpush1.msra.mxu0 0.0
  %3129 = vmatprep.subr.mxu0 0.0
  %3130 = vmatpush1.msra.mxu0 0.0
  %3131 = vmatprep.subr.mxu0 0.0
  %3132 = vmatpush1.msra.mxu0 0.0
  %3133 = vmatprep.subr.mxu0 0.0
  %3134 = vmatpush1.msra.mxu0 0.0
  %3135 = vmatprep.subr.mxu0 0.0
  %3136 = vmatpush1.msra.mxu0 0.0
  %3137 = vmatprep.subr.mxu0 0.0
  %3138 = vmatpush1.msra.mxu0 0.0
  %3139 = vmatprep.subr.mxu0 0.0
  %3140 = vmatpush1.msra.mxu0 0.0
  %3141 = vmatprep.subr.mxu0 0.0
  %3142 = vmatpush1.msra.mxu0 0.0
  %3143 = vmatprep.subr.mxu0 0.0
  %3144 = vmatpush1.msra.mxu0 0.0
  %3145 = vmatprep.subr.mxu0 0.0
  %3146 = vmatpush1.msra.mxu0 0.0
  %3147 = vmatprep.subr.mxu0 0.0
  %3148 = vmatpush1.msra.mxu0 0.0
  %3149 = vmatprep.subr.mxu0 0.0
  %3150 = vmatpush1.msra.mxu0 0.0
  %3151 = vmatprep.subr.mxu0 0.0
  %3152 = vmatpush1.msra.mxu0 0.0
  %3153 = vmatprep.subr.mxu0 0.0
  %3154 = vmatpush1.msra.mxu0 0.0
  %3155 = vmatprep.subr.mxu0 0.0
  %3156 = vmatpush1.msra.mxu0 0.0
  %3157 = vmatprep.subr.mxu0 0.0
  %3158 = vmatpush1.msra.mxu0 0.0
  %3159 = vmatprep.subr.mxu0 0.0
  %3160 = vmatpush1.msra.mxu0 0.0
  %3161 = vmatprep.mubr.f32.mxu0 0.0
  %3162 = vmatmul.mubr.f32.gmra.mrb[0].mxu0 %v2953
  %v3163 = vpop.f32.mrb[0].mxu0
  %v3164 = vadd.f32 0.0, %v3163
  %v3165 = vpop.f32.mrb[0].mxu0
  %v3166 = vadd.f32 0.0, %v3165
  %3167 = vdwg.mxu0
  %3168 = vmatprep.subr.mxu0 0.0
  %3169 = vmatpush1.msra.mxu0 %v1166
  %3170 = vmatprep.subr.mxu0 0.0
  %3171 = vmatpush1.msra.mxu0 %v1173
  %3172 = vmatprep.subr.mxu0 0.0
  %3173 = vmatpush1.msra.mxu0 0.0
  %3174 = vmatprep.subr.mxu0 0.0
  %3175 = vmatpush1.msra.mxu0 0.0
  %3176 = vmatprep.subr.mxu0 0.0
  %3177 = vmatpush1.msra.mxu0 0.0
  %3178 = vmatprep.subr.mxu0 0.0
  %3179 = vmatpush1.msra.mxu0 0.0
  %3180 = vmatprep.subr.mxu0 0.0
  %3181 = vmatpush1.msra.mxu0 0.0
  %3182 = vmatprep.subr.mxu0 0.0
  %3183 = vmatpush1.msra.mxu0 0.0
  %3184 = vmatprep.subr.mxu0 0.0
  %3185 = vmatpush1.msra.mxu0 0.0
  %3186 = vmatprep.subr.mxu0 0.0
  %3187 = vmatpush1.msra.mxu0 0.0
  %3188 = vmatprep.subr.mxu0 0.0
  %3189 = vmatpush1.msra.mxu0 0.0
  %3190 = vmatprep.subr.mxu0 0.0
  %3191 = vmatpush1.msra.mxu0 0.0
  %3192 = vmatprep.subr.mxu0 0.0
  %3193 = vmatpush1.msra.mxu0 0.0
  %3194 = vmatprep.subr.mxu0 0.0
  %3195 = vmatpush1.msra.mxu0 0.0
  %3196 = vmatprep.subr.mxu0 0.0
  %3197 = vmatpush1.msra.mxu0 0.0
  %3198 = vmatprep.subr.mxu0 0.0
  %3199 = vmatpush1.msra.mxu0 0.0
  %3200 = vmatprep.subr.mxu0 0.0
  %3201 = vmatpush1.msra.mxu0 0.0
  %3202 = vmatprep.subr.mxu0 0.0
  %3203 = vmatpush1.msra.mxu0 0.0
  %3204 = vmatprep.subr.mxu0 0.0
  %3205 = vmatpush1.msra.mxu0 0.0
  %3206 = vmatprep.subr.mxu0 0.0
  %3207 = vmatpush1.msra.mxu0 0.0
  %3208 = vmatprep.subr.mxu0 0.0
  %3209 = vmatpush1.msra.mxu0 0.0
  %3210 = vmatprep.subr.mxu0 0.0
  %3211 = vmatpush1.msra.mxu0 0.0
  %3212 = vmatprep.subr.mxu0 0.0
  %3213 = vmatpush1.msra.mxu0 0.0
  %3214 = vmatprep.subr.mxu0 0.0
  %3215 = vmatpush1.msra.mxu0 0.0
  %3216 = vmatprep.subr.mxu0 0.0
  %3217 = vmatpush1.msra.mxu0 0.0
  %3218 = vmatprep.subr.mxu0 0.0
  %3219 = vmatpush1.msra.mxu0 0.0
  %3220 = vmatprep.subr.mxu0 0.0
  %3221 = vmatpush1.msra.mxu0 0.0
  %3222 = vmatprep.subr.mxu0 0.0
  %3223 = vmatpush1.msra.mxu0 0.0
  %3224 = vmatprep.subr.mxu0 0.0
  %3225 = vmatpush1.msra.mxu0 0.0
  %3226 = vmatprep.subr.mxu0 0.0
  %3227 = vmatpush1.msra.mxu0 0.0
  %3228 = vmatprep.subr.mxu0 0.0
  %3229 = vmatpush1.msra.mxu0 0.0
  %3230 = vmatprep.subr.mxu0 0.0
  %3231 = vmatpush1.msra.mxu0 0.0
  %3232 = vmatprep.mubr.f32.mxu0 0.0
  %3233 = vmatmul.mubr.f32.gmra.mrb[0].mxu0 %v2953
  %v3234 = vpop.f32.mrb[0].mxu0
  %v3235 = vadd.f32 0.0, %v3234
  %v3236 = vpop.f32.mrb[0].mxu0
  %3237 = vdwg.mxu0
  %v3239 = vsel %vm1186, %v1181, 0
  %3241 = vmatprep.subr.mxu0 %v1161
  %3242 = vmatpush1.msra.mxu0 %v1160
  %3243 = vmatprep.subr.mxu0 %v1168
  %3244 = vmatpush1.msra.mxu0 %v1167
  %3245 = vmatprep.subr.mxu0 0.0
  %3246 = vmatpush1.msra.mxu0 0.0
  %3247 = vmatprep.subr.mxu0 0.0
  %3248 = vmatpush1.msra.mxu0 0.0
  %3249 = vmatprep.subr.mxu0 0.0
  %3250 = vmatpush1.msra.mxu0 0.0
  %3251 = vmatprep.subr.mxu0 0.0
  %3252 = vmatpush1.msra.mxu0 0.0
  %3253 = vmatprep.subr.mxu0 0.0
  %3254 = vmatpush1.msra.mxu0 0.0
  %3255 = vmatprep.subr.mxu0 0.0
  %3256 = vmatpush1.msra.mxu0 0.0
  %3257 = vmatprep.subr.mxu0 0.0
  %3258 = vmatpush1.msra.mxu0 0.0
  %3259 = vmatprep.subr.mxu0 0.0
  %3260 = vmatpush1.msra.mxu0 0.0
  %3261 = vmatprep.subr.mxu0 0.0
  %3262 = vmatpush1.msra.mxu0 0.0
  %3263 = vmatprep.subr.mxu0 0.0
  %3264 = vmatpush1.msra.mxu0 0.0
  %3265 = vmatprep.subr.mxu0 0.0
  %3266 = vmatpush1.msra.mxu0 0.0
  %3267 = vmatprep.subr.mxu0 0.0
  %3268 = vmatpush1.msra.mxu0 0.0
  %3269 = vmatprep.subr.mxu0 0.0
  %3270 = vmatpush1.msra.mxu0 0.0
  %3271 = vmatprep.subr.mxu0 0.0
  %3272 = vmatpush1.msra.mxu0 0.0
  %3273 = vmatprep.subr.mxu0 0.0
  %3274 = vmatpush1.msra.mxu0 0.0
  %3275 = vmatprep.subr.mxu0 0.0
  %3276 = vmatpush1.msra.mxu0 0.0
  %3277 = vmatprep.subr.mxu0 0.0
  %3278 = vmatpush1.msra.mxu0 0.0
  %3279 = vmatprep.subr.mxu0 0.0
  %3280 = vmatpush1.msra.mxu0 0.0
  %3281 = vmatprep.subr.mxu0 0.0
  %3282 = vmatpush1.msra.mxu0 0.0
  %3283 = vmatprep.subr.mxu0 0.0
  %3284 = vmatpush1.msra.mxu0 0.0
  %3285 = vmatprep.subr.mxu0 0.0
  %3286 = vmatpush1.msra.mxu0 0.0
  %3287 = vmatprep.subr.mxu0 0.0
  %3288 = vmatpush1.msra.mxu0 0.0
  %3289 = vmatprep.subr.mxu0 0.0
  %3290 = vmatpush1.msra.mxu0 0.0
  %3291 = vmatprep.subr.mxu0 0.0
  %3292 = vmatpush1.msra.mxu0 0.0
  %3293 = vmatprep.subr.mxu0 0.0
  %3294 = vmatpush1.msra.mxu0 0.0
  %3295 = vmatprep.subr.mxu0 0.0
  %3296 = vmatpush1.msra.mxu0 0.0
  %3297 = vmatprep.subr.mxu0 0.0
  %3298 = vmatpush1.msra.mxu0 0.0
  %3299 = vmatprep.subr.mxu0 0.0
  %3300 = vmatpush1.msra.mxu0 0.0
  %3301 = vmatprep.subr.mxu0 0.0
  %3302 = vmatpush1.msra.mxu0 0.0
  %3303 = vmatprep.subr.mxu0 0.0
  %3304 = vmatpush1.msra.mxu0 0.0
  %3305 = vmatprep.mubr.f32.mxu0 0.0
  %3306 = vmatmul.mubr.f32.gmra.mrb[0].mxu0 %v3239
  %v3307 = vpop.f32.mrb[0].mxu0
  %v3308 = vadd.f32 0.0, %v3307
  %v3309 = vpop.f32.mrb[0].mxu0
  %v3310 = vadd.f32 0.0, %v3309
  %3311 = vdwg.mxu0
  %3312 = vmatprep.subr.mxu0 %v1163
  %3313 = vmatpush1.msra.mxu0 %v1162
  %3314 = vmatprep.subr.mxu0 %v1170
  %3315 = vmatpush1.msra.mxu0 %v1169
  %3316 = vmatprep.subr.mxu0 0.0
  %3317 = vmatpush1.msra.mxu0 0.0
  %3318 = vmatprep.subr.mxu0 0.0
  %3319 = vmatpush1.msra.mxu0 0.0
  %3320 = vmatprep.subr.mxu0 0.0
  %3321 = vmatpush1.msra.mxu0 0.0
  %3322 = vmatprep.subr.mxu0 0.0
  %3323 = vmatpush1.msra.mxu0 0.0
  %3324 = vmatprep.subr.mxu0 0.0
  %3325 = vmatpush1.msra.mxu0 0.0
  %3326 = vmatprep.subr.mxu0 0.0
  %3327 = vmatpush1.msra.mxu0 0.0
  %3328 = vmatprep.subr.mxu0 0.0
  %3329 = vmatpush1.msra.mxu0 0.0
  %3330 = vmatprep.subr.mxu0 0.0
  %3331 = vmatpush1.msra.mxu0 0.0
  %3332 = vmatprep.subr.mxu0 0.0
  %3333 = vmatpush1.msra.mxu0 0.0
  %3334 = vmatprep.subr.mxu0 0.0
  %3335 = vmatpush1.msra.mxu0 0.0
  %3336 = vmatprep.subr.mxu0 0.0
  %3337 = vmatpush1.msra.mxu0 0.0
  %3338 = vmatprep.subr.mxu0 0.0
  %3339 = vmatpush1.msra.mxu0 0.0
  %3340 = vmatprep.subr.mxu0 0.0
  %3341 = vmatpush1.msra.mxu0 0.0
  %3342 = vmatprep.subr.mxu0 0.0
  %3343 = vmatpush1.msra.mxu0 0.0
  %3344 = vmatprep.subr.mxu0 0.0
  %3345 = vmatpush1.msra.mxu0 0.0
  %3346 = vmatprep.subr.mxu0 0.0
  %3347 = vmatpush1.msra.mxu0 0.0
  %3348 = vmatprep.subr.mxu0 0.0
  %3349 = vmatpush1.msra.mxu0 0.0
  %3350 = vmatprep.subr.mxu0 0.0
  %3351 = vmatpush1.msra.mxu0 0.0
  %3352 = vmatprep.subr.mxu0 0.0
  %3353 = vmatpush1.msra.mxu0 0.0
  %3354 = vmatprep.subr.mxu0 0.0
  %3355 = vmatpush1.msra.mxu0 0.0
  %3356 = vmatprep.subr.mxu0 0.0
  %3357 = vmatpush1.msra.mxu0 0.0
  %3358 = vmatprep.subr.mxu0 0.0
  %3359 = vmatpush1.msra.mxu0 0.0
  %3360 = vmatprep.subr.mxu0 0.0
  %3361 = vmatpush1.msra.mxu0 0.0
  %3362 = vmatprep.subr.mxu0 0.0
  %3363 = vmatpush1.msra.mxu0 0.0
  %3364 = vmatprep.subr.mxu0 0.0
  %3365 = vmatpush1.msra.mxu0 0.0
  %3366 = vmatprep.subr.mxu0 0.0
  %3367 = vmatpush1.msra.mxu0 0.0
  %3368 = vmatprep.subr.mxu0 0.0
  %3369 = vmatpush1.msra.mxu0 0.0
  %3370 = vmatprep.subr.mxu0 0.0
  %3371 = vmatpush1.msra.mxu0 0.0
  %3372 = vmatprep.subr.mxu0 0.0
  %3373 = vmatpush1.msra.mxu0 0.0
  %3374 = vmatprep.subr.mxu0 0.0
  %3375 = vmatpush1.msra.mxu0 0.0
  %3376 = vmatprep.mubr.f32.mxu0 0.0
  %3377 = vmatmul.mubr.f32.gmra.mrb[0].mxu0 %v3239
  %v3378 = vpop.f32.mrb[0].mxu0
  %v3379 = vadd.f32 0.0, %v3378
  %v3380 = vpop.f32.mrb[0].mxu0
  %v3381 = vadd.f32 0.0, %v3380
  %3382 = vdwg.mxu0
  %3383 = vmatprep.subr.mxu0 %v1165
  %3384 = vmatpush1.msra.mxu0 %v1164
  %3385 = vmatprep.subr.mxu0 %v1172
  %3386 = vmatpush1.msra.mxu0 %v1171
  %3387 = vmatprep.subr.mxu0 0.0
  %3388 = vmatpush1.msra.mxu0 0.0
  %3389 = vmatprep.subr.mxu0 0.0
  %3390 = vmatpush1.msra.mxu0 0.0
  %3391 = vmatprep.subr.mxu0 0.0
  %3392 = vmatpush1.msra.mxu0 0.0
  %3393 = vmatprep.subr.mxu0 0.0
  %3394 = vmatpush1.msra.mxu0 0.0
  %3395 = vmatprep.subr.mxu0 0.0
  %3396 = vmatpush1.msra.mxu0 0.0
  %3397 = vmatprep.subr.mxu0 0.0
  %3398 = vmatpush1.msra.mxu0 0.0
  %3399 = vmatprep.subr.mxu0 0.0
  %3400 = vmatpush1.msra.mxu0 0.0
  %3401 = vmatprep.subr.mxu0 0.0
  %3402 = vmatpush1.msra.mxu0 0.0
  %3403 = vmatprep.subr.mxu0 0.0
  %3404 = vmatpush1.msra.mxu0 0.0
  %3405 = vmatprep.subr.mxu0 0.0
  %3406 = vmatpush1.msra.mxu0 0.0
  %3407 = vmatprep.subr.mxu0 0.0
  %3408 = vmatpush1.msra.mxu0 0.0
  %3409 = vmatprep.subr.mxu0 0.0
  %3410 = vmatpush1.msra.mxu0 0.0
  %3411 = vmatprep.subr.mxu0 0.0
  %3412 = vmatpush1.msra.mxu0 0.0
  %3413 = vmatprep.subr.mxu0 0.0
  %3414 = vmatpush1.msra.mxu0 0.0
  %3415 = vmatprep.subr.mxu0 0.0
  %3416 = vmatpush1.msra.mxu0 0.0
  %3417 = vmatprep.subr.mxu0 0.0
  %3418 = vmatpush1.msra.mxu0 0.0
  %3419 = vmatprep.subr.mxu0 0.0
  %3420 = vmatpush1.msra.mxu0 0.0
  %3421 = vmatprep.subr.mxu0 0.0
  %3422 = vmatpush1.msra.mxu0 0.0
  %3423 = vmatprep.subr.mxu0 0.0
  %3424 = vmatpush1.msra.mxu0 0.0
  %3425 = vmatprep.subr.mxu0 0.0
  %3426 = vmatpush1.msra.mxu0 0.0
  %3427 = vmatprep.subr.mxu0 0.0
  %3428 = vmatpush1.msra.mxu0 0.0
  %3429 = vmatprep.subr.mxu0 0.0
  %3430 = vmatpush1.msra.mxu0 0.0
  %3431 = vmatprep.subr.mxu0 0.0
  %3432 = vmatpush1.msra.mxu0 0.0
  %3433 = vmatprep.subr.mxu0 0.0
  %3434 = vmatpush1.msra.mxu0 0.0
  %3435 = vmatprep.subr.mxu0 0.0
  %3436 = vmatpush1.msra.mxu0 0.0
  %3437 = vmatprep.subr.mxu0 0.0
  %3438 = vmatpush1.msra.mxu0 0.0
  %3439 = vmatprep.subr.mxu0 0.0
  %3440 = vmatpush1.msra.mxu0 0.0
  %3441 = vmatprep.subr.mxu0 0.0
  %3442 = vmatpush1.msra.mxu0 0.0
  %3443 = vmatprep.subr.mxu0 0.0
  %3444 = vmatpush1.msra.mxu0 0.0
  %3445 = vmatprep.subr.mxu0 0.0
  %3446 = vmatpush1.msra.mxu0 0.0
  %3447 = vmatprep.mubr.f32.mxu0 0.0
  %3448 = vmatmul.mubr.f32.gmra.mrb[0].mxu0 %v3239
  %v3449 = vpop.f32.mrb[0].mxu0
  %v3450 = vadd.f32 0.0, %v3449
  %v3451 = vpop.f32.mrb[0].mxu0
  %v3452 = vadd.f32 0.0, %v3451
  %3453 = vdwg.mxu0
  %3454 = vmatprep.subr.mxu0 0.0
  %3455 = vmatpush1.msra.mxu0 %v1166
  %3456 = vmatprep.subr.mxu0 0.0
  %3457 = vmatpush1.msra.mxu0 %v1173
  %3458 = vmatprep.subr.mxu0 0.0
  %3459 = vmatpush1.msra.mxu0 0.0
  %3460 = vmatprep.subr.mxu0 0.0
  %3461 = vmatpush1.msra.mxu0 0.0
  %3462 = vmatprep.subr.mxu0 0.0
  %3463 = vmatpush1.msra.mxu0 0.0
  %3464 = vmatprep.subr.mxu0 0.0
  %3465 = vmatpush1.msra.mxu0 0.0
  %3466 = vmatprep.subr.mxu0 0.0
  %3467 = vmatpush1.msra.mxu0 0.0
  %3468 = vmatprep.subr.mxu0 0.0
  %3469 = vmatpush1.msra.mxu0 0.0
  %3470 = vmatprep.subr.mxu0 0.0
  %3471 = vmatpush1.msra.mxu0 0.0
  %3472 = vmatprep.subr.mxu0 0.0
  %3473 = vmatpush1.msra.mxu0 0.0
  %3474 = vmatprep.subr.mxu0 0.0
  %3475 = vmatpush1.msra.mxu0 0.0
  %3476 = vmatprep.subr.mxu0 0.0
  %3477 = vmatpush1.msra.mxu0 0.0
  %3478 = vmatprep.subr.mxu0 0.0
  %3479 = vmatpush1.msra.mxu0 0.0
  %3480 = vmatprep.subr.mxu0 0.0
  %3481 = vmatpush1.msra.mxu0 0.0
  %3482 = vmatprep.subr.mxu0 0.0
  %3483 = vmatpush1.msra.mxu0 0.0
  %3484 = vmatprep.subr.mxu0 0.0
  %3485 = vmatpush1.msra.mxu0 0.0
  %3486 = vmatprep.subr.mxu0 0.0
  %3487 = vmatpush1.msra.mxu0 0.0
  %3488 = vmatprep.subr.mxu0 0.0
  %3489 = vmatpush1.msra.mxu0 0.0
  %3490 = vmatprep.subr.mxu0 0.0
  %3491 = vmatpush1.msra.mxu0 0.0
  %3492 = vmatprep.subr.mxu0 0.0
  %3493 = vmatpush1.msra.mxu0 0.0
  %3494 = vmatprep.subr.mxu0 0.0
  %3495 = vmatpush1.msra.mxu0 0.0
  %3496 = vmatprep.subr.mxu0 0.0
  %3497 = vmatpush1.msra.mxu0 0.0
  %3498 = vmatprep.subr.mxu0 0.0
  %3499 = vmatpush1.msra.mxu0 0.0
  %3500 = vmatprep.subr.mxu0 0.0
  %3501 = vmatpush1.msra.mxu0 0.0
  %3502 = vmatprep.subr.mxu0 0.0
  %3503 = vmatpush1.msra.mxu0 0.0
  %3504 = vmatprep.subr.mxu0 0.0
  %3505 = vmatpush1.msra.mxu0 0.0
  %3506 = vmatprep.subr.mxu0 0.0
  %3507 = vmatpush1.msra.mxu0 0.0
  %3508 = vmatprep.subr.mxu0 0.0
  %3509 = vmatpush1.msra.mxu0 0.0
  %3510 = vmatprep.subr.mxu0 0.0
  %3511 = vmatpush1.msra.mxu0 0.0
  %3512 = vmatprep.subr.mxu0 0.0
  %3513 = vmatpush1.msra.mxu0 0.0
  %3514 = vmatprep.subr.mxu0 0.0
  %3515 = vmatpush1.msra.mxu0 0.0
  %3516 = vmatprep.subr.mxu0 0.0
  %3517 = vmatpush1.msra.mxu0 0.0
  %3518 = vmatprep.mubr.f32.mxu0 0.0
  %3519 = vmatmul.mubr.f32.gmra.mrb[0].mxu0 %v3239
  %v3520 = vpop.f32.mrb[0].mxu0
  %v3521 = vadd.f32 0.0, %v3520
  %v3522 = vpop.f32.mrb[0].mxu0
  %3523 = vdwg.mxu0
  %v3524 = vmul.f32 %v2450, %v447
  %v3525 = vmul.f32 %v2452, %v449
  %v3526 = vmul.f32 %v2521, %v518
  %v3527 = vmul.f32 %v2523, %v520
  %v3528 = vmul.f32 %v2592, %v589
  %v3529 = vmul.f32 %v2594, %v591
  %v3530 = vmul.f32 %v2663, %v660
  %v3531 = vmul.f32 %v2736, %v662
  %v3532 = vmul.f32 %v2738, %v731
  %v3533 = vmul.f32 %v2807, %v733
  %v3534 = vmul.f32 %v2809, %v802
  %v3535 = vmul.f32 %v2878, %v804
  %v3536 = vmul.f32 %v2880, %v873
  %v3537 = vmul.f32 %v2949, %v875
  %v3538 = vadd.f32 %v3524, %v3531
  %v3539 = vadd.f32 %v3525, %v3532
  %v3540 = vadd.f32 %v3526, %v3533
  %v3541 = vadd.f32 %v3527, %v3534
  %v3542 = vadd.f32 %v3528, %v3535
  %v3543 = vadd.f32 %v3529, %v3536
  %v3544 = vadd.f32 %v3530, %v3537
  %v3545 = vmul.f32 %v3022, %v944
  %v3546 = vmul.f32 %v3024, %v946
  %v3547 = vmul.f32 %v3093, %v1015
  %v3548 = vmul.f32 %v3095, %v1017
  %v3549 = vmul.f32 %v3164, %v1086
  %v3550 = vmul.f32 %v3166, %v1088
  %v3551 = vmul.f32 %v3235, %v1157
  %v3552 = vadd.f32 %v3538, %v3545
  %v3553 = vadd.f32 %v3539, %v3546
  %v3554 = vadd.f32 %v3540, %v3547
  %v3555 = vadd.f32 %v3541, %v3548
  %v3556 = vadd.f32 %v3542, %v3549
  %v3557 = vadd.f32 %v3543, %v3550
  %v3558 = vadd.f32 %v3544, %v3551
  %v3559 = vadd.f32 %v3552, %v3308
  %v3560 = vadd.f32 %v3553, %v3310
  %v3561 = vadd.f32 %v3554, %v3379
  %v3562 = vadd.f32 %v3555, %v3381
  %v3563 = vadd.f32 %v3556, %v3450
  %v3564 = vadd.f32 %v3557, %v3452
  %v3565 = vadd.f32 %v3558, %v3521
  %s3566 = scalar_lea.vmem %s4, 56
  %3567 = vst [vmem:[%s3566] sm:$0xff] %v3559
  %3568 = vst [vmem:[%s3566 + $0x8] sm:$0xff] %v3560
  %3569 = vst [vmem:[%s3566 + $0x10] sm:$0xff] %v3561
  %3570 = vst [vmem:[%s3566 + $0x18] sm:$0xff] %v3562
  %3571 = vst [vmem:[%s3566 + $0x20] sm:$0xff] %v3563
  %3572 = vst [vmem:[%s3566 + $0x28] sm:$0xff] %v3564
  %3573 = vst [vmem:[%s3566 + $0x30] sm:$0xff] %v3565
  %v3575 = vsel %vm1186, %v1182, 0
  %3577 = vmatprep.subr.mxu0 %v1161
  %3578 = vmatpush1.msra.mxu0 %v1160
  %3579 = vmatprep.subr.mxu0 %v1168
  %3580 = vmatpush1.msra.mxu0 %v1167
  %3581 = vmatprep.subr.mxu0 0.0
  %3582 = vmatpush1.msra.mxu0 0.0
  %3583 = vmatprep.subr.mxu0 0.0
  %3584 = vmatpush1.msra.mxu0 0.0
  %3585 = vmatprep.subr.mxu0 0.0
  %3586 = vmatpush1.msra.mxu0 0.0
  %3587 = vmatprep.subr.mxu0 0.0
  %3588 = vmatpush1.msra.mxu0 0.0
  %3589 = vmatprep.subr.mxu0 0.0
  %3590 = vmatpush1.msra.mxu0 0.0
  %3591 = vmatprep.subr.mxu0 0.0
  %3592 = vmatpush1.msra.mxu0 0.0
  %3593 = vmatprep.subr.mxu0 0.0
  %3594 = vmatpush1.msra.mxu0 0.0
  %3595 = vmatprep.subr.mxu0 0.0
  %3596 = vmatpush1.msra.mxu0 0.0
  %3597 = vmatprep.subr.mxu0 0.0
  %3598 = vmatpush1.msra.mxu0 0.0
  %3599 = vmatprep.subr.mxu0 0.0
  %3600 = vmatpush1.msra.mxu0 0.0
  %3601 = vmatprep.subr.mxu0 0.0
  %3602 = vmatpush1.msra.mxu0 0.0
  %3603 = vmatprep.subr.mxu0 0.0
  %3604 = vmatpush1.msra.mxu0 0.0
  %3605 = vmatprep.subr.mxu0 0.0
  %3606 = vmatpush1.msra.mxu0 0.0
  %3607 = vmatprep.subr.mxu0 0.0
  %3608 = vmatpush1.msra.mxu0 0.0
  %3609 = vmatprep.subr.mxu0 0.0
  %3610 = vmatpush1.msra.mxu0 0.0
  %3611 = vmatprep.subr.mxu0 0.0
  %3612 = vmatpush1.msra.mxu0 0.0
  %3613 = vmatprep.subr.mxu0 0.0
  %3614 = vmatpush1.msra.mxu0 0.0
  %3615 = vmatprep.subr.mxu0 0.0
  %3616 = vmatpush1.msra.mxu0 0.0
  %3617 = vmatprep.subr.mxu0 0.0
  %3618 = vmatpush1.msra.mxu0 0.0
  %3619 = vmatprep.subr.mxu0 0.0
  %3620 = vmatpush1.msra.mxu0 0.0
  %3621 = vmatprep.subr.mxu0 0.0
  %3622 = vmatpush1.msra.mxu0 0.0
  %3623 = vmatprep.subr.mxu0 0.0
  %3624 = vmatpush1.msra.mxu0 0.0
  %3625 = vmatprep.subr.mxu0 0.0
  %3626 = vmatpush1.msra.mxu0 0.0
  %3627 = vmatprep.subr.mxu0 0.0
  %3628 = vmatpush1.msra.mxu0 0.0
  %3629 = vmatprep.subr.mxu0 0.0
  %3630 = vmatpush1.msra.mxu0 0.0
  %3631 = vmatprep.subr.mxu0 0.0
  %3632 = vmatpush1.msra.mxu0 0.0
  %3633 = vmatprep.subr.mxu0 0.0
  %3634 = vmatpush1.msra.mxu0 0.0
  %3635 = vmatprep.subr.mxu0 0.0
  %3636 = vmatpush1.msra.mxu0 0.0
  %3637 = vmatprep.subr.mxu0 0.0
  %3638 = vmatpush1.msra.mxu0 0.0
  %3639 = vmatprep.subr.mxu0 0.0
  %3640 = vmatpush1.msra.mxu0 0.0
  %3641 = vmatprep.mubr.f32.mxu0 0.0
  %3642 = vmatmul.mubr.f32.gmra.mrb[0].mxu0 %v3575
  %v3643 = vpop.f32.mrb[0].mxu0
  %v3644 = vadd.f32 0.0, %v3643
  %v3645 = vpop.f32.mrb[0].mxu0
  %v3646 = vadd.f32 0.0, %v3645
  %3647 = vdwg.mxu0
  %3648 = vmatprep.subr.mxu0 %v1163
  %3649 = vmatpush1.msra.mxu0 %v1162
  %3650 = vmatprep.subr.mxu0 %v1170
  %3651 = vmatpush1.msra.mxu0 %v1169
  %3652 = vmatprep.subr.mxu0 0.0
  %3653 = vmatpush1.msra.mxu0 0.0
  %3654 = vmatprep.subr.mxu0 0.0
  %3655 = vmatpush1.msra.mxu0 0.0
  %3656 = vmatprep.subr.mxu0 0.0
  %3657 = vmatpush1.msra.mxu0 0.0
  %3658 = vmatprep.subr.mxu0 0.0
  %3659 = vmatpush1.msra.mxu0 0.0
  %3660 = vmatprep.subr.mxu0 0.0
  %3661 = vmatpush1.msra.mxu0 0.0
  %3662 = vmatprep.subr.mxu0 0.0
  %3663 = vmatpush1.msra.mxu0 0.0
  %3664 = vmatprep.subr.mxu0 0.0
  %3665 = vmatpush1.msra.mxu0 0.0
  %3666 = vmatprep.subr.mxu0 0.0
  %3667 = vmatpush1.msra.mxu0 0.0
  %3668 = vmatprep.subr.mxu0 0.0
  %3669 = vmatpush1.msra.mxu0 0.0
  %3670 = vmatprep.subr.mxu0 0.0
  %3671 = vmatpush1.msra.mxu0 0.0
  %3672 = vmatprep.subr.mxu0 0.0
  %3673 = vmatpush1.msra.mxu0 0.0
  %3674 = vmatprep.subr.mxu0 0.0
  %3675 = vmatpush1.msra.mxu0 0.0
  %3676 = vmatprep.subr.mxu0 0.0
  %3677 = vmatpush1.msra.mxu0 0.0
  %3678 = vmatprep.subr.mxu0 0.0
  %3679 = vmatpush1.msra.mxu0 0.0
  %3680 = vmatprep.subr.mxu0 0.0
  %3681 = vmatpush1.msra.mxu0 0.0
  %3682 = vmatprep.subr.mxu0 0.0
  %3683 = vmatpush1.msra.mxu0 0.0
  %3684 = vmatprep.subr.mxu0 0.0
  %3685 = vmatpush1.msra.mxu0 0.0
  %3686 = vmatprep.subr.mxu0 0.0
  %3687 = vmatpush1.msra.mxu0 0.0
  %3688 = vmatprep.subr.mxu0 0.0
  %3689 = vmatpush1.msra.mxu0 0.0
  %3690 = vmatprep.subr.mxu0 0.0
  %3691 = vmatpush1.msra.mxu0 0.0
  %3692 = vmatprep.subr.mxu0 0.0
  %3693 = vmatpush1.msra.mxu0 0.0
  %3694 = vmatprep.subr.mxu0 0.0
  %3695 = vmatpush1.msra.mxu0 0.0
  %3696 = vmatprep.subr.mxu0 0.0
  %3697 = vmatpush1.msra.mxu0 0.0
  %3698 = vmatprep.subr.mxu0 0.0
  %3699 = vmatpush1.msra.mxu0 0.0
  %3700 = vmatprep.subr.mxu0 0.0
  %3701 = vmatpush1.msra.mxu0 0.0
  %3702 = vmatprep.subr.mxu0 0.0
  %3703 = vmatpush1.msra.mxu0 0.0
  %3704 = vmatprep.subr.mxu0 0.0
  %3705 = vmatpush1.msra.mxu0 0.0
  %3706 = vmatprep.subr.mxu0 0.0
  %3707 = vmatpush1.msra.mxu0 0.0
  %3708 = vmatprep.subr.mxu0 0.0
  %3709 = vmatpush1.msra.mxu0 0.0
  %3710 = vmatprep.subr.mxu0 0.0
  %3711 = vmatpush1.msra.mxu0 0.0
  %3712 = vmatprep.mubr.f32.mxu0 0.0
  %3713 = vmatmul.mubr.f32.gmra.mrb[0].mxu0 %v3575
  %v3714 = vpop.f32.mrb[0].mxu0
  %v3715 = vadd.f32 0.0, %v3714
  %v3716 = vpop.f32.mrb[0].mxu0
  %v3717 = vadd.f32 0.0, %v3716
  %3718 = vdwg.mxu0
  %3719 = vmatprep.subr.mxu0 %v1165
  %3720 = vmatpush1.msra.mxu0 %v1164
  %3721 = vmatprep.subr.mxu0 %v1172
  %3722 = vmatpush1.msra.mxu0 %v1171
  %3723 = vmatprep.subr.mxu0 0.0
  %3724 = vmatpush1.msra.mxu0 0.0
  %3725 = vmatprep.subr.mxu0 0.0
  %3726 = vmatpush1.msra.mxu0 0.0
  %3727 = vmatprep.subr.mxu0 0.0
  %3728 = vmatpush1.msra.mxu0 0.0
  %3729 = vmatprep.subr.mxu0 0.0
  %3730 = vmatpush1.msra.mxu0 0.0
  %3731 = vmatprep.subr.mxu0 0.0
  %3732 = vmatpush1.msra.mxu0 0.0
  %3733 = vmatprep.subr.mxu0 0.0
  %3734 = vmatpush1.msra.mxu0 0.0
  %3735 = vmatprep.subr.mxu0 0.0
  %3736 = vmatpush1.msra.mxu0 0.0
  %3737 = vmatprep.subr.mxu0 0.0
  %3738 = vmatpush1.msra.mxu0 0.0
  %3739 = vmatprep.subr.mxu0 0.0
  %3740 = vmatpush1.msra.mxu0 0.0
  %3741 = vmatprep.subr.mxu0 0.0
  %3742 = vmatpush1.msra.mxu0 0.0
  %3743 = vmatprep.subr.mxu0 0.0
  %3744 = vmatpush1.msra.mxu0 0.0
  %3745 = vmatprep.subr.mxu0 0.0
  %3746 = vmatpush1.msra.mxu0 0.0
  %3747 = vmatprep.subr.mxu0 0.0
  %3748 = vmatpush1.msra.mxu0 0.0
  %3749 = vmatprep.subr.mxu0 0.0
  %3750 = vmatpush1.msra.mxu0 0.0
  %3751 = vmatprep.subr.mxu0 0.0
  %3752 = vmatpush1.msra.mxu0 0.0
  %3753 = vmatprep.subr.mxu0 0.0
  %3754 = vmatpush1.msra.mxu0 0.0
  %3755 = vmatprep.subr.mxu0 0.0
  %3756 = vmatpush1.msra.mxu0 0.0
  %3757 = vmatprep.subr.mxu0 0.0
  %3758 = vmatpush1.msra.mxu0 0.0
  %3759 = vmatprep.subr.mxu0 0.0
  %3760 = vmatpush1.msra.mxu0 0.0
  %3761 = vmatprep.subr.mxu0 0.0
  %3762 = vmatpush1.msra.mxu0 0.0
  %3763 = vmatprep.subr.mxu0 0.0
  %3764 = vmatpush1.msra.mxu0 0.0
  %3765 = vmatprep.subr.mxu0 0.0
  %3766 = vmatpush1.msra.mxu0 0.0
  %3767 = vmatprep.subr.mxu0 0.0
  %3768 = vmatpush1.msra.mxu0 0.0
  %3769 = vmatprep.subr.mxu0 0.0
  %3770 = vmatpush1.msra.mxu0 0.0
  %3771 = vmatprep.subr.mxu0 0.0
  %3772 = vmatpush1.msra.mxu0 0.0
  %3773 = vmatprep.subr.mxu0 0.0
  %3774 = vmatpush1.msra.mxu0 0.0
  %3775 = vmatprep.subr.mxu0 0.0
  %3776 = vmatpush1.msra.mxu0 0.0
  %3777 = vmatprep.subr.mxu0 0.0
  %3778 = vmatpush1.msra.mxu0 0.0
  %3779 = vmatprep.subr.mxu0 0.0
  %3780 = vmatpush1.msra.mxu0 0.0
  %3781 = vmatprep.subr.mxu0 0.0
  %3782 = vmatpush1.msra.mxu0 0.0
  %3783 = vmatprep.mubr.f32.mxu0 0.0
  %3784 = vmatmul.mubr.f32.gmra.mrb[0].mxu0 %v3575
  %v3785 = vpop.f32.mrb[0].mxu0
  %v3786 = vadd.f32 0.0, %v3785
  %v3787 = vpop.f32.mrb[0].mxu0
  %v3788 = vadd.f32 0.0, %v3787
  %3789 = vdwg.mxu0
  %3790 = vmatprep.subr.mxu0 0.0
  %3791 = vmatpush1.msra.mxu0 %v1166
  %3792 = vmatprep.subr.mxu0 0.0
  %3793 = vmatpush1.msra.mxu0 %v1173
  %3794 = vmatprep.subr.mxu0 0.0
  %3795 = vmatpush1.msra.mxu0 0.0
  %3796 = vmatprep.subr.mxu0 0.0
  %3797 = vmatpush1.msra.mxu0 0.0
  %3798 = vmatprep.subr.mxu0 0.0
  %3799 = vmatpush1.msra.mxu0 0.0
  %3800 = vmatprep.subr.mxu0 0.0
  %3801 = vmatpush1.msra.mxu0 0.0
  %3802 = vmatprep.subr.mxu0 0.0
  %3803 = vmatpush1.msra.mxu0 0.0
  %3804 = vmatprep.subr.mxu0 0.0
  %3805 = vmatpush1.msra.mxu0 0.0
  %3806 = vmatprep.subr.mxu0 0.0
  %3807 = vmatpush1.msra.mxu0 0.0
  %3808 = vmatprep.subr.mxu0 0.0
  %3809 = vmatpush1.msra.mxu0 0.0
  %3810 = vmatprep.subr.mxu0 0.0
  %3811 = vmatpush1.msra.mxu0 0.0
  %3812 = vmatprep.subr.mxu0 0.0
  %3813 = vmatpush1.msra.mxu0 0.0
  %3814 = vmatprep.subr.mxu0 0.0
  %3815 = vmatpush1.msra.mxu0 0.0
  %3816 = vmatprep.subr.mxu0 0.0
  %3817 = vmatpush1.msra.mxu0 0.0
  %3818 = vmatprep.subr.mxu0 0.0
  %3819 = vmatpush1.msra.mxu0 0.0
  %3820 = vmatprep.subr.mxu0 0.0
  %3821 = vmatpush1.msra.mxu0 0.0
  %3822 = vmatprep.subr.mxu0 0.0
  %3823 = vmatpush1.msra.mxu0 0.0
  %3824 = vmatprep.subr.mxu0 0.0
  %3825 = vmatpush1.msra.mxu0 0.0
  %3826 = vmatprep.subr.mxu0 0.0
  %3827 = vmatpush1.msra.mxu0 0.0
  %3828 = vmatprep.subr.mxu0 0.0
  %3829 = vmatpush1.msra.mxu0 0.0
  %3830 = vmatprep.subr.mxu0 0.0
  %3831 = vmatpush1.msra.mxu0 0.0
  %3832 = vmatprep.subr.mxu0 0.0
  %3833 = vmatpush1.msra.mxu0 0.0
  %3834 = vmatprep.subr.mxu0 0.0
  %3835 = vmatpush1.msra.mxu0 0.0
  %3836 = vmatprep.subr.mxu0 0.0
  %3837 = vmatpush1.msra.mxu0 0.0
  %3838 = vmatprep.subr.mxu0 0.0
  %3839 = vmatpush1.msra.mxu0 0.0
  %3840 = vmatprep.subr.mxu0 0.0
  %3841 = vmatpush1.msra.mxu0 0.0
  %3842 = vmatprep.subr.mxu0 0.0
  %3843 = vmatpush1.msra.mxu0 0.0
  %3844 = vmatprep.subr.mxu0 0.0
  %3845 = vmatpush1.msra.mxu0 0.0
  %3846 = vmatprep.subr.mxu0 0.0
  %3847 = vmatpush1.msra.mxu0 0.0
  %3848 = vmatprep.subr.mxu0 0.0
  %3849 = vmatpush1.msra.mxu0 0.0
  %3850 = vmatprep.subr.mxu0 0.0
  %3851 = vmatpush1.msra.mxu0 0.0
  %3852 = vmatprep.subr.mxu0 0.0
  %3853 = vmatpush1.msra.mxu0 0.0
  %3854 = vmatprep.mubr.f32.mxu0 0.0
  %3855 = vmatmul.mubr.f32.gmra.mrb[0].mxu0 %v3575
  %v3856 = vpop.f32.mrb[0].mxu0
  %v3857 = vadd.f32 0.0, %v3856
  %v3858 = vpop.f32.mrb[0].mxu0
  %3859 = vdwg.mxu0
  %v3861 = vsel %vm1186, %v1183, 0
  %3863 = vmatprep.subr.mxu0 %v1161
  %3864 = vmatpush1.msra.mxu0 %v1160
  %3865 = vmatprep.subr.mxu0 %v1168
  %3866 = vmatpush1.msra.mxu0 %v1167
  %3867 = vmatprep.subr.mxu0 0.0
  %3868 = vmatpush1.msra.mxu0 0.0
  %3869 = vmatprep.subr.mxu0 0.0
  %3870 = vmatpush1.msra.mxu0 0.0
  %3871 = vmatprep.subr.mxu0 0.0
  %3872 = vmatpush1.msra.mxu0 0.0
  %3873 = vmatprep.subr.mxu0 0.0
  %3874 = vmatpush1.msra.mxu0 0.0
  %3875 = vmatprep.subr.mxu0 0.0
  %3876 = vmatpush1.msra.mxu0 0.0
  %3877 = vmatprep.subr.mxu0 0.0
  %3878 = vmatpush1.msra.mxu0 0.0
  %3879 = vmatprep.subr.mxu0 0.0
  %3880 = vmatpush1.msra.mxu0 0.0
  %3881 = vmatprep.subr.mxu0 0.0
  %3882 = vmatpush1.msra.mxu0 0.0
  %3883 = vmatprep.subr.mxu0 0.0
  %3884 = vmatpush1.msra.mxu0 0.0
  %3885 = vmatprep.subr.mxu0 0.0
  %3886 = vmatpush1.msra.mxu0 0.0
  %3887 = vmatprep.subr.mxu0 0.0
  %3888 = vmatpush1.msra.mxu0 0.0
  %3889 = vmatprep.subr.mxu0 0.0
  %3890 = vmatpush1.msra.mxu0 0.0
  %3891 = vmatprep.subr.mxu0 0.0
  %3892 = vmatpush1.msra.mxu0 0.0
  %3893 = vmatprep.subr.mxu0 0.0
  %3894 = vmatpush1.msra.mxu0 0.0
  %3895 = vmatprep.subr.mxu0 0.0
  %3896 = vmatpush1.msra.mxu0 0.0
  %3897 = vmatprep.subr.mxu0 0.0
  %3898 = vmatpush1.msra.mxu0 0.0
  %3899 = vmatprep.subr.mxu0 0.0
  %3900 = vmatpush1.msra.mxu0 0.0
  %3901 = vmatprep.subr.mxu0 0.0
  %3902 = vmatpush1.msra.mxu0 0.0
  %3903 = vmatprep.subr.mxu0 0.0
  %3904 = vmatpush1.msra.mxu0 0.0
  %3905 = vmatprep.subr.mxu0 0.0
  %3906 = vmatpush1.msra.mxu0 0.0
  %3907 = vmatprep.subr.mxu0 0.0
  %3908 = vmatpush1.msra.mxu0 0.0
  %3909 = vmatprep.subr.mxu0 0.0
  %3910 = vmatpush1.msra.mxu0 0.0
  %3911 = vmatprep.subr.mxu0 0.0
  %3912 = vmatpush1.msra.mxu0 0.0
  %3913 = vmatprep.subr.mxu0 0.0
  %3914 = vmatpush1.msra.mxu0 0.0
  %3915 = vmatprep.subr.mxu0 0.0
  %3916 = vmatpush1.msra.mxu0 0.0
  %3917 = vmatprep.subr.mxu0 0.0
  %3918 = vmatpush1.msra.mxu0 0.0
  %3919 = vmatprep.subr.mxu0 0.0
  %3920 = vmatpush1.msra.mxu0 0.0
  %3921 = vmatprep.subr.mxu0 0.0
  %3922 = vmatpush1.msra.mxu0 0.0
  %3923 = vmatprep.subr.mxu0 0.0
  %3924 = vmatpush1.msra.mxu0 0.0
  %3925 = vmatprep.subr.mxu0 0.0
  %3926 = vmatpush1.msra.mxu0 0.0
  %3927 = vmatprep.mubr.f32.mxu0 0.0
  %3928 = vmatmul.mubr.f32.gmra.mrb[0].mxu0 %v3861
  %v3929 = vpop.f32.mrb[0].mxu0
  %v3930 = vadd.f32 0.0, %v3929
  %v3931 = vpop.f32.mrb[0].mxu0
  %v3932 = vadd.f32 0.0, %v3931
  %3933 = vdwg.mxu0
  %3934 = vmatprep.subr.mxu0 %v1163
  %3935 = vmatpush1.msra.mxu0 %v1162
  %3936 = vmatprep.subr.mxu0 %v1170
  %3937 = vmatpush1.msra.mxu0 %v1169
  %3938 = vmatprep.subr.mxu0 0.0
  %3939 = vmatpush1.msra.mxu0 0.0
  %3940 = vmatprep.subr.mxu0 0.0
  %3941 = vmatpush1.msra.mxu0 0.0
  %3942 = vmatprep.subr.mxu0 0.0
  %3943 = vmatpush1.msra.mxu0 0.0
  %3944 = vmatprep.subr.mxu0 0.0
  %3945 = vmatpush1.msra.mxu0 0.0
  %3946 = vmatprep.subr.mxu0 0.0
  %3947 = vmatpush1.msra.mxu0 0.0
  %3948 = vmatprep.subr.mxu0 0.0
  %3949 = vmatpush1.msra.mxu0 0.0
  %3950 = vmatprep.subr.mxu0 0.0
  %3951 = vmatpush1.msra.mxu0 0.0
  %3952 = vmatprep.subr.mxu0 0.0
  %3953 = vmatpush1.msra.mxu0 0.0
  %3954 = vmatprep.subr.mxu0 0.0
  %3955 = vmatpush1.msra.mxu0 0.0
  %3956 = vmatprep.subr.mxu0 0.0
  %3957 = vmatpush1.msra.mxu0 0.0
  %3958 = vmatprep.subr.mxu0 0.0
  %3959 = vmatpush1.msra.mxu0 0.0
  %3960 = vmatprep.subr.mxu0 0.0
  %3961 = vmatpush1.msra.mxu0 0.0
  %3962 = vmatprep.subr.mxu0 0.0
  %3963 = vmatpush1.msra.mxu0 0.0
  %3964 = vmatprep.subr.mxu0 0.0
  %3965 = vmatpush1.msra.mxu0 0.0
  %3966 = vmatprep.subr.mxu0 0.0
  %3967 = vmatpush1.msra.mxu0 0.0
  %3968 = vmatprep.subr.mxu0 0.0
  %3969 = vmatpush1.msra.mxu0 0.0
  %3970 = vmatprep.subr.mxu0 0.0
  %3971 = vmatpush1.msra.mxu0 0.0
  %3972 = vmatprep.subr.mxu0 0.0
  %3973 = vmatpush1.msra.mxu0 0.0
  %3974 = vmatprep.subr.mxu0 0.0
  %3975 = vmatpush1.msra.mxu0 0.0
  %3976 = vmatprep.subr.mxu0 0.0
  %3977 = vmatpush1.msra.mxu0 0.0
  %3978 = vmatprep.subr.mxu0 0.0
  %3979 = vmatpush1.msra.mxu0 0.0
  %3980 = vmatprep.subr.mxu0 0.0
  %3981 = vmatpush1.msra.mxu0 0.0
  %3982 = vmatprep.subr.mxu0 0.0
  %3983 = vmatpush1.msra.mxu0 0.0
  %3984 = vmatprep.subr.mxu0 0.0
  %3985 = vmatpush1.msra.mxu0 0.0
  %3986 = vmatprep.subr.mxu0 0.0
  %3987 = vmatpush1.msra.mxu0 0.0
  %3988 = vmatprep.subr.mxu0 0.0
  %3989 = vmatpush1.msra.mxu0 0.0
  %3990 = vmatprep.subr.mxu0 0.0
  %3991 = vmatpush1.msra.mxu0 0.0
  %3992 = vmatprep.subr.mxu0 0.0
  %3993 = vmatpush1.msra.mxu0 0.0
  %3994 = vmatprep.subr.mxu0 0.0
  %3995 = vmatpush1.msra.mxu0 0.0
  %3996 = vmatprep.subr.mxu0 0.0
  %3997 = vmatpush1.msra.mxu0 0.0
  %3998 = vmatprep.mubr.f32.mxu0 0.0
  %3999 = vmatmul.mubr.f32.gmra.mrb[0].mxu0 %v3861
  %v4000 = vpop.f32.mrb[0].mxu0
  %v4001 = vadd.f32 0.0, %v4000
  %v4002 = vpop.f32.mrb[0].mxu0
  %v4003 = vadd.f32 0.0, %v4002
  %4004 = vdwg.mxu0
  %4005 = vmatprep.subr.mxu0 %v1165
  %4006 = vmatpush1.msra.mxu0 %v1164
  %4007 = vmatprep.subr.mxu0 %v1172
  %4008 = vmatpush1.msra.mxu0 %v1171
  %4009 = vmatprep.subr.mxu0 0.0
  %4010 = vmatpush1.msra.mxu0 0.0
  %4011 = vmatprep.subr.mxu0 0.0
  %4012 = vmatpush1.msra.mxu0 0.0
  %4013 = vmatprep.subr.mxu0 0.0
  %4014 = vmatpush1.msra.mxu0 0.0
  %4015 = vmatprep.subr.mxu0 0.0
  %4016 = vmatpush1.msra.mxu0 0.0
  %4017 = vmatprep.subr.mxu0 0.0
  %4018 = vmatpush1.msra.mxu0 0.0
  %4019 = vmatprep.subr.mxu0 0.0
  %4020 = vmatpush1.msra.mxu0 0.0
  %4021 = vmatprep.subr.mxu0 0.0
  %4022 = vmatpush1.msra.mxu0 0.0
  %4023 = vmatprep.subr.mxu0 0.0
  %4024 = vmatpush1.msra.mxu0 0.0
  %4025 = vmatprep.subr.mxu0 0.0
  %4026 = vmatpush1.msra.mxu0 0.0
  %4027 = vmatprep.subr.mxu0 0.0
  %4028 = vmatpush1.msra.mxu0 0.0
  %4029 = vmatprep.subr.mxu0 0.0
  %4030 = vmatpush1.msra.mxu0 0.0
  %4031 = vmatprep.subr.mxu0 0.0
  %4032 = vmatpush1.msra.mxu0 0.0
  %4033 = vmatprep.subr.mxu0 0.0
  %4034 = vmatpush1.msra.mxu0 0.0
  %4035 = vmatprep.subr.mxu0 0.0
  %4036 = vmatpush1.msra.mxu0 0.0
  %4037 = vmatprep.subr.mxu0 0.0
  %4038 = vmatpush1.msra.mxu0 0.0
  %4039 = vmatprep.subr.mxu0 0.0
  %4040 = vmatpush1.msra.mxu0 0.0
  %4041 = vmatprep.subr.mxu0 0.0
  %4042 = vmatpush1.msra.mxu0 0.0
  %4043 = vmatprep.subr.mxu0 0.0
  %4044 = vmatpush1.msra.mxu0 0.0
  %4045 = vmatprep.subr.mxu0 0.0
  %4046 = vmatpush1.msra.mxu0 0.0
  %4047 = vmatprep.subr.mxu0 0.0
  %4048 = vmatpush1.msra.mxu0 0.0
  %4049 = vmatprep.subr.mxu0 0.0
  %4050 = vmatpush1.msra.mxu0 0.0
  %4051 = vmatprep.subr.mxu0 0.0
  %4052 = vmatpush1.msra.mxu0 0.0
  %4053 = vmatprep.subr.mxu0 0.0
  %4054 = vmatpush1.msra.mxu0 0.0
  %4055 = vmatprep.subr.mxu0 0.0
  %4056 = vmatpush1.msra.mxu0 0.0
  %4057 = vmatprep.subr.mxu0 0.0
  %4058 = vmatpush1.msra.mxu0 0.0
  %4059 = vmatprep.subr.mxu0 0.0
  %4060 = vmatpush1.msra.mxu0 0.0
  %4061 = vmatprep.subr.mxu0 0.0
  %4062 = vmatpush1.msra.mxu0 0.0
  %4063 = vmatprep.subr.mxu0 0.0
  %4064 = vmatpush1.msra.mxu0 0.0
  %4065 = vmatprep.subr.mxu0 0.0
  %4066 = vmatpush1.msra.mxu0 0.0
  %4067 = vmatprep.subr.mxu0 0.0
  %4068 = vmatpush1.msra.mxu0 0.0
  %4069 = vmatprep.mubr.f32.mxu0 0.0
  %4070 = vmatmul.mubr.f32.gmra.mrb[0].mxu0 %v3861
  %v4071 = vpop.f32.mrb[0].mxu0
  %v4072 = vadd.f32 0.0, %v4071
  %v4073 = vpop.f32.mrb[0].mxu0
  %v4074 = vadd.f32 0.0, %v4073
  %4075 = vdwg.mxu0
  %4076 = vmatprep.subr.mxu0 0.0
  %4077 = vmatpush1.msra.mxu0 %v1166
  %4078 = vmatprep.subr.mxu0 0.0
  %4079 = vmatpush1.msra.mxu0 %v1173
  %4080 = vmatprep.subr.mxu0 0.0
  %4081 = vmatpush1.msra.mxu0 0.0
  %4082 = vmatprep.subr.mxu0 0.0
  %4083 = vmatpush1.msra.mxu0 0.0
  %4084 = vmatprep.subr.mxu0 0.0
  %4085 = vmatpush1.msra.mxu0 0.0
  %4086 = vmatprep.subr.mxu0 0.0
  %4087 = vmatpush1.msra.mxu0 0.0
  %4088 = vmatprep.subr.mxu0 0.0
  %4089 = vmatpush1.msra.mxu0 0.0
  %4090 = vmatprep.subr.mxu0 0.0
  %4091 = vmatpush1.msra.mxu0 0.0
  %4092 = vmatprep.subr.mxu0 0.0
  %4093 = vmatpush1.msra.mxu0 0.0
  %4094 = vmatprep.subr.mxu0 0.0
  %4095 = vmatpush1.msra.mxu0 0.0
  %4096 = vmatprep.subr.mxu0 0.0
  %4097 = vmatpush1.msra.mxu0 0.0
  %4098 = vmatprep.subr.mxu0 0.0
  %4099 = vmatpush1.msra.mxu0 0.0
  %4100 = vmatprep.subr.mxu0 0.0
  %4101 = vmatpush1.msra.mxu0 0.0
  %4102 = vmatprep.subr.mxu0 0.0
  %4103 = vmatpush1.msra.mxu0 0.0
  %4104 = vmatprep.subr.mxu0 0.0
  %4105 = vmatpush1.msra.mxu0 0.0
  %4106 = vmatprep.subr.mxu0 0.0
  %4107 = vmatpush1.msra.mxu0 0.0
  %4108 = vmatprep.subr.mxu0 0.0
  %4109 = vmatpush1.msra.mxu0 0.0
  %4110 = vmatprep.subr.mxu0 0.0
  %4111 = vmatpush1.msra.mxu0 0.0
  %4112 = vmatprep.subr.mxu0 0.0
  %4113 = vmatpush1.msra.mxu0 0.0
  %4114 = vmatprep.subr.mxu0 0.0
  %4115 = vmatpush1.msra.mxu0 0.0
  %4116 = vmatprep.subr.mxu0 0.0
  %4117 = vmatpush1.msra.mxu0 0.0
  %4118 = vmatprep.subr.mxu0 0.0
  %4119 = vmatpush1.msra.mxu0 0.0
  %4120 = vmatprep.subr.mxu0 0.0
  %4121 = vmatpush1.msra.mxu0 0.0
  %4122 = vmatprep.subr.mxu0 0.0
  %4123 = vmatpush1.msra.mxu0 0.0
  %4124 = vmatprep.subr.mxu0 0.0
  %4125 = vmatpush1.msra.mxu0 0.0
  %4126 = vmatprep.subr.mxu0 0.0
  %4127 = vmatpush1.msra.mxu0 0.0
  %4128 = vmatprep.subr.mxu0 0.0
  %4129 = vmatpush1.msra.mxu0 0.0
  %4130 = vmatprep.subr.mxu0 0.0
  %4131 = vmatpush1.msra.mxu0 0.0
  %4132 = vmatprep.subr.mxu0 0.0
  %4133 = vmatpush1.msra.mxu0 0.0
  %4134 = vmatprep.subr.mxu0 0.0
  %4135 = vmatpush1.msra.mxu0 0.0
  %4136 = vmatprep.subr.mxu0 0.0
  %4137 = vmatpush1.msra.mxu0 0.0
  %4138 = vmatprep.subr.mxu0 0.0
  %4139 = vmatpush1.msra.mxu0 0.0
  %4140 = vmatprep.mubr.f32.mxu0 0.0
  %4141 = vmatmul.mubr.f32.gmra.mrb[0].mxu0 %v3861
  %v4142 = vpop.f32.mrb[0].mxu0
  %v4143 = vadd.f32 0.0, %v4142
  %v4144 = vpop.f32.mrb[0].mxu0
  %4145 = vdwg.mxu0
  %v4147 = vsel %vm1186, %v1184, 0
  %4149 = vmatprep.subr.mxu0 %v1161
  %4150 = vmatpush1.msra.mxu0 %v1160
  %4151 = vmatprep.subr.mxu0 %v1168
  %4152 = vmatpush1.msra.mxu0 %v1167
  %4153 = vmatprep.subr.mxu0 0.0
  %4154 = vmatpush1.msra.mxu0 0.0
  %4155 = vmatprep.subr.mxu0 0.0
  %4156 = vmatpush1.msra.mxu0 0.0
  %4157 = vmatprep.subr.mxu0 0.0
  %4158 = vmatpush1.msra.mxu0 0.0
  %4159 = vmatprep.subr.mxu0 0.0
  %4160 = vmatpush1.msra.mxu0 0.0
  %4161 = vmatprep.subr.mxu0 0.0
  %4162 = vmatpush1.msra.mxu0 0.0
  %4163 = vmatprep.subr.mxu0 0.0
  %4164 = vmatpush1.msra.mxu0 0.0
  %4165 = vmatprep.subr.mxu0 0.0
  %4166 = vmatpush1.msra.mxu0 0.0
  %4167 = vmatprep.subr.mxu0 0.0
  %4168 = vmatpush1.msra.mxu0 0.0
  %4169 = vmatprep.subr.mxu0 0.0
  %4170 = vmatpush1.msra.mxu0 0.0
  %4171 = vmatprep.subr.mxu0 0.0
  %4172 = vmatpush1.msra.mxu0 0.0
  %4173 = vmatprep.subr.mxu0 0.0
  %4174 = vmatpush1.msra.mxu0 0.0
  %4175 = vmatprep.subr.mxu0 0.0
  %4176 = vmatpush1.msra.mxu0 0.0
  %4177 = vmatprep.subr.mxu0 0.0
  %4178 = vmatpush1.msra.mxu0 0.0
  %4179 = vmatprep.subr.mxu0 0.0
  %4180 = vmatpush1.msra.mxu0 0.0
  %4181 = vmatprep.subr.mxu0 0.0
  %4182 = vmatpush1.msra.mxu0 0.0
  %4183 = vmatprep.subr.mxu0 0.0
  %4184 = vmatpush1.msra.mxu0 0.0
  %4185 = vmatprep.subr.mxu0 0.0
  %4186 = vmatpush1.msra.mxu0 0.0
  %4187 = vmatprep.subr.mxu0 0.0
  %4188 = vmatpush1.msra.mxu0 0.0
  %4189 = vmatprep.subr.mxu0 0.0
  %4190 = vmatpush1.msra.mxu0 0.0
  %4191 = vmatprep.subr.mxu0 0.0
  %4192 = vmatpush1.msra.mxu0 0.0
  %4193 = vmatprep.subr.mxu0 0.0
  %4194 = vmatpush1.msra.mxu0 0.0
  %4195 = vmatprep.subr.mxu0 0.0
  %4196 = vmatpush1.msra.mxu0 0.0
  %4197 = vmatprep.subr.mxu0 0.0
  %4198 = vmatpush1.msra.mxu0 0.0
  %4199 = vmatprep.subr.mxu0 0.0
  %4200 = vmatpush1.msra.mxu0 0.0
  %4201 = vmatprep.subr.mxu0 0.0
  %4202 = vmatpush1.msra.mxu0 0.0
  %4203 = vmatprep.subr.mxu0 0.0
  %4204 = vmatpush1.msra.mxu0 0.0
  %4205 = vmatprep.subr.mxu0 0.0
  %4206 = vmatpush1.msra.mxu0 0.0
  %4207 = vmatprep.subr.mxu0 0.0
  %4208 = vmatpush1.msra.mxu0 0.0
  %4209 = vmatprep.subr.mxu0 0.0
  %4210 = vmatpush1.msra.mxu0 0.0
  %4211 = vmatprep.subr.mxu0 0.0
  %4212 = vmatpush1.msra.mxu0 0.0
  %4213 = vmatprep.mubr.f32.mxu0 0.0
  %4214 = vmatmul.mubr.f32.gmra.mrb[0].mxu0 %v4147
  %v4215 = vpop.f32.mrb[0].mxu0
  %v4216 = vadd.f32 0.0, %v4215
  %v4217 = vpop.f32.mrb[0].mxu0
  %v4218 = vadd.f32 0.0, %v4217
  %4219 = vdwg.mxu0
  %4220 = vmatprep.subr.mxu0 %v1163
  %4221 = vmatpush1.msra.mxu0 %v1162
  %4222 = vmatprep.subr.mxu0 %v1170
  %4223 = vmatpush1.msra.mxu0 %v1169
  %4224 = vmatprep.subr.mxu0 0.0
  %4225 = vmatpush1.msra.mxu0 0.0
  %4226 = vmatprep.subr.mxu0 0.0
  %4227 = vmatpush1.msra.mxu0 0.0
  %4228 = vmatprep.subr.mxu0 0.0
  %4229 = vmatpush1.msra.mxu0 0.0
  %4230 = vmatprep.subr.mxu0 0.0
  %4231 = vmatpush1.msra.mxu0 0.0
  %4232 = vmatprep.subr.mxu0 0.0
  %4233 = vmatpush1.msra.mxu0 0.0
  %4234 = vmatprep.subr.mxu0 0.0
  %4235 = vmatpush1.msra.mxu0 0.0
  %4236 = vmatprep.subr.mxu0 0.0
  %4237 = vmatpush1.msra.mxu0 0.0
  %4238 = vmatprep.subr.mxu0 0.0
  %4239 = vmatpush1.msra.mxu0 0.0
  %4240 = vmatprep.subr.mxu0 0.0
  %4241 = vmatpush1.msra.mxu0 0.0
  %4242 = vmatprep.subr.mxu0 0.0
  %4243 = vmatpush1.msra.mxu0 0.0
  %4244 = vmatprep.subr.mxu0 0.0
  %4245 = vmatpush1.msra.mxu0 0.0
  %4246 = vmatprep.subr.mxu0 0.0
  %4247 = vmatpush1.msra.mxu0 0.0
  %4248 = vmatprep.subr.mxu0 0.0
  %4249 = vmatpush1.msra.mxu0 0.0
  %4250 = vmatprep.subr.mxu0 0.0
  %4251 = vmatpush1.msra.mxu0 0.0
  %4252 = vmatprep.subr.mxu0 0.0
  %4253 = vmatpush1.msra.mxu0 0.0
  %4254 = vmatprep.subr.mxu0 0.0
  %4255 = vmatpush1.msra.mxu0 0.0
  %4256 = vmatprep.subr.mxu0 0.0
  %4257 = vmatpush1.msra.mxu0 0.0
  %4258 = vmatprep.subr.mxu0 0.0
  %4259 = vmatpush1.msra.mxu0 0.0
  %4260 = vmatprep.subr.mxu0 0.0
  %4261 = vmatpush1.msra.mxu0 0.0
  %4262 = vmatprep.subr.mxu0 0.0
  %4263 = vmatpush1.msra.mxu0 0.0
  %4264 = vmatprep.subr.mxu0 0.0
  %4265 = vmatpush1.msra.mxu0 0.0
  %4266 = vmatprep.subr.mxu0 0.0
  %4267 = vmatpush1.msra.mxu0 0.0
  %4268 = vmatprep.subr.mxu0 0.0
  %4269 = vmatpush1.msra.mxu0 0.0
  %4270 = vmatprep.subr.mxu0 0.0
  %4271 = vmatpush1.msra.mxu0 0.0
  %4272 = vmatprep.subr.mxu0 0.0
  %4273 = vmatpush1.msra.mxu0 0.0
  %4274 = vmatprep.subr.mxu0 0.0
  %4275 = vmatpush1.msra.mxu0 0.0
  %4276 = vmatprep.subr.mxu0 0.0
  %4277 = vmatpush1.msra.mxu0 0.0
  %4278 = vmatprep.subr.mxu0 0.0
  %4279 = vmatpush1.msra.mxu0 0.0
  %4280 = vmatprep.subr.mxu0 0.0
  %4281 = vmatpush1.msra.mxu0 0.0
  %4282 = vmatprep.subr.mxu0 0.0
  %4283 = vmatpush1.msra.mxu0 0.0
  %4284 = vmatprep.mubr.f32.mxu0 0.0
  %4285 = vmatmul.mubr.f32.gmra.mrb[0].mxu0 %v4147
  %v4286 = vpop.f32.mrb[0].mxu0
  %v4287 = vadd.f32 0.0, %v4286
  %v4288 = vpop.f32.mrb[0].mxu0
  %v4289 = vadd.f32 0.0, %v4288
  %4290 = vdwg.mxu0
  %4291 = vmatprep.subr.mxu0 %v1165
  %4292 = vmatpush1.msra.mxu0 %v1164
  %4293 = vmatprep.subr.mxu0 %v1172
  %4294 = vmatpush1.msra.mxu0 %v1171
  %4295 = vmatprep.subr.mxu0 0.0
  %4296 = vmatpush1.msra.mxu0 0.0
  %4297 = vmatprep.subr.mxu0 0.0
  %4298 = vmatpush1.msra.mxu0 0.0
  %4299 = vmatprep.subr.mxu0 0.0
  %4300 = vmatpush1.msra.mxu0 0.0
  %4301 = vmatprep.subr.mxu0 0.0
  %4302 = vmatpush1.msra.mxu0 0.0
  %4303 = vmatprep.subr.mxu0 0.0
  %4304 = vmatpush1.msra.mxu0 0.0
  %4305 = vmatprep.subr.mxu0 0.0
  %4306 = vmatpush1.msra.mxu0 0.0
  %4307 = vmatprep.subr.mxu0 0.0
  %4308 = vmatpush1.msra.mxu0 0.0
  %4309 = vmatprep.subr.mxu0 0.0
  %4310 = vmatpush1.msra.mxu0 0.0
  %4311 = vmatprep.subr.mxu0 0.0
  %4312 = vmatpush1.msra.mxu0 0.0
  %4313 = vmatprep.subr.mxu0 0.0
  %4314 = vmatpush1.msra.mxu0 0.0
  %4315 = vmatprep.subr.mxu0 0.0
  %4316 = vmatpush1.msra.mxu0 0.0
  %4317 = vmatprep.subr.mxu0 0.0
  %4318 = vmatpush1.msra.mxu0 0.0
  %4319 = vmatprep.subr.mxu0 0.0
  %4320 = vmatpush1.msra.mxu0 0.0
  %4321 = vmatprep.subr.mxu0 0.0
  %4322 = vmatpush1.msra.mxu0 0.0
  %4323 = vmatprep.subr.mxu0 0.0
  %4324 = vmatpush1.msra.mxu0 0.0
  %4325 = vmatprep.subr.mxu0 0.0
  %4326 = vmatpush1.msra.mxu0 0.0
  %4327 = vmatprep.subr.mxu0 0.0
  %4328 = vmatpush1.msra.mxu0 0.0
  %4329 = vmatprep.subr.mxu0 0.0
  %4330 = vmatpush1.msra.mxu0 0.0
  %4331 = vmatprep.subr.mxu0 0.0
  %4332 = vmatpush1.msra.mxu0 0.0
  %4333 = vmatprep.subr.mxu0 0.0
  %4334 = vmatpush1.msra.mxu0 0.0
  %4335 = vmatprep.subr.mxu0 0.0
  %4336 = vmatpush1.msra.mxu0 0.0
  %4337 = vmatprep.subr.mxu0 0.0
  %4338 = vmatpush1.msra.mxu0 0.0
  %4339 = vmatprep.subr.mxu0 0.0
  %4340 = vmatpush1.msra.mxu0 0.0
  %4341 = vmatprep.subr.mxu0 0.0
  %4342 = vmatpush1.msra.mxu0 0.0
  %4343 = vmatprep.subr.mxu0 0.0
  %4344 = vmatpush1.msra.mxu0 0.0
  %4345 = vmatprep.subr.mxu0 0.0
  %4346 = vmatpush1.msra.mxu0 0.0
  %4347 = vmatprep.subr.mxu0 0.0
  %4348 = vmatpush1.msra.mxu0 0.0
  %4349 = vmatprep.subr.mxu0 0.0
  %4350 = vmatpush1.msra.mxu0 0.0
  %4351 = vmatprep.subr.mxu0 0.0
  %4352 = vmatpush1.msra.mxu0 0.0
  %4353 = vmatprep.subr.mxu0 0.0
  %4354 = vmatpush1.msra.mxu0 0.0
  %4355 = vmatprep.mubr.f32.mxu0 0.0
  %4356 = vmatmul.mubr.f32.gmra.mrb[0].mxu0 %v4147
  %v4357 = vpop.f32.mrb[0].mxu0
  %v4358 = vadd.f32 0.0, %v4357
  %v4359 = vpop.f32.mrb[0].mxu0
  %v4360 = vadd.f32 0.0, %v4359
  %4361 = vdwg.mxu0
  %4362 = vmatprep.subr.mxu0 0.0
  %4363 = vmatpush1.msra.mxu0 %v1166
  %4364 = vmatprep.subr.mxu0 0.0
  %4365 = vmatpush1.msra.mxu0 %v1173
  %4366 = vmatprep.subr.mxu0 0.0
  %4367 = vmatpush1.msra.mxu0 0.0
  %4368 = vmatprep.subr.mxu0 0.0
  %4369 = vmatpush1.msra.mxu0 0.0
  %4370 = vmatprep.subr.mxu0 0.0
  %4371 = vmatpush1.msra.mxu0 0.0
  %4372 = vmatprep.subr.mxu0 0.0
  %4373 = vmatpush1.msra.mxu0 0.0
  %4374 = vmatprep.subr.mxu0 0.0
  %4375 = vmatpush1.msra.mxu0 0.0
  %4376 = vmatprep.subr.mxu0 0.0
  %4377 = vmatpush1.msra.mxu0 0.0
  %4378 = vmatprep.subr.mxu0 0.0
  %4379 = vmatpush1.msra.mxu0 0.0
  %4380 = vmatprep.subr.mxu0 0.0
  %4381 = vmatpush1.msra.mxu0 0.0
  %4382 = vmatprep.subr.mxu0 0.0
  %4383 = vmatpush1.msra.mxu0 0.0
  %4384 = vmatprep.subr.mxu0 0.0
  %4385 = vmatpush1.msra.mxu0 0.0
  %4386 = vmatprep.subr.mxu0 0.0
  %4387 = vmatpush1.msra.mxu0 0.0
  %4388 = vmatprep.subr.mxu0 0.0
  %4389 = vmatpush1.msra.mxu0 0.0
  %4390 = vmatprep.subr.mxu0 0.0
  %4391 = vmatpush1.msra.mxu0 0.0
  %4392 = vmatprep.subr.mxu0 0.0
  %4393 = vmatpush1.msra.mxu0 0.0
  %4394 = vmatprep.subr.mxu0 0.0
  %4395 = vmatpush1.msra.mxu0 0.0
  %4396 = vmatprep.subr.mxu0 0.0
  %4397 = vmatpush1.msra.mxu0 0.0
  %4398 = vmatprep.subr.mxu0 0.0
  %4399 = vmatpush1.msra.mxu0 0.0
  %4400 = vmatprep.subr.mxu0 0.0
  %4401 = vmatpush1.msra.mxu0 0.0
  %4402 = vmatprep.subr.mxu0 0.0
  %4403 = vmatpush1.msra.mxu0 0.0
  %4404 = vmatprep.subr.mxu0 0.0
  %4405 = vmatpush1.msra.mxu0 0.0
  %4406 = vmatprep.subr.mxu0 0.0
  %4407 = vmatpush1.msra.mxu0 0.0
  %4408 = vmatprep.subr.mxu0 0.0
  %4409 = vmatpush1.msra.mxu0 0.0
  %4410 = vmatprep.subr.mxu0 0.0
  %4411 = vmatpush1.msra.mxu0 0.0
  %4412 = vmatprep.subr.mxu0 0.0
  %4413 = vmatpush1.msra.mxu0 0.0
  %4414 = vmatprep.subr.mxu0 0.0
  %4415 = vmatpush1.msra.mxu0 0.0
  %4416 = vmatprep.subr.mxu0 0.0
  %4417 = vmatpush1.msra.mxu0 0.0
  %4418 = vmatprep.subr.mxu0 0.0
  %4419 = vmatpush1.msra.mxu0 0.0
  %4420 = vmatprep.subr.mxu0 0.0
  %4421 = vmatpush1.msra.mxu0 0.0
  %4422 = vmatprep.subr.mxu0 0.0
  %4423 = vmatpush1.msra.mxu0 0.0
  %4424 = vmatprep.subr.mxu0 0.0
  %4425 = vmatpush1.msra.mxu0 0.0
  %4426 = vmatprep.mubr.f32.mxu0 0.0
  %4427 = vmatmul.mubr.f32.gmra.mrb[0].mxu0 %v4147
  %v4428 = vpop.f32.mrb[0].mxu0
  %v4429 = vadd.f32 0.0, %v4428
  %v4430 = vpop.f32.mrb[0].mxu0
  %4431 = vdwg.mxu0
  %v4433 = vsel %vm1186, %v1185, 0
  %4435 = vmatprep.subr.mxu0 %v1161
  %4436 = vmatpush1.msra.mxu0 %v1160
  %4437 = vmatprep.subr.mxu0 %v1168
  %4438 = vmatpush1.msra.mxu0 %v1167
  %4439 = vmatprep.subr.mxu0 0.0
  %4440 = vmatpush1.msra.mxu0 0.0
  %4441 = vmatprep.subr.mxu0 0.0
  %4442 = vmatpush1.msra.mxu0 0.0
  %4443 = vmatprep.subr.mxu0 0.0
  %4444 = vmatpush1.msra.mxu0 0.0
  %4445 = vmatprep.subr.mxu0 0.0
  %4446 = vmatpush1.msra.mxu0 0.0
  %4447 = vmatprep.subr.mxu0 0.0
  %4448 = vmatpush1.msra.mxu0 0.0
  %4449 = vmatprep.subr.mxu0 0.0
  %4450 = vmatpush1.msra.mxu0 0.0
  %4451 = vmatprep.subr.mxu0 0.0
  %4452 = vmatpush1.msra.mxu0 0.0
  %4453 = vmatprep.subr.mxu0 0.0
  %4454 = vmatpush1.msra.mxu0 0.0
  %4455 = vmatprep.subr.mxu0 0.0
  %4456 = vmatpush1.msra.mxu0 0.0
  %4457 = vmatprep.subr.mxu0 0.0
  %4458 = vmatpush1.msra.mxu0 0.0
  %4459 = vmatprep.subr.mxu0 0.0
  %4460 = vmatpush1.msra.mxu0 0.0
  %4461 = vmatprep.subr.mxu0 0.0
  %4462 = vmatpush1.msra.mxu0 0.0
  %4463 = vmatprep.subr.mxu0 0.0
  %4464 = vmatpush1.msra.mxu0 0.0
  %4465 = vmatprep.subr.mxu0 0.0
  %4466 = vmatpush1.msra.mxu0 0.0
  %4467 = vmatprep.subr.mxu0 0.0
  %4468 = vmatpush1.msra.mxu0 0.0
  %4469 = vmatprep.subr.mxu0 0.0
  %4470 = vmatpush1.msra.mxu0 0.0
  %4471 = vmatprep.subr.mxu0 0.0
  %4472 = vmatpush1.msra.mxu0 0.0
  %4473 = vmatprep.subr.mxu0 0.0
  %4474 = vmatpush1.msra.mxu0 0.0
  %4475 = vmatprep.subr.mxu0 0.0
  %4476 = vmatpush1.msra.mxu0 0.0
  %4477 = vmatprep.subr.mxu0 0.0
  %4478 = vmatpush1.msra.mxu0 0.0
  %4479 = vmatprep.subr.mxu0 0.0
  %4480 = vmatpush1.msra.mxu0 0.0
  %4481 = vmatprep.subr.mxu0 0.0
  %4482 = vmatpush1.msra.mxu0 0.0
  %4483 = vmatprep.subr.mxu0 0.0
  %4484 = vmatpush1.msra.mxu0 0.0
  %4485 = vmatprep.subr.mxu0 0.0
  %4486 = vmatpush1.msra.mxu0 0.0
  %4487 = vmatprep.subr.mxu0 0.0
  %4488 = vmatpush1.msra.mxu0 0.0
  %4489 = vmatprep.subr.mxu0 0.0
  %4490 = vmatpush1.msra.mxu0 0.0
  %4491 = vmatprep.subr.mxu0 0.0
  %4492 = vmatpush1.msra.mxu0 0.0
  %4493 = vmatprep.subr.mxu0 0.0
  %4494 = vmatpush1.msra.mxu0 0.0
  %4495 = vmatprep.subr.mxu0 0.0
  %4496 = vmatpush1.msra.mxu0 0.0
  %4497 = vmatprep.subr.mxu0 0.0
  %4498 = vmatpush1.msra.mxu0 0.0
  %4499 = vmatprep.mubr.f32.mxu0 0.0
  %4500 = vmatmul.mubr.f32.gmra.mrb[0].mxu0 %v4433
  %v4501 = vpop.f32.mrb[0].mxu0
  %v4502 = vadd.f32 0.0, %v4501
  %v4503 = vpop.f32.mrb[0].mxu0
  %v4504 = vadd.f32 0.0, %v4503
  %4505 = vdwg.mxu0
  %4506 = vmatprep.subr.mxu0 %v1163
  %4507 = vmatpush1.msra.mxu0 %v1162
  %4508 = vmatprep.subr.mxu0 %v1170
  %4509 = vmatpush1.msra.mxu0 %v1169
  %4510 = vmatprep.subr.mxu0 0.0
  %4511 = vmatpush1.msra.mxu0 0.0
  %4512 = vmatprep.subr.mxu0 0.0
  %4513 = vmatpush1.msra.mxu0 0.0
  %4514 = vmatprep.subr.mxu0 0.0
  %4515 = vmatpush1.msra.mxu0 0.0
  %4516 = vmatprep.subr.mxu0 0.0
  %4517 = vmatpush1.msra.mxu0 0.0
  %4518 = vmatprep.subr.mxu0 0.0
  %4519 = vmatpush1.msra.mxu0 0.0
  %4520 = vmatprep.subr.mxu0 0.0
  %4521 = vmatpush1.msra.mxu0 0.0
  %4522 = vmatprep.subr.mxu0 0.0
  %4523 = vmatpush1.msra.mxu0 0.0
  %4524 = vmatprep.subr.mxu0 0.0
  %4525 = vmatpush1.msra.mxu0 0.0
  %4526 = vmatprep.subr.mxu0 0.0
  %4527 = vmatpush1.msra.mxu0 0.0
  %4528 = vmatprep.subr.mxu0 0.0
  %4529 = vmatpush1.msra.mxu0 0.0
  %4530 = vmatprep.subr.mxu0 0.0
  %4531 = vmatpush1.msra.mxu0 0.0
  %4532 = vmatprep.subr.mxu0 0.0
  %4533 = vmatpush1.msra.mxu0 0.0
  %4534 = vmatprep.subr.mxu0 0.0
  %4535 = vmatpush1.msra.mxu0 0.0
  %4536 = vmatprep.subr.mxu0 0.0
  %4537 = vmatpush1.msra.mxu0 0.0
  %4538 = vmatprep.subr.mxu0 0.0
  %4539 = vmatpush1.msra.mxu0 0.0
  %4540 = vmatprep.subr.mxu0 0.0
  %4541 = vmatpush1.msra.mxu0 0.0
  %4542 = vmatprep.subr.mxu0 0.0
  %4543 = vmatpush1.msra.mxu0 0.0
  %4544 = vmatprep.subr.mxu0 0.0
  %4545 = vmatpush1.msra.mxu0 0.0
  %4546 = vmatprep.subr.mxu0 0.0
  %4547 = vmatpush1.msra.mxu0 0.0
  %4548 = vmatprep.subr.mxu0 0.0
  %4549 = vmatpush1.msra.mxu0 0.0
  %4550 = vmatprep.subr.mxu0 0.0
  %4551 = vmatpush1.msra.mxu0 0.0
  %4552 = vmatprep.subr.mxu0 0.0
  %4553 = vmatpush1.msra.mxu0 0.0
  %4554 = vmatprep.subr.mxu0 0.0
  %4555 = vmatpush1.msra.mxu0 0.0
  %4556 = vmatprep.subr.mxu0 0.0
  %4557 = vmatpush1.msra.mxu0 0.0
  %4558 = vmatprep.subr.mxu0 0.0
  %4559 = vmatpush1.msra.mxu0 0.0
  %4560 = vmatprep.subr.mxu0 0.0
  %4561 = vmatpush1.msra.mxu0 0.0
  %4562 = vmatprep.subr.mxu0 0.0
  %4563 = vmatpush1.msra.mxu0 0.0
  %4564 = vmatprep.subr.mxu0 0.0
  %4565 = vmatpush1.msra.mxu0 0.0
  %4566 = vmatprep.subr.mxu0 0.0
  %4567 = vmatpush1.msra.mxu0 0.0
  %4568 = vmatprep.subr.mxu0 0.0
  %4569 = vmatpush1.msra.mxu0 0.0
  %4570 = vmatprep.mubr.f32.mxu0 0.0
  %4571 = vmatmul.mubr.f32.gmra.mrb[0].mxu0 %v4433
  %v4572 = vpop.f32.mrb[0].mxu0
  %v4573 = vadd.f32 0.0, %v4572
  %v4574 = vpop.f32.mrb[0].mxu0
  %v4575 = vadd.f32 0.0, %v4574
  %4576 = vdwg.mxu0
  %4577 = vmatprep.subr.mxu0 %v1165
  %4578 = vmatpush1.msra.mxu0 %v1164
  %4579 = vmatprep.subr.mxu0 %v1172
  %4580 = vmatpush1.msra.mxu0 %v1171
  %4581 = vmatprep.subr.mxu0 0.0
  %4582 = vmatpush1.msra.mxu0 0.0
  %4583 = vmatprep.subr.mxu0 0.0
  %4584 = vmatpush1.msra.mxu0 0.0
  %4585 = vmatprep.subr.mxu0 0.0
  %4586 = vmatpush1.msra.mxu0 0.0
  %4587 = vmatprep.subr.mxu0 0.0
  %4588 = vmatpush1.msra.mxu0 0.0
  %4589 = vmatprep.subr.mxu0 0.0
  %4590 = vmatpush1.msra.mxu0 0.0
  %4591 = vmatprep.subr.mxu0 0.0
  %4592 = vmatpush1.msra.mxu0 0.0
  %4593 = vmatprep.subr.mxu0 0.0
  %4594 = vmatpush1.msra.mxu0 0.0
  %4595 = vmatprep.subr.mxu0 0.0
  %4596 = vmatpush1.msra.mxu0 0.0
  %4597 = vmatprep.subr.mxu0 0.0
  %4598 = vmatpush1.msra.mxu0 0.0
  %4599 = vmatprep.subr.mxu0 0.0
  %4600 = vmatpush1.msra.mxu0 0.0
  %4601 = vmatprep.subr.mxu0 0.0
  %4602 = vmatpush1.msra.mxu0 0.0
  %4603 = vmatprep.subr.mxu0 0.0
  %4604 = vmatpush1.msra.mxu0 0.0
  %4605 = vmatprep.subr.mxu0 0.0
  %4606 = vmatpush1.msra.mxu0 0.0
  %4607 = vmatprep.subr.mxu0 0.0
  %4608 = vmatpush1.msra.mxu0 0.0
  %4609 = vmatprep.subr.mxu0 0.0
  %4610 = vmatpush1.msra.mxu0 0.0
  %4611 = vmatprep.subr.mxu0 0.0
  %4612 = vmatpush1.msra.mxu0 0.0
  %4613 = vmatprep.subr.mxu0 0.0
  %4614 = vmatpush1.msra.mxu0 0.0
  %4615 = vmatprep.subr.mxu0 0.0
  %4616 = vmatpush1.msra.mxu0 0.0
  %4617 = vmatprep.subr.mxu0 0.0
  %4618 = vmatpush1.msra.mxu0 0.0
  %4619 = vmatprep.subr.mxu0 0.0
  %4620 = vmatpush1.msra.mxu0 0.0
  %4621 = vmatprep.subr.mxu0 0.0
  %4622 = vmatpush1.msra.mxu0 0.0
  %4623 = vmatprep.subr.mxu0 0.0
  %4624 = vmatpush1.msra.mxu0 0.0
  %4625 = vmatprep.subr.mxu0 0.0
  %4626 = vmatpush1.msra.mxu0 0.0
  %4627 = vmatprep.subr.mxu0 0.0
  %4628 = vmatpush1.msra.mxu0 0.0
  %4629 = vmatprep.subr.mxu0 0.0
  %4630 = vmatpush1.msra.mxu0 0.0
  %4631 = vmatprep.subr.mxu0 0.0
  %4632 = vmatpush1.msra.mxu0 0.0
  %4633 = vmatprep.subr.mxu0 0.0
  %4634 = vmatpush1.msra.mxu0 0.0
  %4635 = vmatprep.subr.mxu0 0.0
  %4636 = vmatpush1.msra.mxu0 0.0
  %4637 = vmatprep.subr.mxu0 0.0
  %4638 = vmatpush1.msra.mxu0 0.0
  %4639 = vmatprep.subr.mxu0 0.0
  %4640 = vmatpush1.msra.mxu0 0.0
  %4641 = vmatprep.mubr.f32.mxu0 0.0
  %4642 = vmatmul.mubr.f32.gmra.mrb[0].mxu0 %v4433
  %v4643 = vpop.f32.mrb[0].mxu0
  %v4644 = vadd.f32 0.0, %v4643
  %v4645 = vpop.f32.mrb[0].mxu0
  %v4646 = vadd.f32 0.0, %v4645
  %4647 = vdwg.mxu0
  %4648 = vmatprep.subr.mxu0 0.0
  %4649 = vmatpush1.msra.mxu0 %v1166
  %4650 = vmatprep.subr.mxu0 0.0
  %4651 = vmatpush1.msra.mxu0 %v1173
  %4652 = vmatprep.subr.mxu0 0.0
  %4653 = vmatpush1.msra.mxu0 0.0
  %4654 = vmatprep.subr.mxu0 0.0
  %4655 = vmatpush1.msra.mxu0 0.0
  %4656 = vmatprep.subr.mxu0 0.0
  %4657 = vmatpush1.msra.mxu0 0.0
  %4658 = vmatprep.subr.mxu0 0.0
  %4659 = vmatpush1.msra.mxu0 0.0
  %4660 = vmatprep.subr.mxu0 0.0
  %4661 = vmatpush1.msra.mxu0 0.0
  %4662 = vmatprep.subr.mxu0 0.0
  %4663 = vmatpush1.msra.mxu0 0.0
  %4664 = vmatprep.subr.mxu0 0.0
  %4665 = vmatpush1.msra.mxu0 0.0
  %4666 = vmatprep.subr.mxu0 0.0
  %4667 = vmatpush1.msra.mxu0 0.0
  %4668 = vmatprep.subr.mxu0 0.0
  %4669 = vmatpush1.msra.mxu0 0.0
  %4670 = vmatprep.subr.mxu0 0.0
  %4671 = vmatpush1.msra.mxu0 0.0
  %4672 = vmatprep.subr.mxu0 0.0
  %4673 = vmatpush1.msra.mxu0 0.0
  %4674 = vmatprep.subr.mxu0 0.0
  %4675 = vmatpush1.msra.mxu0 0.0
  %4676 = vmatprep.subr.mxu0 0.0
  %4677 = vmatpush1.msra.mxu0 0.0
  %4678 = vmatprep.subr.mxu0 0.0
  %4679 = vmatpush1.msra.mxu0 0.0
  %4680 = vmatprep.subr.mxu0 0.0
  %4681 = vmatpush1.msra.mxu0 0.0
  %4682 = vmatprep.subr.mxu0 0.0
  %4683 = vmatpush1.msra.mxu0 0.0
  %4684 = vmatprep.subr.mxu0 0.0
  %4685 = vmatpush1.msra.mxu0 0.0
  %4686 = vmatprep.subr.mxu0 0.0
  %4687 = vmatpush1.msra.mxu0 0.0
  %4688 = vmatprep.subr.mxu0 0.0
  %4689 = vmatpush1.msra.mxu0 0.0
  %4690 = vmatprep.subr.mxu0 0.0
  %4691 = vmatpush1.msra.mxu0 0.0
  %4692 = vmatprep.subr.mxu0 0.0
  %4693 = vmatpush1.msra.mxu0 0.0
  %4694 = vmatprep.subr.mxu0 0.0
  %4695 = vmatpush1.msra.mxu0 0.0
  %4696 = vmatprep.subr.mxu0 0.0
  %4697 = vmatpush1.msra.mxu0 0.0
  %4698 = vmatprep.subr.mxu0 0.0
  %4699 = vmatpush1.msra.mxu0 0.0
  %4700 = vmatprep.subr.mxu0 0.0
  %4701 = vmatpush1.msra.mxu0 0.0
  %4702 = vmatprep.subr.mxu0 0.0
  %4703 = vmatpush1.msra.mxu0 0.0
  %4704 = vmatprep.subr.mxu0 0.0
  %4705 = vmatpush1.msra.mxu0 0.0
  %4706 = vmatprep.subr.mxu0 0.0
  %4707 = vmatpush1.msra.mxu0 0.0
  %4708 = vmatprep.subr.mxu0 0.0
  %4709 = vmatpush1.msra.mxu0 0.0
  %4710 = vmatprep.subr.mxu0 0.0
  %4711 = vmatpush1.msra.mxu0 0.0
  %4712 = vmatprep.mubr.f32.mxu0 0.0
  %4713 = vmatmul.mubr.f32.gmra.mrb[0].mxu0 %v4433
  %v4714 = vpop.f32.mrb[0].mxu0
  %v4715 = vadd.f32 0.0, %v4714
  %v4716 = vpop.f32.mrb[0].mxu0
  %4717 = vdwg.mxu0
  %v4718 = vmul.f32 %v3644, %v447
  %v4719 = vmul.f32 %v3646, %v449
  %v4720 = vmul.f32 %v3715, %v518
  %v4721 = vmul.f32 %v3717, %v520
  %v4722 = vmul.f32 %v3786, %v589
  %v4723 = vmul.f32 %v3788, %v591
  %v4724 = vmul.f32 %v3857, %v660
  %v4725 = vmul.f32 %v3930, %v662
  %v4726 = vmul.f32 %v3932, %v731
  %v4727 = vmul.f32 %v4001, %v733
  %v4728 = vmul.f32 %v4003, %v802
  %v4729 = vmul.f32 %v4072, %v804
  %v4730 = vmul.f32 %v4074, %v873
  %v4731 = vmul.f32 %v4143, %v875
  %v4732 = vadd.f32 %v4718, %v4725
  %v4733 = vadd.f32 %v4719, %v4726
  %v4734 = vadd.f32 %v4720, %v4727
  %v4735 = vadd.f32 %v4721, %v4728
  %v4736 = vadd.f32 %v4722, %v4729
  %v4737 = vadd.f32 %v4723, %v4730
  %v4738 = vadd.f32 %v4724, %v4731
  %v4739 = vmul.f32 %v4216, %v944
  %v4740 = vmul.f32 %v4218, %v946
  %v4741 = vmul.f32 %v4287, %v1015
  %v4742 = vmul.f32 %v4289, %v1017
  %v4743 = vmul.f32 %v4358, %v1086
  %v4744 = vmul.f32 %v4360, %v1088
  %v4745 = vmul.f32 %v4429, %v1157
  %v4746 = vadd.f32 %v4732, %v4739
  %v4747 = vadd.f32 %v4733, %v4740
  %v4748 = vadd.f32 %v4734, %v4741
  %v4749 = vadd.f32 %v4735, %v4742
  %v4750 = vadd.f32 %v4736, %v4743
  %v4751 = vadd.f32 %v4737, %v4744
  %v4752 = vadd.f32 %v4738, %v4745
  %v4753 = vadd.f32 %v4746, %v4502
  %v4754 = vadd.f32 %v4747, %v4504
  %v4755 = vadd.f32 %v4748, %v4573
  %v4756 = vadd.f32 %v4749, %v4575
  %v4757 = vadd.f32 %v4750, %v4644
  %v4758 = vadd.f32 %v4751, %v4646
  %v4759 = vadd.f32 %v4752, %v4715
  %s4760 = scalar_lea.vmem %s4, 112
  %4761 = vst [vmem:[%s4760] sm:$0xff] %v4753
  %4762 = vst [vmem:[%s4760 + $0x8] sm:$0xff] %v4754
  %4763 = vst [vmem:[%s4760 + $0x10] sm:$0xff] %v4755
  %4764 = vst [vmem:[%s4760 + $0x18] sm:$0xff] %v4756
  %4765 = vst [vmem:[%s4760 + $0x20] sm:$0xff] %v4757
  %4766 = vst [vmem:[%s4760 + $0x28] sm:$0xff] %v4758
  %4767 = vst [vmem:[%s4760 + $0x30] sm:$0xff] %v4759
  // Predicated region
  $region18: #{mano_forward.1} parent=0 // pred_check
    _
  $region19: #{mano_forward.1} parent=0 // pred_check_branch
    %4769 = sbr.rel (0) target = $region21
  $region20: #{mano_forward.1} parent=0 // pred_region
    _
  $region21: #{mano_forward.1} parent=0 // pred_fallthru
    _
  // Predicated region
  $region22: #{mano_forward.1} parent=0 // pred_check
    _
  $region23: #{mano_forward.1} parent=0 // pred_check_branch
    %4771 = sbr.rel (0) target = $region25
  $region24: #{mano_forward.1} parent=0 // pred_region
    _
  $region25: #{mano_forward.1} parent=0 // pred_fallthru
    _

</llo_original>
